<compile_context>
chip_gen: v6e
topology: v6e:2x2x1
jax: 0.10.0
libtpu: 0.0.40
codegen_flags: <defaults>
</compile_context>

<pallas_src>
import math

import jax
import jax.numpy as jnp
from jax import lax
from jax.experimental import pallas as pl
from jax.experimental.pallas import tpu as pltpu

# ----- hyperparameters (match the PyTorch module) -----
BATCH_SIZE = 5
HEAD_DIM = 64
NUM_KV_HEADS = 4
NUM_Q_HEADS = 8
SEQ_LEN = 12
TOTAL_DIM = NUM_Q_HEADS * HEAD_DIM      # 512
KV_DIM = NUM_KV_HEADS * HEAD_DIM        # 256
REP = NUM_Q_HEADS // NUM_KV_HEADS       # 2
GROUP_W = REP * HEAD_DIM                # 128 (lane-aligned slab per KV head)
NEG_INF = -1e30


def _make_kernel(bs, sl, start_pos, kv_len):
    """Build the fused GQA kernel for static (bs, sl, start_pos, kv_len)."""
    scale = 1.0 / math.sqrt(HEAD_DIM)

    def kernel(x_ref, wqkv_ref, bqkv_ref, wo_hbm, bo_ref, mask_ref,
               kc_in, vc_in,                       # HBM (pl.ANY), aliased to outputs
               out_ref, kc_out, vc_out,            # output, HBM caches (aliased)
               *scratch):
        if start_pos > 0:
            (wo_vmem, qkv_vmem, attn_vmem, kst, vst,
             kpref, vpref, kwork, vwork, sem) = scratch
        else:
            wo_vmem, qkv_vmem, attn_vmem, kst, vst, sem = scratch
            kpref = vpref = kwork = vwork = None

        # ---- (1) kick off the output-projection weight load; it overlaps the QKV
        #          matmul and the entire attention section. ----
        wo_cp = pltpu.make_async_copy(wo_hbm, wo_vmem, sem.at[0])
        wo_cp.start()

        # ---- (2) decode path: start the old-prefix K/V loads BEFORE the QKV matmul
        #          so the DMA hides under the MXU work (disjoint from the rows the
        #          write-back below touches). ----
        if start_pos > 0:
            kp_cp = pltpu.make_async_copy(kc_in.at[:, pl.ds(0, start_pos), :],
                                          kpref, sem.at[3])
            vp_cp = pltpu.make_async_copy(vc_in.at[:, pl.ds(0, start_pos), :],
                                          vpref, sem.at[4])
            kp_cp.start()
            vp_cp.start()

        # ---- (3) fused QKV projection: one (bs*sl, 512) x (512, 1024) bf16 matmul,
        #          f32 accumulation.  Stage the result in VMEM to bound its live
        #          range across the attention loop. ----
        qkv = jnp.dot(x_ref[...], wqkv_ref[...],
                      preferred_element_type=jnp.float32)
        qkv_vmem[...] = qkv + bqkv_ref[...]

        # ---- (4) stage the new K/V rows (f32) per batch and start the in-place
        #          cache write-back DMAs; they overlap the attention compute. ----
        for b in range(bs):
            kst[b, :, :] = qkv_vmem[b * sl:(b + 1) * sl,
                                    TOTAL_DIM:TOTAL_DIM + KV_DIM]
            vst[b, :, :] = qkv_vmem[b * sl:(b + 1) * sl,
                                    TOTAL_DIM + KV_DIM:TOTAL_DIM + 2 * KV_DIM]
        k_wb = pltpu.make_async_copy(kst, kc_out.at[:, pl.ds(start_pos, sl), :],
                                     sem.at[1])
        v_wb = pltpu.make_async_copy(vst, vc_out.at[:, pl.ds(start_pos, sl), :],
                                     sem.at[2])
        k_wb.start()
        v_wb.start()

        # ---- (5) decode path: assemble the batch-major working KV window
        #          (prefix rows from the cache + freshly projected rows). ----
        if start_pos > 0:
            kp_cp.wait()
            vp_cp.wait()
            for b in range(bs):
                kwork[b * kv_len:b * kv_len + start_pos, :] = kpref[b]
                vwork[b * kv_len:b * kv_len + start_pos, :] = vpref[b]
                kwork[b * kv_len + start_pos:(b + 1) * kv_len, :] = kst[b]
                vwork[b * kv_len + start_pos:(b + 1) * kv_len, :] = vst[b]

        def kv_slice(kvh, which):
            """(bs*kv_len, HEAD_DIM) batch-major keys/values for kv head `kvh`."""
            c0 = kvh * HEAD_DIM
            if start_pos == 0:
                base = TOTAL_DIM if which == "k" else TOTAL_DIM + KV_DIM
                return qkv_vmem[:, base + c0:base + c0 + HEAD_DIM]
            ref = kwork if which == "k" else vwork
            return ref[:, c0:c0 + HEAD_DIM]

        # ---- (6) grouped-query attention, block-diagonal across the batch:
        #          per q-head one scores matmul + one PV matmul; mask_ref carries the
        #          precomputed 0 / -1e30 block-diagonal bias. ----
        mask_bias = mask_ref[...]                                  # (bs*sl, bs*kv_len)
        for kvh in range(NUM_KV_HEADS):
            k_h = kv_slice(kvh, "k").astype(jnp.bfloat16)          # (bs*kv_len, 64)
            v_h = kv_slice(kvh, "v").astype(jnp.bfloat16)
            outs = []
            for r in range(REP):
                h = kvh * REP + r                                  # q head, h // REP == kvh
                # scale is a power of two, so folding it into Q is exact.
                q_h = (qkv_vmem[:, h * HEAD_DIM:(h + 1) * HEAD_DIM]
                       * scale).astype(jnp.bfloat16)               # (bs*sl, 64)
                # q_h @ k_h.T without materializing a transpose.
                s = lax.dot_general(q_h, k_h, (((1,), (1,)), ((), ())),
                                    preferred_element_type=jnp.float32)
                s = s + mask_bias
                s = s - jnp.max(s, axis=-1, keepdims=True)
                p = jnp.exp(s)
                l = jnp.sum(p, axis=-1, keepdims=True)
                pv = jnp.dot(p.astype(jnp.bfloat16), v_h,
                             preferred_element_type=jnp.float32)
                outs.append(pv * pl.reciprocal(l, approx=False))
            # one 128-lane-aligned store for the pair of q heads sharing this KV head
            attn_vmem[:, kvh * GROUP_W:(kvh + 1) * GROUP_W] = (
                jnp.concatenate(outs, axis=-1))

        # ---- (7) output projection (wo arrived via the overlapped DMA) ----
        wo_cp.wait()
        out_ref[...] = jnp.dot(attn_vmem[...].astype(jnp.bfloat16), wo_vmem[...],
                               preferred_element_type=jnp.float32) + bo_ref[...]

        # ---- (8) the aliased cache write-backs must land before the kernel ends ----
        k_wb.wait()
        v_wb.wait()

    return kernel


def gqa_forward(x, params, k_cache, v_cache, start_pos, seq_len_for_kv):
    """Returns (out, new_k_cache, new_v_cache).  start_pos / seq_len_for_kv are static.

    Caches are updated in place via input_output_aliases; production callers should
    jit + donate the cache arguments so the alias is honored without a copy.
    """
    bs, sl, dim = x.shape
    assert dim == TOTAL_DIM
    assert seq_len_for_kv == sl, "torch cache-write slice implies seq_len_for_kv == sl"
    cache_bs, cache_sl, cache_d = k_cache.shape
    assert cache_bs == bs and cache_d == KV_DIM
    assert v_cache.shape == k_cache.shape
    assert start_pos + seq_len_for_kv <= cache_sl, "cache overflow"
    kv_len = start_pos + seq_len_for_kv

    # Pack weights once per call (in production, pack/cast once and reuse).
    wqkv = jnp.concatenate([params["wq"], params["wk"], params["wv"]],
                           axis=1).astype(jnp.bfloat16)            # (512, 1024) bf16
    bqkv = jnp.concatenate([params["bq"], params["bk"], params["bv"]],
                           axis=1).astype(jnp.float32)             # (1, 1024) f32
    wo = params["wo"].astype(jnp.bfloat16)                         # (512, 512) bf16
    bo = params["bo"].astype(jnp.float32)

    x2d = x.reshape(bs * sl, dim).astype(jnp.bfloat16)

    # Precomputed block-diagonal additive mask: query row i (batch i//sl) may only
    # attend to key row j (batch j//kv_len).
    qb = jnp.repeat(jnp.arange(bs, dtype=jnp.int32), sl)
    kb = jnp.repeat(jnp.arange(bs, dtype=jnp.int32), kv_len)
    mask_bias = jnp.where(qb[:, None] == kb[None, :], 0.0, NEG_INF).astype(jnp.float32)

    kernel = _make_kernel(bs, sl, start_pos, kv_len)

    vmem_spec = pl.BlockSpec(memory_space=pltpu.MemorySpace.VMEM)
    any_spec = pl.BlockSpec(memory_space=pl.ANY)

    scratch = [
        pltpu.VMEM((TOTAL_DIM, TOTAL_DIM), jnp.bfloat16),            # wo staging
        pltpu.VMEM((bs * sl, TOTAL_DIM + 2 * KV_DIM), jnp.float32),  # staged QKV
        pltpu.VMEM((bs * sl, TOTAL_DIM), jnp.float32),               # attention output
        pltpu.VMEM((bs, sl, KV_DIM), jnp.float32),                   # new-K staging
        pltpu.VMEM((bs, sl, KV_DIM), jnp.float32),                   # new-V staging
    ]
    if start_pos > 0:
        scratch += [
            pltpu.VMEM((bs, start_pos, KV_DIM), jnp.float32),        # K prefix
            pltpu.VMEM((bs, start_pos, KV_DIM), jnp.float32),        # V prefix
            pltpu.VMEM((bs * kv_len, KV_DIM), jnp.float32),          # working K window
            pltpu.VMEM((bs * kv_len, KV_DIM), jnp.float32),          # working V window
        ]
    scratch.append(pltpu.SemaphoreType.DMA((5,)))

    flops = (2 * bs * sl * dim * (TOTAL_DIM + 2 * KV_DIM)            # fused QKV
             + 2 * NUM_Q_HEADS * (bs * sl) * (bs * kv_len) * HEAD_DIM * 2
             + 2 * bs * sl * TOTAL_DIM * dim)                        # output projection
    bytes_accessed = (2 * (x2d.size + wqkv.size + wo.size)           # bf16 operands
                      + 4 * (bqkv.size + bo.size + mask_bias.size)
                      + 4 * (2 * bs * (start_pos + sl) * KV_DIM)     # cache window r/w
                      + 4 * bs * sl * dim)                           # output
    cost = pl.CostEstimate(flops=int(flops),
                           transcendentals=int(NUM_Q_HEADS * bs * sl * bs * kv_len),
                           bytes_accessed=int(bytes_accessed))

    out2d, new_kc, new_vc = pl.pallas_call(
        kernel,
        in_specs=[vmem_spec, vmem_spec, vmem_spec, any_spec, vmem_spec, vmem_spec,
                  any_spec, any_spec],
        out_specs=[vmem_spec, any_spec, any_spec],
        out_shape=[
            jax.ShapeDtypeStruct((bs * sl, dim), jnp.float32),
            jax.ShapeDtypeStruct(k_cache.shape, jnp.float32),
            jax.ShapeDtypeStruct(v_cache.shape, jnp.float32),
        ],
        scratch_shapes=scratch,
        input_output_aliases={6: 1, 7: 2},   # k_cache / v_cache updated in place
        cost_estimate=cost,
    )(x2d, wqkv, bqkv, wo, bo, mask_bias, k_cache, v_cache)

    return out2d.reshape(bs, sl, dim), new_kc, new_vc


def _init_params(key):
    ks = jax.random.split(key, 8)

    def lin(kw, kb, fan_in, fan_out):
        bound = 1.0 / math.sqrt(fan_in)
        w = jax.random.uniform(kw, (fan_in, fan_out), jnp.float32, -bound, bound)
        b = jax.random.uniform(kb, (1, fan_out), jnp.float32, -bound, bound)
        return w, b

    wq, bq = lin(ks[0], ks[1], TOTAL_DIM, NUM_Q_HEADS * HEAD_DIM)
    wk, bk = lin(ks[2], ks[3], TOTAL_DIM, NUM_KV_HEADS * HEAD_DIM)
    wv, bv = lin(ks[4], ks[5], TOTAL_DIM, NUM_KV_HEADS * HEAD_DIM)
    wo, bo = lin(ks[6], ks[7], NUM_Q_HEADS * HEAD_DIM, TOTAL_DIM)
    return dict(wq=wq, bq=bq, wk=wk, bk=bk, wv=wv, bv=bv, wo=wo, bo=bo)


def _reference(x, params, k_cache, v_cache, start_pos, seq_len_for_kv):
    """Pure-JAX f32 transliteration of the PyTorch forward, for validation."""
    bs, sl, _ = x.shape
    q = x @ params["wq"] + params["bq"][0]
    k = x @ params["wk"] + params["bk"][0]
    v = x @ params["wv"] + params["bv"][0]
    q = q.reshape(bs, sl, NUM_Q_HEADS, HEAD_DIM).transpose(0, 2, 1, 3)
    k = k.reshape(bs, sl, NUM_KV_HEADS, HEAD_DIM)
    v = v.reshape(bs, sl, NUM_KV_HEADS, HEAD_DIM)
    kc = k_cache.reshape(-1, k_cache.shape[1], NUM_KV_HEADS, HEAD_DIM)[:bs]
    vc = v_cache.reshape(-1, v_cache.shape[1], NUM_KV_HEADS, HEAD_DIM)[:bs]
    kc = jax.lax.dynamic_update_slice(kc, k, (0, start_pos, 0, 0))
    vc = jax.lax.dynamic_update_slice(vc, v, (0, start_pos, 0, 0))
    kv_len = start_pos + seq_len_for_kv
    keys = jnp.repeat(kc[:, :kv_len], REP, axis=2).transpose(0, 2, 1, 3)
    vals = jnp.repeat(vc[:, :kv_len], REP, axis=2).transpose(0, 2, 1, 3)
    attn = q @ keys.transpose(0, 1, 3, 2) / math.sqrt(HEAD_DIM)
    att = jax.nn.softmax(attn, axis=-1)
    a = (att @ vals).transpose(0, 2, 1, 3).reshape(bs, sl, TOTAL_DIM)
    out = a @ params["wo"] + params["bo"][0]
    new_kc = kc.reshape(bs, -1, KV_DIM)
    new_vc = vc.reshape(bs, -1, KV_DIM)
    return out, new_kc, new_vc


if __name__ == "__main__":
    key = jax.random.PRNGKey(0)
    k_x, k_p = jax.random.split(key)

    x = jax.random.normal(k_x, (BATCH_SIZE, SEQ_LEN, TOTAL_DIM), jnp.float32)
    params = _init_params(k_p)

    # Caches start at zero, flattened to (batch, seq, n_kv_heads * head_dim).
    k_cache = jnp.zeros((BATCH_SIZE, SEQ_LEN, KV_DIM), jnp.float32)
    v_cache = jnp.zeros((BATCH_SIZE, SEQ_LEN, KV_DIM), jnp.float32)

    start_pos = 0
    seq_len_for_kv = SEQ_LEN

    # Compute the f32 reference first (the kernel aliases/updates the caches).
    ref_out, ref_kc, ref_vc = _reference(x, params, k_cache, v_cache,
                                         start_pos, seq_len_for_kv)

    out, new_kc, new_vc = gqa_forward(x, params, k_cache, v_cache,
                                      start_pos, seq_len_for_kv)
    jax.block_until_ready((out, new_kc, new_vc))

    # The kernel runs its matmuls in bf16 with f32 accumulation, so it is compared
    # against the f32 reference with correspondingly relaxed tolerances.
    assert jnp.allclose(new_kc, ref_kc, rtol=1e-2, atol=1e-2), "k_cache mismatch"
    assert jnp.allclose(new_vc, ref_vc, rtol=1e-2, atol=1e-2), "v_cache mismatch"
    assert jnp.allclose(out, ref_out, rtol=2e-2, atol=2e-2), "output mismatch"

    print("KERNEL_OK")
</pallas_src>

<mosaic_0001>
module attributes {stable_mosaic.version = 11 : i64} {
  func.func @kernel(%arg0: memref<60x512xbf16, #tpu.memory_space<vmem>>, %arg1: memref<512x1024xbf16, #tpu.memory_space<vmem>>, %arg2: memref<1x1024xf32, #tpu.memory_space<vmem>>, %arg3: memref<512x512xbf16, #tpu.memory_space<any>>, %arg4: memref<1x512xf32, #tpu.memory_space<vmem>>, %arg5: memref<60x60xf32, #tpu.memory_space<vmem>>, %arg6: memref<5x12x256xf32, #tpu.memory_space<any>>, %arg7: memref<5x12x256xf32, #tpu.memory_space<any>>, %arg8: memref<60x512xf32, #tpu.memory_space<vmem>>, %arg9: memref<5x12x256xf32, #tpu.memory_space<any>>, %arg10: memref<5x12x256xf32, #tpu.memory_space<any>>, %arg11: memref<512x512xbf16, #tpu.memory_space<vmem>>, %arg12: memref<60x1024xf32, #tpu.memory_space<vmem>>, %arg13: memref<60x512xf32, #tpu.memory_space<vmem>>, %arg14: memref<5x12x256xf32, #tpu.memory_space<vmem>>, %arg15: memref<5x12x256xf32, #tpu.memory_space<vmem>>, %arg16: memref<5x!tpu.dma_semaphore, #tpu.memory_space<semaphore_mem>>) attributes {dimension_semantics = [], scalar_prefetch = 0 : i64, scratch_operands = 6 : i64, tpu.core_type = #tpu.core_type<tc>} {
    %c0_i32 = arith.constant 0 : i32
    %0 = tpu.memref_slice %arg16[%c0_i32] : memref<5x!tpu.dma_semaphore, #tpu.memory_space<semaphore_mem>> -> memref<1x!tpu.dma_semaphore, #tpu.memory_space<semaphore_mem>>
    %1 = tpu.memref_squeeze %0 : memref<1x!tpu.dma_semaphore, #tpu.memory_space<semaphore_mem>> -> memref<!tpu.dma_semaphore, #tpu.memory_space<semaphore_mem>>
    tpu.enqueue_dma source(%arg3 : memref<512x512xbf16, #tpu.memory_space<any>>) target(%arg11 : memref<512x512xbf16, #tpu.memory_space<vmem>>) target_semaphore(%1 : memref<!tpu.dma_semaphore, #tpu.memory_space<semaphore_mem>>)
    %c0 = arith.constant 0 : index
    %c0_0 = arith.constant 0 : index
    %2 = vector.load %arg0[%c0, %c0_0] : memref<60x512xbf16, #tpu.memory_space<vmem>>, vector<60x512xbf16>
    %c0_1 = arith.constant 0 : index
    %c0_2 = arith.constant 0 : index
    %3 = vector.load %arg1[%c0_1, %c0_2] : memref<512x1024xbf16, #tpu.memory_space<vmem>>, vector<512x1024xbf16>
    %cst = arith.constant dense<0.000000e+00> : vector<60x1024xf32>
    %4 = tpu.matmul %2, %3, %cst {dimension_numbers = #tpu.dot_dimension_numbers<[1], [0], [0], [1], [0, 0, 1, 1], [], []>} : vector<60x512xbf16>, vector<512x1024xbf16>, vector<60x1024xf32> -> vector<60x1024xf32>
    %c0_3 = arith.constant 0 : index
    %c0_4 = arith.constant 0 : index
    %5 = vector.load %arg2[%c0_3, %c0_4] : memref<1x1024xf32, #tpu.memory_space<vmem>>, vector<1x1024xf32>
    %6 = vector.broadcast %5 : vector<1x1024xf32> to vector<60x1024xf32>
    %7 = arith.addf %4, %6 : vector<60x1024xf32>
    %c0_5 = arith.constant 0 : index
    %c0_6 = arith.constant 0 : index
    %8 = vector.load %arg12[%c0_5, %c0_6] : memref<60x1024xf32, #tpu.memory_space<vmem>>, vector<60x1024xf32>
    tpu.vector_store %arg12[%c0_5, %c0_6], %7 {strides = array<i32>} : memref<60x1024xf32, #tpu.memory_space<vmem>>, vector<60x1024xf32>,
    %c0_7 = arith.constant 0 : index
    %c512 = arith.constant 512 : index
    %9 = vector.load %arg12[%c0_7, %c512] : memref<60x1024xf32, #tpu.memory_space<vmem>>, vector<12x256xf32>
    %c0_8 = arith.constant 0 : index
    %c0_9 = arith.constant 0 : index
    %c0_10 = arith.constant 0 : index
    %10 = vector.load %arg14[%c0_8, %c0_9, %c0_10] : memref<5x12x256xf32, #tpu.memory_space<vmem>>, vector<1x12x256xf32>
    %11 = vector.shape_cast %10 : vector<1x12x256xf32> to vector<12x256xf32>
    %12 = vector.shape_cast %9 : vector<12x256xf32> to vector<1x12x256xf32>
    tpu.vector_store %arg14[%c0_8, %c0_9, %c0_10], %12 {strides = array<i32>} : memref<5x12x256xf32, #tpu.memory_space<vmem>>, vector<1x12x256xf32>,
    %c0_11 = arith.constant 0 : index
    %c768 = arith.constant 768 : index
    %13 = vector.load %arg12[%c0_11, %c768] : memref<60x1024xf32, #tpu.memory_space<vmem>>, vector<12x256xf32>
    %c0_12 = arith.constant 0 : index
    %c0_13 = arith.constant 0 : index
    %c0_14 = arith.constant 0 : index
    %14 = vector.load %arg15[%c0_12, %c0_13, %c0_14] : memref<5x12x256xf32, #tpu.memory_space<vmem>>, vector<1x12x256xf32>
    %15 = vector.shape_cast %14 : vector<1x12x256xf32> to vector<12x256xf32>
    %16 = vector.shape_cast %13 : vector<12x256xf32> to vector<1x12x256xf32>
    tpu.vector_store %arg15[%c0_12, %c0_13, %c0_14], %16 {strides = array<i32>} : memref<5x12x256xf32, #tpu.memory_space<vmem>>, vector<1x12x256xf32>,
    %c12 = arith.constant 12 : index
    %c512_15 = arith.constant 512 : index
    %17 = vector.load %arg12[%c12, %c512_15] : memref<60x1024xf32, #tpu.memory_space<vmem>>, vector<12x256xf32>
    %c1 = arith.constant 1 : index
    %c0_16 = arith.constant 0 : index
    %c0_17 = arith.constant 0 : index
    %18 = vector.load %arg14[%c1, %c0_16, %c0_17] : memref<5x12x256xf32, #tpu.memory_space<vmem>>, vector<1x12x256xf32>
    %19 = vector.shape_cast %18 : vector<1x12x256xf32> to vector<12x256xf32>
    %20 = vector.shape_cast %17 : vector<12x256xf32> to vector<1x12x256xf32>
    tpu.vector_store %arg14[%c1, %c0_16, %c0_17], %20 {strides = array<i32>} : memref<5x12x256xf32, #tpu.memory_space<vmem>>, vector<1x12x256xf32>,
    %c12_18 = arith.constant 12 : index
    %c768_19 = arith.constant 768 : index
    %21 = vector.load %arg12[%c12_18, %c768_19] : memref<60x1024xf32, #tpu.memory_space<vmem>>, vector<12x256xf32>
    %c1_20 = arith.constant 1 : index
    %c0_21 = arith.constant 0 : index
    %c0_22 = arith.constant 0 : index
    %22 = vector.load %arg15[%c1_20, %c0_21, %c0_22] : memref<5x12x256xf32, #tpu.memory_space<vmem>>, vector<1x12x256xf32>
    %23 = vector.shape_cast %22 : vector<1x12x256xf32> to vector<12x256xf32>
    %24 = vector.shape_cast %21 : vector<12x256xf32> to vector<1x12x256xf32>
    tpu.vector_store %arg15[%c1_20, %c0_21, %c0_22], %24 {strides = array<i32>} : memref<5x12x256xf32, #tpu.memory_space<vmem>>, vector<1x12x256xf32>,
    %c24 = arith.constant 24 : index
    %c512_23 = arith.constant 512 : index
    %25 = vector.load %arg12[%c24, %c512_23] : memref<60x1024xf32, #tpu.memory_space<vmem>>, vector<12x256xf32>
    %c2 = arith.constant 2 : index
    %c0_24 = arith.constant 0 : index
    %c0_25 = arith.constant 0 : index
    %26 = vector.load %arg14[%c2, %c0_24, %c0_25] : memref<5x12x256xf32, #tpu.memory_space<vmem>>, vector<1x12x256xf32>
    %27 = vector.shape_cast %26 : vector<1x12x256xf32> to vector<12x256xf32>
    %28 = vector.shape_cast %25 : vector<12x256xf32> to vector<1x12x256xf32>
    tpu.vector_store %arg14[%c2, %c0_24, %c0_25], %28 {strides = array<i32>} : memref<5x12x256xf32, #tpu.memory_space<vmem>>, vector<1x12x256xf32>,
    %c24_26 = arith.constant 24 : index
    %c768_27 = arith.constant 768 : index
    %29 = vector.load %arg12[%c24_26, %c768_27] : memref<60x1024xf32, #tpu.memory_space<vmem>>, vector<12x256xf32>
    %c2_28 = arith.constant 2 : index
    %c0_29 = arith.constant 0 : index
    %c0_30 = arith.constant 0 : index
    %30 = vector.load %arg15[%c2_28, %c0_29, %c0_30] : memref<5x12x256xf32, #tpu.memory_space<vmem>>, vector<1x12x256xf32>
    %31 = vector.shape_cast %30 : vector<1x12x256xf32> to vector<12x256xf32>
    %32 = vector.shape_cast %29 : vector<12x256xf32> to vector<1x12x256xf32>
    tpu.vector_store %arg15[%c2_28, %c0_29, %c0_30], %32 {strides = array<i32>} : memref<5x12x256xf32, #tpu.memory_space<vmem>>, vector<1x12x256xf32>,
    %c36 = arith.constant 36 : index
    %c512_31 = arith.constant 512 : index
    %33 = vector.load %arg12[%c36, %c512_31] : memref<60x1024xf32, #tpu.memory_space<vmem>>, vector<12x256xf32>
    %c3 = arith.constant 3 : index
    %c0_32 = arith.constant 0 : index
    %c0_33 = arith.constant 0 : index
    %34 = vector.load %arg14[%c3, %c0_32, %c0_33] : memref<5x12x256xf32, #tpu.memory_space<vmem>>, vector<1x12x256xf32>
    %35 = vector.shape_cast %34 : vector<1x12x256xf32> to vector<12x256xf32>
    %36 = vector.shape_cast %33 : vector<12x256xf32> to vector<1x12x256xf32>
    tpu.vector_store %arg14[%c3, %c0_32, %c0_33], %36 {strides = array<i32>} : memref<5x12x256xf32, #tpu.memory_space<vmem>>, vector<1x12x256xf32>,
    %c36_34 = arith.constant 36 : index
    %c768_35 = arith.constant 768 : index
    %37 = vector.load %arg12[%c36_34, %c768_35] : memref<60x1024xf32, #tpu.memory_space<vmem>>, vector<12x256xf32>
    %c3_36 = arith.constant 3 : index
    %c0_37 = arith.constant 0 : index
    %c0_38 = arith.constant 0 : index
    %38 = vector.load %arg15[%c3_36, %c0_37, %c0_38] : memref<5x12x256xf32, #tpu.memory_space<vmem>>, vector<1x12x256xf32>
    %39 = vector.shape_cast %38 : vector<1x12x256xf32> to vector<12x256xf32>
    %40 = vector.shape_cast %37 : vector<12x256xf32> to vector<1x12x256xf32>
    tpu.vector_store %arg15[%c3_36, %c0_37, %c0_38], %40 {strides = array<i32>} : memref<5x12x256xf32, #tpu.memory_space<vmem>>, vector<1x12x256xf32>,
    %c48 = arith.constant 48 : index
    %c512_39 = arith.constant 512 : index
    %41 = vector.load %arg12[%c48, %c512_39] : memref<60x1024xf32, #tpu.memory_space<vmem>>, vector<12x256xf32>
    %c4 = arith.constant 4 : index
    %c0_40 = arith.constant 0 : index
    %c0_41 = arith.constant 0 : index
    %42 = vector.load %arg14[%c4, %c0_40, %c0_41] : memref<5x12x256xf32, #tpu.memory_space<vmem>>, vector<1x12x256xf32>
    %43 = vector.shape_cast %42 : vector<1x12x256xf32> to vector<12x256xf32>
    %44 = vector.shape_cast %41 : vector<12x256xf32> to vector<1x12x256xf32>
    tpu.vector_store %arg14[%c4, %c0_40, %c0_41], %44 {strides = array<i32>} : memref<5x12x256xf32, #tpu.memory_space<vmem>>, vector<1x12x256xf32>,
    %c48_42 = arith.constant 48 : index
    %c768_43 = arith.constant 768 : index
    %45 = vector.load %arg12[%c48_42, %c768_43] : memref<60x1024xf32, #tpu.memory_space<vmem>>, vector<12x256xf32>
    %c4_44 = arith.constant 4 : index
    %c0_45 = arith.constant 0 : index
    %c0_46 = arith.constant 0 : index
    %46 = vector.load %arg15[%c4_44, %c0_45, %c0_46] : memref<5x12x256xf32, #tpu.memory_space<vmem>>, vector<1x12x256xf32>
    %47 = vector.shape_cast %46 : vector<1x12x256xf32> to vector<12x256xf32>
    %48 = vector.shape_cast %45 : vector<12x256xf32> to vector<1x12x256xf32>
    tpu.vector_store %arg15[%c4_44, %c0_45, %c0_46], %48 {strides = array<i32>} : memref<5x12x256xf32, #tpu.memory_space<vmem>>, vector<1x12x256xf32>,
    %c1_i32 = arith.constant 1 : i32
    %c0_i32_47 = arith.constant 0 : i32
    %c0_i32_48 = arith.constant 0 : i32
    %c0_i32_49 = arith.constant 0 : i32
    %49 = tpu.memref_slice %arg9[%c0_i32_47, %c0_i32_48, %c0_i32_49] : memref<5x12x256xf32, #tpu.memory_space<any>> -> memref<5x12x256xf32, #tpu.memory_space<any>>
    %50 = tpu.memref_slice %arg16[%c1_i32] : memref<5x!tpu.dma_semaphore, #tpu.memory_space<semaphore_mem>> -> memref<1x!tpu.dma_semaphore, #tpu.memory_space<semaphore_mem>>
    %51 = tpu.memref_squeeze %50 : memref<1x!tpu.dma_semaphore, #tpu.memory_space<semaphore_mem>> -> memref<!tpu.dma_semaphore, #tpu.memory_space<semaphore_mem>>
    tpu.enqueue_dma source(%arg14 : memref<5x12x256xf32, #tpu.memory_space<vmem>>) target(%49 : memref<5x12x256xf32, #tpu.memory_space<any>>) target_semaphore(%51 : memref<!tpu.dma_semaphore, #tpu.memory_space<semaphore_mem>>)
    %c2_i32 = arith.constant 2 : i32
    %c0_i32_50 = arith.constant 0 : i32
    %c0_i32_51 = arith.constant 0 : i32
    %c0_i32_52 = arith.constant 0 : i32
    %52 = tpu.memref_slice %arg10[%c0_i32_50, %c0_i32_51, %c0_i32_52] : memref<5x12x256xf32, #tpu.memory_space<any>> -> memref<5x12x256xf32, #tpu.memory_space<any>>
    %53 = tpu.memref_slice %arg16[%c2_i32] : memref<5x!tpu.dma_semaphore, #tpu.memory_space<semaphore_mem>> -> memref<1x!tpu.dma_semaphore, #tpu.memory_space<semaphore_mem>>
    %54 = tpu.memref_squeeze %53 : memref<1x!tpu.dma_semaphore, #tpu.memory_space<semaphore_mem>> -> memref<!tpu.dma_semaphore, #tpu.memory_space<semaphore_mem>>
    tpu.enqueue_dma source(%arg15 : memref<5x12x256xf32, #tpu.memory_space<vmem>>) target(%52 : memref<5x12x256xf32, #tpu.memory_space<any>>) target_semaphore(%54 : memref<!tpu.dma_semaphore, #tpu.memory_space<semaphore_mem>>)
    %c0_53 = arith.constant 0 : index
    %c0_54 = arith.constant 0 : index
    %55 = vector.load %arg5[%c0_53, %c0_54] : memref<60x60xf32, #tpu.memory_space<vmem>>, vector<60x60xf32>
    %c0_55 = arith.constant 0 : index
    %c512_56 = arith.constant 512 : index
    %56 = vector.load %arg12[%c0_55, %c512_56] : memref<60x1024xf32, #tpu.memory_space<vmem>>, vector<60x64xf32>
    %57 = arith.truncf %56 : vector<60x64xf32> to vector<60x64xbf16>
    %c0_57 = arith.constant 0 : index
    %c768_58 = arith.constant 768 : index
    %58 = vector.load %arg12[%c0_57, %c768_58] : memref<60x1024xf32, #tpu.memory_space<vmem>>, vector<60x64xf32>
    %59 = arith.truncf %58 : vector<60x64xf32> to vector<60x64xbf16>
    %c0_59 = arith.constant 0 : index
    %c0_60 = arith.constant 0 : index
    %60 = vector.load %arg12[%c0_59, %c0_60] : memref<60x1024xf32, #tpu.memory_space<vmem>>, vector<60x64xf32>
    %cst_61 = arith.constant 1.250000e-01 : f32
    %61 = vector.broadcast %cst_61 : f32 to vector<60x64xf32>
    %62 = arith.mulf %60, %61 : vector<60x64xf32>
    %63 = arith.truncf %62 : vector<60x64xf32> to vector<60x64xbf16>
    %cst_62 = arith.constant dense<0.000000e+00> : vector<60x60xf32>
    %64 = tpu.matmul %63, %57, %cst_62 {dimension_numbers = #tpu.dot_dimension_numbers<[1], [1], [0], [0], [0, 0, 1, 0], [], []>} : vector<60x64xbf16>, vector<60x64xbf16>, vector<60x60xf32> -> vector<60x60xf32>
    %65 = arith.addf %64, %55 : vector<60x60xf32>
    %cst_63 = arith.constant dense<0xFF800000> : vector<60xf32>
    %66 = vector.multi_reduction <maximumf>, %65, %cst_63 [1] : vector<60x60xf32> to vector<60xf32>
    %67 = vector.shape_cast %66 : vector<60xf32> to vector<60x1xf32>
    %68 = vector.broadcast %67 : vector<60x1xf32> to vector<60x60xf32>
    %69 = arith.subf %65, %68 : vector<60x60xf32>
    %70 = math.exp %69 : vector<60x60xf32>
    %cst_64 = arith.constant dense<0.000000e+00> : vector<60xf32>
    %71 = vector.multi_reduction <add>, %70, %cst_64 [1] : vector<60x60xf32> to vector<60xf32>
    %72 = vector.shape_cast %71 : vector<60xf32> to vector<60x1xf32>
    %73 = arith.truncf %70 : vector<60x60xf32> to vector<60x60xbf16>
    %cst_65 = arith.constant dense<0.000000e+00> : vector<60x64xf32>
    %74 = tpu.matmul %73, %59, %cst_65 {dimension_numbers = #tpu.dot_dimension_numbers<[1], [0], [0], [1], [0, 0, 1, 1], [], []>} : vector<60x60xbf16>, vector<60x64xbf16>, vector<60x64xf32> -> vector<60x64xf32>
    %75 = tpu.reciprocal %72 : vector<60x1xf32> -> vector<60x1xf32>
    %76 = vector.broadcast %75 : vector<60x1xf32> to vector<60x64xf32>
    %77 = arith.mulf %74, %76 : vector<60x64xf32>
    %c0_66 = arith.constant 0 : index
    %c64 = arith.constant 64 : index
    %78 = vector.load %arg12[%c0_66, %c64] : memref<60x1024xf32, #tpu.memory_space<vmem>>, vector<60x64xf32>
    %cst_67 = arith.constant 1.250000e-01 : f32
    %79 = vector.broadcast %cst_67 : f32 to vector<60x64xf32>
    %80 = arith.mulf %78, %79 : vector<60x64xf32>
    %81 = arith.truncf %80 : vector<60x64xf32> to vector<60x64xbf16>
    %cst_68 = arith.constant dense<0.000000e+00> : vector<60x60xf32>
    %82 = tpu.matmul %81, %57, %cst_68 {dimension_numbers = #tpu.dot_dimension_numbers<[1], [1], [0], [0], [0, 0, 1, 0], [], []>} : vector<60x64xbf16>, vector<60x64xbf16>, vector<60x60xf32> -> vector<60x60xf32>
    %83 = arith.addf %82, %55 : vector<60x60xf32>
    %cst_69 = arith.constant dense<0xFF800000> : vector<60xf32>
    %84 = vector.multi_reduction <maximumf>, %83, %cst_69 [1] : vector<60x60xf32> to vector<60xf32>
    %85 = vector.shape_cast %84 : vector<60xf32> to vector<60x1xf32>
    %86 = vector.broadcast %85 : vector<60x1xf32> to vector<60x60xf32>
    %87 = arith.subf %83, %86 : vector<60x60xf32>
    %88 = math.exp %87 : vector<60x60xf32>
    %cst_70 = arith.constant dense<0.000000e+00> : vector<60xf32>
    %89 = vector.multi_reduction <add>, %88, %cst_70 [1] : vector<60x60xf32> to vector<60xf32>
    %90 = vector.shape_cast %89 : vector<60xf32> to vector<60x1xf32>
    %91 = arith.truncf %88 : vector<60x60xf32> to vector<60x60xbf16>
    %cst_71 = arith.constant dense<0.000000e+00> : vector<60x64xf32>
    %92 = tpu.matmul %91, %59, %cst_71 {dimension_numbers = #tpu.dot_dimension_numbers<[1], [0], [0], [1], [0, 0, 1, 1], [], []>} : vector<60x60xbf16>, vector<60x64xbf16>, vector<60x64xf32> -> vector<60x64xf32>
    %93 = tpu.reciprocal %90 : vector<60x1xf32> -> vector<60x1xf32>
    %94 = vector.broadcast %93 : vector<60x1xf32> to vector<60x64xf32>
    %95 = arith.mulf %92, %94 : vector<60x64xf32>
    %96 = tpu.concatenate %77, %95 in 1 : vector<60x64xf32>, vector<60x64xf32> -> vector<60x128xf32>
    %c0_72 = arith.constant 0 : index
    %c0_73 = arith.constant 0 : index
    %97 = vector.load %arg13[%c0_72, %c0_73] : memref<60x512xf32, #tpu.memory_space<vmem>>, vector<60x128xf32>
    tpu.vector_store %arg13[%c0_72, %c0_73], %96 {strides = array<i32>} : memref<60x512xf32, #tpu.memory_space<vmem>>, vector<60x128xf32>,
    %c0_74 = arith.constant 0 : index
    %c576 = arith.constant 576 : index
    %98 = vector.load %arg12[%c0_74, %c576] : memref<60x1024xf32, #tpu.memory_space<vmem>>, vector<60x64xf32>
    %99 = arith.truncf %98 : vector<60x64xf32> to vector<60x64xbf16>
    %c0_75 = arith.constant 0 : index
    %c832 = arith.constant 832 : index
    %100 = vector.load %arg12[%c0_75, %c832] : memref<60x1024xf32, #tpu.memory_space<vmem>>, vector<60x64xf32>
    %101 = arith.truncf %100 : vector<60x64xf32> to vector<60x64xbf16>
    %c0_76 = arith.constant 0 : index
    %c128 = arith.constant 128 : index
    %102 = vector.load %arg12[%c0_76, %c128] : memref<60x1024xf32, #tpu.memory_space<vmem>>, vector<60x64xf32>
    %cst_77 = arith.constant 1.250000e-01 : f32
    %103 = vector.broadcast %cst_77 : f32 to vector<60x64xf32>
    %104 = arith.mulf %102, %103 : vector<60x64xf32>
    %105 = arith.truncf %104 : vector<60x64xf32> to vector<60x64xbf16>
    %cst_78 = arith.constant dense<0.000000e+00> : vector<60x60xf32>
    %106 = tpu.matmul %105, %99, %cst_78 {dimension_numbers = #tpu.dot_dimension_numbers<[1], [1], [0], [0], [0, 0, 1, 0], [], []>} : vector<60x64xbf16>, vector<60x64xbf16>, vector<60x60xf32> -> vector<60x60xf32>
    %107 = arith.addf %106, %55 : vector<60x60xf32>
    %cst_79 = arith.constant dense<0xFF800000> : vector<60xf32>
    %108 = vector.multi_reduction <maximumf>, %107, %cst_79 [1] : vector<60x60xf32> to vector<60xf32>
    %109 = vector.shape_cast %108 : vector<60xf32> to vector<60x1xf32>
    %110 = vector.broadcast %109 : vector<60x1xf32> to vector<60x60xf32>
    %111 = arith.subf %107, %110 : vector<60x60xf32>
    %112 = math.exp %111 : vector<60x60xf32>
    %cst_80 = arith.constant dense<0.000000e+00> : vector<60xf32>
    %113 = vector.multi_reduction <add>, %112, %cst_80 [1] : vector<60x60xf32> to vector<60xf32>
    %114 = vector.shape_cast %113 : vector<60xf32> to vector<60x1xf32>
    %115 = arith.truncf %112 : vector<60x60xf32> to vector<60x60xbf16>
    %cst_81 = arith.constant dense<0.000000e+00> : vector<60x64xf32>
    %116 = tpu.matmul %115, %101, %cst_81 {dimension_numbers = #tpu.dot_dimension_numbers<[1], [0], [0], [1], [0, 0, 1, 1], [], []>} : vector<60x60xbf16>, vector<60x64xbf16>, vector<60x64xf32> -> vector<60x64xf32>
    %117 = tpu.reciprocal %114 : vector<60x1xf32> -> vector<60x1xf32>
    %118 = vector.broadcast %117 : vector<60x1xf32> to vector<60x64xf32>
    %119 = arith.mulf %116, %118 : vector<60x64xf32>
    %c0_82 = arith.constant 0 : index
    %c192 = arith.constant 192 : index
    %120 = vector.load %arg12[%c0_82, %c192] : memref<60x1024xf32, #tpu.memory_space<vmem>>, vector<60x64xf32>
    %cst_83 = arith.constant 1.250000e-01 : f32
    %121 = vector.broadcast %cst_83 : f32 to vector<60x64xf32>
    %122 = arith.mulf %120, %121 : vector<60x64xf32>
    %123 = arith.truncf %122 : vector<60x64xf32> to vector<60x64xbf16>
    %cst_84 = arith.constant dense<0.000000e+00> : vector<60x60xf32>
    %124 = tpu.matmul %123, %99, %cst_84 {dimension_numbers = #tpu.dot_dimension_numbers<[1], [1], [0], [0], [0, 0, 1, 0], [], []>} : vector<60x64xbf16>, vector<60x64xbf16>, vector<60x60xf32> -> vector<60x60xf32>
    %125 = arith.addf %124, %55 : vector<60x60xf32>
    %cst_85 = arith.constant dense<0xFF800000> : vector<60xf32>
    %126 = vector.multi_reduction <maximumf>, %125, %cst_85 [1] : vector<60x60xf32> to vector<60xf32>
    %127 = vector.shape_cast %126 : vector<60xf32> to vector<60x1xf32>
    %128 = vector.broadcast %127 : vector<60x1xf32> to vector<60x60xf32>
    %129 = arith.subf %125, %128 : vector<60x60xf32>
    %130 = math.exp %129 : vector<60x60xf32>
    %cst_86 = arith.constant dense<0.000000e+00> : vector<60xf32>
    %131 = vector.multi_reduction <add>, %130, %cst_86 [1] : vector<60x60xf32> to vector<60xf32>
    %132 = vector.shape_cast %131 : vector<60xf32> to vector<60x1xf32>
    %133 = arith.truncf %130 : vector<60x60xf32> to vector<60x60xbf16>
    %cst_87 = arith.constant dense<0.000000e+00> : vector<60x64xf32>
    %134 = tpu.matmul %133, %101, %cst_87 {dimension_numbers = #tpu.dot_dimension_numbers<[1], [0], [0], [1], [0, 0, 1, 1], [], []>} : vector<60x60xbf16>, vector<60x64xbf16>, vector<60x64xf32> -> vector<60x64xf32>
    %135 = tpu.reciprocal %132 : vector<60x1xf32> -> vector<60x1xf32>
    %136 = vector.broadcast %135 : vector<60x1xf32> to vector<60x64xf32>
    %137 = arith.mulf %134, %136 : vector<60x64xf32>
    %138 = tpu.concatenate %119, %137 in 1 : vector<60x64xf32>, vector<60x64xf32> -> vector<60x128xf32>
    %c0_88 = arith.constant 0 : index
    %c128_89 = arith.constant 128 : index
    %139 = vector.load %arg13[%c0_88, %c128_89] : memref<60x512xf32, #tpu.memory_space<vmem>>, vector<60x128xf32>
    tpu.vector_store %arg13[%c0_88, %c128_89], %138 {strides = array<i32>} : memref<60x512xf32, #tpu.memory_space<vmem>>, vector<60x128xf32>,
    %c0_90 = arith.constant 0 : index
    %c640 = arith.constant 640 : index
    %140 = vector.load %arg12[%c0_90, %c640] : memref<60x1024xf32, #tpu.memory_space<vmem>>, vector<60x64xf32>
    %141 = arith.truncf %140 : vector<60x64xf32> to vector<60x64xbf16>
    %c0_91 = arith.constant 0 : index
    %c896 = arith.constant 896 : index
    %142 = vector.load %arg12[%c0_91, %c896] : memref<60x1024xf32, #tpu.memory_space<vmem>>, vector<60x64xf32>
    %143 = arith.truncf %142 : vector<60x64xf32> to vector<60x64xbf16>
    %c0_92 = arith.constant 0 : index
    %c256 = arith.constant 256 : index
    %144 = vector.load %arg12[%c0_92, %c256] : memref<60x1024xf32, #tpu.memory_space<vmem>>, vector<60x64xf32>
    %cst_93 = arith.constant 1.250000e-01 : f32
    %145 = vector.broadcast %cst_93 : f32 to vector<60x64xf32>
    %146 = arith.mulf %144, %145 : vector<60x64xf32>
    %147 = arith.truncf %146 : vector<60x64xf32> to vector<60x64xbf16>
    %cst_94 = arith.constant dense<0.000000e+00> : vector<60x60xf32>
    %148 = tpu.matmul %147, %141, %cst_94 {dimension_numbers = #tpu.dot_dimension_numbers<[1], [1], [0], [0], [0, 0, 1, 0], [], []>} : vector<60x64xbf16>, vector<60x64xbf16>, vector<60x60xf32> -> vector<60x60xf32>
    %149 = arith.addf %148, %55 : vector<60x60xf32>
    %cst_95 = arith.constant dense<0xFF800000> : vector<60xf32>
    %150 = vector.multi_reduction <maximumf>, %149, %cst_95 [1] : vector<60x60xf32> to vector<60xf32>
    %151 = vector.shape_cast %150 : vector<60xf32> to vector<60x1xf32>
    %152 = vector.broadcast %151 : vector<60x1xf32> to vector<60x60xf32>
    %153 = arith.subf %149, %152 : vector<60x60xf32>
    %154 = math.exp %153 : vector<60x60xf32>
    %cst_96 = arith.constant dense<0.000000e+00> : vector<60xf32>
    %155 = vector.multi_reduction <add>, %154, %cst_96 [1] : vector<60x60xf32> to vector<60xf32>
    %156 = vector.shape_cast %155 : vector<60xf32> to vector<60x1xf32>
    %157 = arith.truncf %154 : vector<60x60xf32> to vector<60x60xbf16>
    %cst_97 = arith.constant dense<0.000000e+00> : vector<60x64xf32>
    %158 = tpu.matmul %157, %143, %cst_97 {dimension_numbers = #tpu.dot_dimension_numbers<[1], [0], [0], [1], [0, 0, 1, 1], [], []>} : vector<60x60xbf16>, vector<60x64xbf16>, vector<60x64xf32> -> vector<60x64xf32>
    %159 = tpu.reciprocal %156 : vector<60x1xf32> -> vector<60x1xf32>
    %160 = vector.broadcast %159 : vector<60x1xf32> to vector<60x64xf32>
    %161 = arith.mulf %158, %160 : vector<60x64xf32>
    %c0_98 = arith.constant 0 : index
    %c320 = arith.constant 320 : index
    %162 = vector.load %arg12[%c0_98, %c320] : memref<60x1024xf32, #tpu.memory_space<vmem>>, vector<60x64xf32>
    %cst_99 = arith.constant 1.250000e-01 : f32
    %163 = vector.broadcast %cst_99 : f32 to vector<60x64xf32>
    %164 = arith.mulf %162, %163 : vector<60x64xf32>
    %165 = arith.truncf %164 : vector<60x64xf32> to vector<60x64xbf16>
    %cst_100 = arith.constant dense<0.000000e+00> : vector<60x60xf32>
    %166 = tpu.matmul %165, %141, %cst_100 {dimension_numbers = #tpu.dot_dimension_numbers<[1], [1], [0], [0], [0, 0, 1, 0], [], []>} : vector<60x64xbf16>, vector<60x64xbf16>, vector<60x60xf32> -> vector<60x60xf32>
    %167 = arith.addf %166, %55 : vector<60x60xf32>
    %cst_101 = arith.constant dense<0xFF800000> : vector<60xf32>
    %168 = vector.multi_reduction <maximumf>, %167, %cst_101 [1] : vector<60x60xf32> to vector<60xf32>
    %169 = vector.shape_cast %168 : vector<60xf32> to vector<60x1xf32>
    %170 = vector.broadcast %169 : vector<60x1xf32> to vector<60x60xf32>
    %171 = arith.subf %167, %170 : vector<60x60xf32>
    %172 = math.exp %171 : vector<60x60xf32>
    %cst_102 = arith.constant dense<0.000000e+00> : vector<60xf32>
    %173 = vector.multi_reduction <add>, %172, %cst_102 [1] : vector<60x60xf32> to vector<60xf32>
    %174 = vector.shape_cast %173 : vector<60xf32> to vector<60x1xf32>
    %175 = arith.truncf %172 : vector<60x60xf32> to vector<60x60xbf16>
    %cst_103 = arith.constant dense<0.000000e+00> : vector<60x64xf32>
    %176 = tpu.matmul %175, %143, %cst_103 {dimension_numbers = #tpu.dot_dimension_numbers<[1], [0], [0], [1], [0, 0, 1, 1], [], []>} : vector<60x60xbf16>, vector<60x64xbf16>, vector<60x64xf32> -> vector<60x64xf32>
    %177 = tpu.reciprocal %174 : vector<60x1xf32> -> vector<60x1xf32>
    %178 = vector.broadcast %177 : vector<60x1xf32> to vector<60x64xf32>
    %179 = arith.mulf %176, %178 : vector<60x64xf32>
    %180 = tpu.concatenate %161, %179 in 1 : vector<60x64xf32>, vector<60x64xf32> -> vector<60x128xf32>
    %c0_104 = arith.constant 0 : index
    %c256_105 = arith.constant 256 : index
    %181 = vector.load %arg13[%c0_104, %c256_105] : memref<60x512xf32, #tpu.memory_space<vmem>>, vector<60x128xf32>
    tpu.vector_store %arg13[%c0_104, %c256_105], %180 {strides = array<i32>} : memref<60x512xf32, #tpu.memory_space<vmem>>, vector<60x128xf32>,
    %c0_106 = arith.constant 0 : index
    %c704 = arith.constant 704 : index
    %182 = vector.load %arg12[%c0_106, %c704] : memref<60x1024xf32, #tpu.memory_space<vmem>>, vector<60x64xf32>
    %183 = arith.truncf %182 : vector<60x64xf32> to vector<60x64xbf16>
    %c0_107 = arith.constant 0 : index
    %c960 = arith.constant 960 : index
    %184 = vector.load %arg12[%c0_107, %c960] : memref<60x1024xf32, #tpu.memory_space<vmem>>, vector<60x64xf32>
    %185 = arith.truncf %184 : vector<60x64xf32> to vector<60x64xbf16>
    %c0_108 = arith.constant 0 : index
    %c384 = arith.constant 384 : index
    %186 = vector.load %arg12[%c0_108, %c384] : memref<60x1024xf32, #tpu.memory_space<vmem>>, vector<60x64xf32>
    %cst_109 = arith.constant 1.250000e-01 : f32
    %187 = vector.broadcast %cst_109 : f32 to vector<60x64xf32>
    %188 = arith.mulf %186, %187 : vector<60x64xf32>
    %189 = arith.truncf %188 : vector<60x64xf32> to vector<60x64xbf16>
    %cst_110 = arith.constant dense<0.000000e+00> : vector<60x60xf32>
    %190 = tpu.matmul %189, %183, %cst_110 {dimension_numbers = #tpu.dot_dimension_numbers<[1], [1], [0], [0], [0, 0, 1, 0], [], []>} : vector<60x64xbf16>, vector<60x64xbf16>, vector<60x60xf32> -> vector<60x60xf32>
    %191 = arith.addf %190, %55 : vector<60x60xf32>
    %cst_111 = arith.constant dense<0xFF800000> : vector<60xf32>
    %192 = vector.multi_reduction <maximumf>, %191, %cst_111 [1] : vector<60x60xf32> to vector<60xf32>
    %193 = vector.shape_cast %192 : vector<60xf32> to vector<60x1xf32>
    %194 = vector.broadcast %193 : vector<60x1xf32> to vector<60x60xf32>
    %195 = arith.subf %191, %194 : vector<60x60xf32>
    %196 = math.exp %195 : vector<60x60xf32>
    %cst_112 = arith.constant dense<0.000000e+00> : vector<60xf32>
    %197 = vector.multi_reduction <add>, %196, %cst_112 [1] : vector<60x60xf32> to vector<60xf32>
    %198 = vector.shape_cast %197 : vector<60xf32> to vector<60x1xf32>
    %199 = arith.truncf %196 : vector<60x60xf32> to vector<60x60xbf16>
    %cst_113 = arith.constant dense<0.000000e+00> : vector<60x64xf32>
    %200 = tpu.matmul %199, %185, %cst_113 {dimension_numbers = #tpu.dot_dimension_numbers<[1], [0], [0], [1], [0, 0, 1, 1], [], []>} : vector<60x60xbf16>, vector<60x64xbf16>, vector<60x64xf32> -> vector<60x64xf32>
    %201 = tpu.reciprocal %198 : vector<60x1xf32> -> vector<60x1xf32>
    %202 = vector.broadcast %201 : vector<60x1xf32> to vector<60x64xf32>
    %203 = arith.mulf %200, %202 : vector<60x64xf32>
    %c0_114 = arith.constant 0 : index
    %c448 = arith.constant 448 : index
    %204 = vector.load %arg12[%c0_114, %c448] : memref<60x1024xf32, #tpu.memory_space<vmem>>, vector<60x64xf32>
    %cst_115 = arith.constant 1.250000e-01 : f32
    %205 = vector.broadcast %cst_115 : f32 to vector<60x64xf32>
    %206 = arith.mulf %204, %205 : vector<60x64xf32>
    %207 = arith.truncf %206 : vector<60x64xf32> to vector<60x64xbf16>
    %cst_116 = arith.constant dense<0.000000e+00> : vector<60x60xf32>
    %208 = tpu.matmul %207, %183, %cst_116 {dimension_numbers = #tpu.dot_dimension_numbers<[1], [1], [0], [0], [0, 0, 1, 0], [], []>} : vector<60x64xbf16>, vector<60x64xbf16>, vector<60x60xf32> -> vector<60x60xf32>
    %209 = arith.addf %208, %55 : vector<60x60xf32>
    %cst_117 = arith.constant dense<0xFF800000> : vector<60xf32>
    %210 = vector.multi_reduction <maximumf>, %209, %cst_117 [1] : vector<60x60xf32> to vector<60xf32>
    %211 = vector.shape_cast %210 : vector<60xf32> to vector<60x1xf32>
    %212 = vector.broadcast %211 : vector<60x1xf32> to vector<60x60xf32>
    %213 = arith.subf %209, %212 : vector<60x60xf32>
    %214 = math.exp %213 : vector<60x60xf32>
    %cst_118 = arith.constant dense<0.000000e+00> : vector<60xf32>
    %215 = vector.multi_reduction <add>, %214, %cst_118 [1] : vector<60x60xf32> to vector<60xf32>
    %216 = vector.shape_cast %215 : vector<60xf32> to vector<60x1xf32>
    %217 = arith.truncf %214 : vector<60x60xf32> to vector<60x60xbf16>
    %cst_119 = arith.constant dense<0.000000e+00> : vector<60x64xf32>
    %218 = tpu.matmul %217, %185, %cst_119 {dimension_numbers = #tpu.dot_dimension_numbers<[1], [0], [0], [1], [0, 0, 1, 1], [], []>} : vector<60x60xbf16>, vector<60x64xbf16>, vector<60x64xf32> -> vector<60x64xf32>
    %219 = tpu.reciprocal %216 : vector<60x1xf32> -> vector<60x1xf32>
    %220 = vector.broadcast %219 : vector<60x1xf32> to vector<60x64xf32>
    %221 = arith.mulf %218, %220 : vector<60x64xf32>
    %222 = tpu.concatenate %203, %221 in 1 : vector<60x64xf32>, vector<60x64xf32> -> vector<60x128xf32>
    %c0_120 = arith.constant 0 : index
    %c384_121 = arith.constant 384 : index
    %223 = vector.load %arg13[%c0_120, %c384_121] : memref<60x512xf32, #tpu.memory_space<vmem>>, vector<60x128xf32>
    tpu.vector_store %arg13[%c0_120, %c384_121], %222 {strides = array<i32>} : memref<60x512xf32, #tpu.memory_space<vmem>>, vector<60x128xf32>,
    %c0_i32_122 = arith.constant 0 : i32
    %224 = tpu.memref_slice %arg16[%c0_i32_122] : memref<5x!tpu.dma_semaphore, #tpu.memory_space<semaphore_mem>> -> memref<1x!tpu.dma_semaphore, #tpu.memory_space<semaphore_mem>>
    %225 = tpu.memref_squeeze %224 : memref<1x!tpu.dma_semaphore, #tpu.memory_space<semaphore_mem>> -> memref<!tpu.dma_semaphore, #tpu.memory_space<semaphore_mem>>
    tpu.wait_dma2 semaphore(%225 : memref<!tpu.dma_semaphore, #tpu.memory_space<semaphore_mem>>) src(%arg3 : memref<512x512xbf16, #tpu.memory_space<any>>) dst(%arg11 : memref<512x512xbf16, #tpu.memory_space<vmem>>)
    %c0_123 = arith.constant 0 : index
    %c0_124 = arith.constant 0 : index
    %226 = vector.load %arg13[%c0_123, %c0_124] : memref<60x512xf32, #tpu.memory_space<vmem>>, vector<60x512xf32>
    %227 = arith.truncf %226 : vector<60x512xf32> to vector<60x512xbf16>
    %c0_125 = arith.constant 0 : index
    %c0_126 = arith.constant 0 : index
    %228 = vector.load %arg11[%c0_125, %c0_126] : memref<512x512xbf16, #tpu.memory_space<vmem>>, vector<512x512xbf16>
    %cst_127 = arith.constant dense<0.000000e+00> : vector<60x512xf32>
    %229 = tpu.matmul %227, %228, %cst_127 {dimension_numbers = #tpu.dot_dimension_numbers<[1], [0], [0], [1], [0, 0, 1, 1], [], []>} : vector<60x512xbf16>, vector<512x512xbf16>, vector<60x512xf32> -> vector<60x512xf32>
    %c0_128 = arith.constant 0 : index
    %c0_129 = arith.constant 0 : index
    %230 = vector.load %arg4[%c0_128, %c0_129] : memref<1x512xf32, #tpu.memory_space<vmem>>, vector<1x512xf32>
    %231 = vector.broadcast %230 : vector<1x512xf32> to vector<60x512xf32>
    %232 = arith.addf %229, %231 : vector<60x512xf32>
    %c0_130 = arith.constant 0 : index
    %c0_131 = arith.constant 0 : index
    %233 = vector.load %arg8[%c0_130, %c0_131] : memref<60x512xf32, #tpu.memory_space<vmem>>, vector<60x512xf32>
    tpu.vector_store %arg8[%c0_130, %c0_131], %232 {strides = array<i32>} : memref<60x512xf32, #tpu.memory_space<vmem>>, vector<60x512xf32>,
    %c1_i32_132 = arith.constant 1 : i32
    %c0_i32_133 = arith.constant 0 : i32
    %c0_i32_134 = arith.constant 0 : i32
    %c0_i32_135 = arith.constant 0 : i32
    %234 = tpu.memref_slice %arg9[%c0_i32_133, %c0_i32_134, %c0_i32_135] : memref<5x12x256xf32, #tpu.memory_space<any>> -> memref<5x12x256xf32, #tpu.memory_space<any>>
    %235 = tpu.memref_slice %arg16[%c1_i32_132] : memref<5x!tpu.dma_semaphore, #tpu.memory_space<semaphore_mem>> -> memref<1x!tpu.dma_semaphore, #tpu.memory_space<semaphore_mem>>
    %236 = tpu.memref_squeeze %235 : memref<1x!tpu.dma_semaphore, #tpu.memory_space<semaphore_mem>> -> memref<!tpu.dma_semaphore, #tpu.memory_space<semaphore_mem>>
    tpu.wait_dma2 semaphore(%236 : memref<!tpu.dma_semaphore, #tpu.memory_space<semaphore_mem>>) src(%arg14 : memref<5x12x256xf32, #tpu.memory_space<vmem>>) dst(%234 : memref<5x12x256xf32, #tpu.memory_space<any>>)
    %c2_i32_136 = arith.constant 2 : i32
    %c0_i32_137 = arith.constant 0 : i32
    %c0_i32_138 = arith.constant 0 : i32
    %c0_i32_139 = arith.constant 0 : i32
    %237 = tpu.memref_slice %arg10[%c0_i32_137, %c0_i32_138, %c0_i32_139] : memref<5x12x256xf32, #tpu.memory_space<any>> -> memref<5x12x256xf32, #tpu.memory_space<any>>
    %238 = tpu.memref_slice %arg16[%c2_i32_136] : memref<5x!tpu.dma_semaphore, #tpu.memory_space<semaphore_mem>> -> memref<1x!tpu.dma_semaphore, #tpu.memory_space<semaphore_mem>>
    %239 = tpu.memref_squeeze %238 : memref<1x!tpu.dma_semaphore, #tpu.memory_space<semaphore_mem>> -> memref<!tpu.dma_semaphore, #tpu.memory_space<semaphore_mem>>
    tpu.wait_dma2 semaphore(%239 : memref<!tpu.dma_semaphore, #tpu.memory_space<semaphore_mem>>) src(%arg15 : memref<5x12x256xf32, #tpu.memory_space<vmem>>) dst(%237 : memref<5x12x256xf32, #tpu.memory_space<any>>)
    return
  }
}

</mosaic_0001>

<llo_original>
// kernel: tpu_custom_call.1
$region0: #{tpu_custom_call.1}
  #allocation0 [shape = 'u32[]', space=smem, size = 0x4, offset = 0x4, fixed_abs, tag = 'smem constant byte address 0x4 - core index']
  #allocation1 [shape = 'u32[144,128]{1,0:T(1,128)}', space=vmem, size = 0x12000, scoped, tag = 'internal scratch']
  #allocation2 [shape = 'bf16[512,512]{1,0:T(8,128)(2,1)}', space=vmem, size = 0x80000, scoped, tag = 'scratch operand']
  #allocation3 [shape = 'f32[60,1024]{1,0:T(8,128)}', space=vmem, size = 0x40000, scoped, tag = 'scratch operand']
  #allocation4 [shape = 'f32[60,512]{1,0:T(8,128)}', space=vmem, size = 0x20000, scoped, tag = 'scratch operand']
  #allocation5 [shape = 'f32[5,12,256]{2,1,0:T(8,128)}', space=vmem, size = 0x14000, scoped, tag = 'scratch operand']
  #allocation6 [shape = 'f32[5,12,256]{2,1,0:T(8,128)}', space=vmem, size = 0x14000, scoped, tag = 'scratch operand']
  #allocation7 [shape = 's32[5]{0}', space=sflag, size = 0x14, scoped, tag = 'scratch operand']
  #allocation12 [shape = 's32[]', space=sflag, size = 0x4, offset = 0, fixed_abs, tag = 'sflag constant byte address 0x0 - dummy sync flag']
  #allocation13 [shape = 's32[]', space=sflag, size = 0x4, offset = 0, fixed_abs, tag = 'sflag constant byte address 0x0 - dummy sync flag']
  #allocation14 [shape = 'u32[]', space=smem, size = 0x4, offset = 0x44, fixed_abs, tag = 'smem constant byte address 0x44 - assertion arg 0']
  #allocation15 [shape = 'u32[]', space=smem, size = 0x4, offset = 0x48, fixed_abs, tag = 'smem constant byte address 0x48 - assertion arg 1']
  #allocation16 [shape = 's32[]', space=sflag, size = 0x4, offset = 0, fixed_abs, tag = 'sflag constant byte address 0x0 - dummy sync flag']
  #allocation17 [shape = 's32[]', space=sflag, size = 0x4, offset = 0, fixed_abs, tag = 'sflag constant byte address 0x0 - dummy sync flag']
  #allocation18 [shape = 's32[]', space=sflag, size = 0x4, offset = 0, fixed_abs, tag = 'sflag constant byte address 0x0 - dummy sync flag']
  #allocation19 [shape = 's32[]', space=sflag, size = 0x4, offset = 0, fixed_abs, tag = 'sflag constant byte address 0x0 - dummy sync flag']
  %s0 = inlined_call_operand.vmem [shape: bf16[60,512], index: 0, kind: input, shape index: {}]
  %s1 = inlined_call_operand.hbm [shape: bf16[512,1024], index: 1, kind: input, shape index: {}]
  %s2 = inlined_call_operand.vmem [shape: f32[1,1024], index: 2, kind: input, shape index: {}]
  %s3 = inlined_call_operand.hbm [shape: bf16[512,512], index: 3, kind: input, shape index: {}]
  %s4 = inlined_call_operand.vmem [shape: f32[1,512], index: 4, kind: input, shape index: {}]
  %s5 = inlined_call_operand.vmem [shape: f32[60,60], index: 5, kind: input, shape index: {}]
  %s6 = inlined_call_operand.hbm [shape: f32[5,12,256], index: 6, kind: input, shape index: {}, may-alias: {6,9}]
  %s7 = inlined_call_operand.hbm [shape: f32[5,12,256], index: 7, kind: input, shape index: {}, may-alias: {7,10}]
  %s8 = inlined_call_operand.hbm [shape: f32[60,512], index: 8, kind: output, shape index: {0}]
  %s9 = inlined_call_operand.hbm [shape: f32[5,12,256], index: 9, kind: output, shape index: {1}, may-alias: {6,9}]
  %s10 = inlined_call_operand.hbm [shape: f32[5,12,256], index: 10, kind: output, shape index: {2}, may-alias: {7,10}]
  %11 = xla_tuple %s8, %s9, %s10
  %s12 = sld [smem:[#allocation0]]
  $region46: #{tpu_custom_call.1} parent=0
    _
  %s14 = ssub.s32 1, %s12
  %s15 = scalar_select 0, %s14, %s12
  $region1: #{tpu_custom_call.1} parent=0
    #allocation8 [shape = 'u8[1048576]{0}', space=vmem, size = 0x100000, scoped, tag = 'input window, operand 1, single buffered']
    #allocation9 [shape = 's32[1]{0}', space=sflag, size = 0x4, scoped, tag = 'scoped memory for tpu_custom_call.1']
    #allocation10 [shape = 's32[1]{0}', space=sflag, size = 0x4, scoped, tag = 'scoped memory for tpu_custom_call.1']
    #allocation11 [shape = 'u8[131072]{0}', space=vmem, size = 0x20000, scoped, tag = 'output window, operand 0, single buffered']
    %16 = vsyncpa [#allocation9], 0
    %17 = vsyncpa [#allocation10], 0
    // Predicated region
    $region2: #{tpu_custom_call.1} parent=1 // pred_check
      _
    $region3: #{tpu_custom_call.1} parent=1 // pred_check_branch
      %19 = sbr.rel (0) target = $region5
    $region4: #{tpu_custom_call.1} parent=1 // pred_region
      _
    $region5: #{tpu_custom_call.1} parent=1 // pred_fallthru
      _
    // Predicated region
    $region6: #{tpu_custom_call.1} parent=1 // pred_check
      _
    $region7: #{tpu_custom_call.1} parent=1 // pred_check_branch
      %21 = sbr.rel (0) target = $region9
    $region8: #{tpu_custom_call.1} parent=1 // pred_region
      %s23 = ssub.s32 32768, 32768
      %24 = vsyncadd [#allocation9], %s23
      %s25 = sshll.u32 [#allocation8], 4
      %s26 = int_to_ptr.vmem [resolvable:$true] %s25
      %31 = dma.hbm_to_vmem [thread:$0]  %s1, 32768, %s26, [#allocation9], 512, 512, 32
    $region9: #{tpu_custom_call.1} parent=1 // pred_fallthru
      _
    // Predicated region
    $region10: #{tpu_custom_call.1} parent=1 // pred_check
      _
    $region11: #{tpu_custom_call.1} parent=1 // pred_check_branch
      %33 = sbr.rel (0) target = $region13
    $region12: #{tpu_custom_call.1} parent=1 // pred_region
      _
    $region13: #{tpu_custom_call.1} parent=1 // pred_fallthru
      _
    // Predicated region
    $region14: #{tpu_custom_call.1} parent=1 // pred_check
      _
    $region15: #{tpu_custom_call.1} parent=1 // pred_check_branch
      %35 = sbr.rel (0) target = $region17
    $region16: #{tpu_custom_call.1} parent=1 // pred_region
      _
    $region17: #{tpu_custom_call.1} parent=1 // pred_fallthru
      _
    // Predicated region
    $region18: #{tpu_custom_call.1} parent=1 // pred_check
      _
    $region19: #{tpu_custom_call.1} parent=1 // pred_check_branch
      %37 = sbr.rel (0) target = $region21
    $region20: #{tpu_custom_call.1} parent=1 // pred_region
      _
    $region21: #{tpu_custom_call.1} parent=1 // pred_fallthru
      _
    // Predicated region
    $region22: #{tpu_custom_call.1} parent=1 // pred_check
      _
    $region23: #{tpu_custom_call.1} parent=1 // pred_check_branch
      %39 = sbr.rel (0) target = $region25
    $region24: #{tpu_custom_call.1} parent=1 // pred_region
      %40 = dma.done [#allocation9], 32768
    $region25: #{tpu_custom_call.1} parent=1 // pred_fallthru
      _
    // Predicated region
    $region26: #{tpu_custom_call.1} parent=1 // pred_check
      _
    $region27: #{tpu_custom_call.1} parent=1 // pred_check_branch
      %43 = sbr.rel target = $region29
    $region28: #{tpu_custom_call.1} parent=1 // pred_region
      %44 = sst [smem:[#allocation14]] [#allocation13]
      %45 = sst [smem:[#allocation15]] [#allocation12]
    $region29: #{tpu_custom_call.1} parent=1 // pred_fallthru
      _
    %47 = shalt.err (0)
    %s49 = sshll.u32 [#allocation2], 4
    %s50 = int_to_ptr.vmem [resolvable:$true] %s49
    %52 = dma.hbm_to_vmem [thread:$0]  %s3, 16384, %s50, [#allocation7]
    %v53 = vld [vmem:[%s0] sm:$0xff]
    %v54 = vld [vmem:[%s0 + $0x8] sm:$0xff]
    %v55 = vld [vmem:[%s0 + $0x10] sm:$0xff]
    %v56 = vld [vmem:[%s0 + $0x18] sm:$0xff]
    %v57 = vld [vmem:[%s0 + $0x20] sm:$0xff]
    %v58 = vld [vmem:[%s0 + $0x28] sm:$0xff]
    %v59 = vld [vmem:[%s0 + $0x30] sm:$0xff]
    %v60 = vld [vmem:[%s0 + $0x38] sm:$0xff]
    %v61 = vld [vmem:[%s0 + $0x40] sm:$0xff]
    %v62 = vld [vmem:[%s0 + $0x48] sm:$0xff]
    %v63 = vld [vmem:[%s0 + $0x50] sm:$0xff]
    %v64 = vld [vmem:[%s0 + $0x58] sm:$0xff]
    %v65 = vld [vmem:[%s0 + $0x60] sm:$0xff]
    %v66 = vld [vmem:[%s0 + $0x68] sm:$0xff]
    %v67 = vld [vmem:[%s0 + $0x70] sm:$0x33]
    %v68 = vld [vmem:[%s0 + $0x78] sm:$0x33]
    %v69 = vld [vmem:[#allocation8] sm:$0xff]
    %v70 = vld [vmem:[#allocation8 + $0x8] sm:$0xff]
    %v71 = vld [vmem:[#allocation8 + $0x10] sm:$0xff]
    %v72 = vld [vmem:[#allocation8 + $0x18] sm:$0xff]
    %v73 = vld [vmem:[#allocation8 + $0x20] sm:$0xff]
    %v74 = vld [vmem:[#allocation8 + $0x28] sm:$0xff]
    %v75 = vld [vmem:[#allocation8 + $0x30] sm:$0xff]
    %v76 = vld [vmem:[#allocation8 + $0x38] sm:$0xff]
    %v77 = vld [vmem:[#allocation8 + $0x40] sm:$0xff]
    %v78 = vld [vmem:[#allocation8 + $0x48] sm:$0xff]
    %v79 = vld [vmem:[#allocation8 + $0x50] sm:$0xff]
    %v80 = vld [vmem:[#allocation8 + $0x58] sm:$0xff]
    %v81 = vld [vmem:[#allocation8 + $0x60] sm:$0xff]
    %v82 = vld [vmem:[#allocation8 + $0x68] sm:$0xff]
    %v83 = vld [vmem:[#allocation8 + $0x70] sm:$0xff]
    %v84 = vld [vmem:[#allocation8 + $0x78] sm:$0xff]
    %v85 = vld [vmem:[#allocation8 + $0x80] sm:$0xff]
    %v86 = vld [vmem:[#allocation8 + $0x88] sm:$0xff]
    %v87 = vld [vmem:[#allocation8 + $0x90] sm:$0xff]
    %v88 = vld [vmem:[#allocation8 + $0x98] sm:$0xff]
    %v89 = vld [vmem:[#allocation8 + $0xa0] sm:$0xff]
    %v90 = vld [vmem:[#allocation8 + $0xa8] sm:$0xff]
    %v91 = vld [vmem:[#allocation8 + $0xb0] sm:$0xff]
    %v92 = vld [vmem:[#allocation8 + $0xb8] sm:$0xff]
    %v93 = vld [vmem:[#allocation8 + $0xc0] sm:$0xff]
    %v94 = vld [vmem:[#allocation8 + $0xc8] sm:$0xff]
    %v95 = vld [vmem:[#allocation8 + $0xd0] sm:$0xff]
    %v96 = vld [vmem:[#allocation8 + $0xd8] sm:$0xff]
    %v97 = vld [vmem:[#allocation8 + $0xe0] sm:$0xff]
    %v98 = vld [vmem:[#allocation8 + $0xe8] sm:$0xff]
    %v99 = vld [vmem:[#allocation8 + $0xf0] sm:$0xff]
    %v100 = vld [vmem:[#allocation8 + $0xf8] sm:$0xff]
    %v101 = vld [vmem:[#allocation8 + $0x100] sm:$0xff]
    %v102 = vld [vmem:[#allocation8 + $0x108] sm:$0xff]
    %v103 = vld [vmem:[#allocation8 + $0x110] sm:$0xff]
    %v104 = vld [vmem:[#allocation8 + $0x118] sm:$0xff]
    %v105 = vld [vmem:[#allocation8 + $0x120] sm:$0xff]
    %v106 = vld [vmem:[#allocation8 + $0x128] sm:$0xff]
    %v107 = vld [vmem:[#allocation8 + $0x130] sm:$0xff]
    %v108 = vld [vmem:[#allocation8 + $0x138] sm:$0xff]
    %v109 = vld [vmem:[#allocation8 + $0x140] sm:$0xff]
    %v110 = vld [vmem:[#allocation8 + $0x148] sm:$0xff]
    %v111 = vld [vmem:[#allocation8 + $0x150] sm:$0xff]
    %v112 = vld [vmem:[#allocation8 + $0x158] sm:$0xff]
    %v113 = vld [vmem:[#allocation8 + $0x160] sm:$0xff]
    %v114 = vld [vmem:[#allocation8 + $0x168] sm:$0xff]
    %v115 = vld [vmem:[#allocation8 + $0x170] sm:$0xff]
    %v116 = vld [vmem:[#allocation8 + $0x178] sm:$0xff]
    %v117 = vld [vmem:[#allocation8 + $0x180] sm:$0xff]
    %v118 = vld [vmem:[#allocation8 + $0x188] sm:$0xff]
    %v119 = vld [vmem:[#allocation8 + $0x190] sm:$0xff]
    %v120 = vld [vmem:[#allocation8 + $0x198] sm:$0xff]
    %v121 = vld [vmem:[#allocation8 + $0x1a0] sm:$0xff]
    %v122 = vld [vmem:[#allocation8 + $0x1a8] sm:$0xff]
    %v123 = vld [vmem:[#allocation8 + $0x1b0] sm:$0xff]
    %v124 = vld [vmem:[#allocation8 + $0x1b8] sm:$0xff]
    %v125 = vld [vmem:[#allocation8 + $0x1c0] sm:$0xff]
    %v126 = vld [vmem:[#allocation8 + $0x1c8] sm:$0xff]
    %v127 = vld [vmem:[#allocation8 + $0x1d0] sm:$0xff]
    %v128 = vld [vmem:[#allocation8 + $0x1d8] sm:$0xff]
    %v129 = vld [vmem:[#allocation8 + $0x1e0] sm:$0xff]
    %v130 = vld [vmem:[#allocation8 + $0x1e8] sm:$0xff]
    %v131 = vld [vmem:[#allocation8 + $0x1f0] sm:$0xff]
    %v132 = vld [vmem:[#allocation8 + $0x1f8] sm:$0xff]
    %v133 = vld [vmem:[#allocation8 + $0x200] sm:$0xff]
    %v134 = vld [vmem:[#allocation8 + $0x208] sm:$0xff]
    %v135 = vld [vmem:[#allocation8 + $0x210] sm:$0xff]
    %v136 = vld [vmem:[#allocation8 + $0x218] sm:$0xff]
    %v137 = vld [vmem:[#allocation8 + $0x220] sm:$0xff]
    %v138 = vld [vmem:[#allocation8 + $0x228] sm:$0xff]
    %v139 = vld [vmem:[#allocation8 + $0x230] sm:$0xff]
    %v140 = vld [vmem:[#allocation8 + $0x238] sm:$0xff]
    %v141 = vld [vmem:[#allocation8 + $0x240] sm:$0xff]
    %v142 = vld [vmem:[#allocation8 + $0x248] sm:$0xff]
    %v143 = vld [vmem:[#allocation8 + $0x250] sm:$0xff]
    %v144 = vld [vmem:[#allocation8 + $0x258] sm:$0xff]
    %v145 = vld [vmem:[#allocation8 + $0x260] sm:$0xff]
    %v146 = vld [vmem:[#allocation8 + $0x268] sm:$0xff]
    %v147 = vld [vmem:[#allocation8 + $0x270] sm:$0xff]
    %v148 = vld [vmem:[#allocation8 + $0x278] sm:$0xff]
    %v149 = vld [vmem:[#allocation8 + $0x280] sm:$0xff]
    %v150 = vld [vmem:[#allocation8 + $0x288] sm:$0xff]
    %v151 = vld [vmem:[#allocation8 + $0x290] sm:$0xff]
    %v152 = vld [vmem:[#allocation8 + $0x298] sm:$0xff]
    %v153 = vld [vmem:[#allocation8 + $0x2a0] sm:$0xff]
    %v154 = vld [vmem:[#allocation8 + $0x2a8] sm:$0xff]
    %v155 = vld [vmem:[#allocation8 + $0x2b0] sm:$0xff]
    %v156 = vld [vmem:[#allocation8 + $0x2b8] sm:$0xff]
    %v157 = vld [vmem:[#allocation8 + $0x2c0] sm:$0xff]
    %v158 = vld [vmem:[#allocation8 + $0x2c8] sm:$0xff]
    %v159 = vld [vmem:[#allocation8 + $0x2d0] sm:$0xff]
    %v160 = vld [vmem:[#allocation8 + $0x2d8] sm:$0xff]
    %v161 = vld [vmem:[#allocation8 + $0x2e0] sm:$0xff]
    %v162 = vld [vmem:[#allocation8 + $0x2e8] sm:$0xff]
    %v163 = vld [vmem:[#allocation8 + $0x2f0] sm:$0xff]
    %v164 = vld [vmem:[#allocation8 + $0x2f8] sm:$0xff]
    %v165 = vld [vmem:[#allocation8 + $0x300] sm:$0xff]
    %v166 = vld [vmem:[#allocation8 + $0x308] sm:$0xff]
    %v167 = vld [vmem:[#allocation8 + $0x310] sm:$0xff]
    %v168 = vld [vmem:[#allocation8 + $0x318] sm:$0xff]
    %v169 = vld [vmem:[#allocation8 + $0x320] sm:$0xff]
    %v170 = vld [vmem:[#allocation8 + $0x328] sm:$0xff]
    %v171 = vld [vmem:[#allocation8 + $0x330] sm:$0xff]
    %v172 = vld [vmem:[#allocation8 + $0x338] sm:$0xff]
    %v173 = vld [vmem:[#allocation8 + $0x340] sm:$0xff]
    %v174 = vld [vmem:[#allocation8 + $0x348] sm:$0xff]
    %v175 = vld [vmem:[#allocation8 + $0x350] sm:$0xff]
    %v176 = vld [vmem:[#allocation8 + $0x358] sm:$0xff]
    %v177 = vld [vmem:[#allocation8 + $0x360] sm:$0xff]
    %v178 = vld [vmem:[#allocation8 + $0x368] sm:$0xff]
    %v179 = vld [vmem:[#allocation8 + $0x370] sm:$0xff]
    %v180 = vld [vmem:[#allocation8 + $0x378] sm:$0xff]
    %v181 = vld [vmem:[#allocation8 + $0x380] sm:$0xff]
    %v182 = vld [vmem:[#allocation8 + $0x388] sm:$0xff]
    %v183 = vld [vmem:[#allocation8 + $0x390] sm:$0xff]
    %v184 = vld [vmem:[#allocation8 + $0x398] sm:$0xff]
    %v185 = vld [vmem:[#allocation8 + $0x3a0] sm:$0xff]
    %v186 = vld [vmem:[#allocation8 + $0x3a8] sm:$0xff]
    %v187 = vld [vmem:[#allocation8 + $0x3b0] sm:$0xff]
    %v188 = vld [vmem:[#allocation8 + $0x3b8] sm:$0xff]
    %v189 = vld [vmem:[#allocation8 + $0x3c0] sm:$0xff]
    %v190 = vld [vmem:[#allocation8 + $0x3c8] sm:$0xff]
    %v191 = vld [vmem:[#allocation8 + $0x3d0] sm:$0xff]
    %v192 = vld [vmem:[#allocation8 + $0x3d8] sm:$0xff]
    %v193 = vld [vmem:[#allocation8 + $0x3e0] sm:$0xff]
    %v194 = vld [vmem:[#allocation8 + $0x3e8] sm:$0xff]
    %v195 = vld [vmem:[#allocation8 + $0x3f0] sm:$0xff]
    %v196 = vld [vmem:[#allocation8 + $0x3f8] sm:$0xff]
    %v197 = vld [vmem:[#allocation8 + $0x400] sm:$0xff]
    %v198 = vld [vmem:[#allocation8 + $0x408] sm:$0xff]
    %v199 = vld [vmem:[#allocation8 + $0x410] sm:$0xff]
    %v200 = vld [vmem:[#allocation8 + $0x418] sm:$0xff]
    %v201 = vld [vmem:[#allocation8 + $0x420] sm:$0xff]
    %v202 = vld [vmem:[#allocation8 + $0x428] sm:$0xff]
    %v203 = vld [vmem:[#allocation8 + $0x430] sm:$0xff]
    %v204 = vld [vmem:[#allocation8 + $0x438] sm:$0xff]
    %v205 = vld [vmem:[#allocation8 + $0x440] sm:$0xff]
    %v206 = vld [vmem:[#allocation8 + $0x448] sm:$0xff]
    %v207 = vld [vmem:[#allocation8 + $0x450] sm:$0xff]
    %v208 = vld [vmem:[#allocation8 + $0x458] sm:$0xff]
    %v209 = vld [vmem:[#allocation8 + $0x460] sm:$0xff]
    %v210 = vld [vmem:[#allocation8 + $0x468] sm:$0xff]
    %v211 = vld [vmem:[#allocation8 + $0x470] sm:$0xff]
    %v212 = vld [vmem:[#allocation8 + $0x478] sm:$0xff]
    %v213 = vld [vmem:[#allocation8 + $0x480] sm:$0xff]
    %v214 = vld [vmem:[#allocation8 + $0x488] sm:$0xff]
    %v215 = vld [vmem:[#allocation8 + $0x490] sm:$0xff]
    %v216 = vld [vmem:[#allocation8 + $0x498] sm:$0xff]
    %v217 = vld [vmem:[#allocation8 + $0x4a0] sm:$0xff]
    %v218 = vld [vmem:[#allocation8 + $0x4a8] sm:$0xff]
    %v219 = vld [vmem:[#allocation8 + $0x4b0] sm:$0xff]
    %v220 = vld [vmem:[#allocation8 + $0x4b8] sm:$0xff]
    %v221 = vld [vmem:[#allocation8 + $0x4c0] sm:$0xff]
    %v222 = vld [vmem:[#allocation8 + $0x4c8] sm:$0xff]
    %v223 = vld [vmem:[#allocation8 + $0x4d0] sm:$0xff]
    %v224 = vld [vmem:[#allocation8 + $0x4d8] sm:$0xff]
    %v225 = vld [vmem:[#allocation8 + $0x4e0] sm:$0xff]
    %v226 = vld [vmem:[#allocation8 + $0x4e8] sm:$0xff]
    %v227 = vld [vmem:[#allocation8 + $0x4f0] sm:$0xff]
    %v228 = vld [vmem:[#allocation8 + $0x4f8] sm:$0xff]
    %v229 = vld [vmem:[#allocation8 + $0x500] sm:$0xff]
    %v230 = vld [vmem:[#allocation8 + $0x508] sm:$0xff]
    %v231 = vld [vmem:[#allocation8 + $0x510] sm:$0xff]
    %v232 = vld [vmem:[#allocation8 + $0x518] sm:$0xff]
    %v233 = vld [vmem:[#allocation8 + $0x520] sm:$0xff]
    %v234 = vld [vmem:[#allocation8 + $0x528] sm:$0xff]
    %v235 = vld [vmem:[#allocation8 + $0x530] sm:$0xff]
    %v236 = vld [vmem:[#allocation8 + $0x538] sm:$0xff]
    %v237 = vld [vmem:[#allocation8 + $0x540] sm:$0xff]
    %v238 = vld [vmem:[#allocation8 + $0x548] sm:$0xff]
    %v239 = vld [vmem:[#allocation8 + $0x550] sm:$0xff]
    %v240 = vld [vmem:[#allocation8 + $0x558] sm:$0xff]
    %v241 = vld [vmem:[#allocation8 + $0x560] sm:$0xff]
    %v242 = vld [vmem:[#allocation8 + $0x568] sm:$0xff]
    %v243 = vld [vmem:[#allocation8 + $0x570] sm:$0xff]
    %v244 = vld [vmem:[#allocation8 + $0x578] sm:$0xff]
    %v245 = vld [vmem:[#allocation8 + $0x580] sm:$0xff]
    %v246 = vld [vmem:[#allocation8 + $0x588] sm:$0xff]
    %v247 = vld [vmem:[#allocation8 + $0x590] sm:$0xff]
    %v248 = vld [vmem:[#allocation8 + $0x598] sm:$0xff]
    %v249 = vld [vmem:[#allocation8 + $0x5a0] sm:$0xff]
    %v250 = vld [vmem:[#allocation8 + $0x5a8] sm:$0xff]
    %v251 = vld [vmem:[#allocation8 + $0x5b0] sm:$0xff]
    %v252 = vld [vmem:[#allocation8 + $0x5b8] sm:$0xff]
    %v253 = vld [vmem:[#allocation8 + $0x5c0] sm:$0xff]
    %v254 = vld [vmem:[#allocation8 + $0x5c8] sm:$0xff]
    %v255 = vld [vmem:[#allocation8 + $0x5d0] sm:$0xff]
    %v256 = vld [vmem:[#allocation8 + $0x5d8] sm:$0xff]
    %v257 = vld [vmem:[#allocation8 + $0x5e0] sm:$0xff]
    %v258 = vld [vmem:[#allocation8 + $0x5e8] sm:$0xff]
    %v259 = vld [vmem:[#allocation8 + $0x5f0] sm:$0xff]
    %v260 = vld [vmem:[#allocation8 + $0x5f8] sm:$0xff]
    %v261 = vld [vmem:[#allocation8 + $0x600] sm:$0xff]
    %v262 = vld [vmem:[#allocation8 + $0x608] sm:$0xff]
    %v263 = vld [vmem:[#allocation8 + $0x610] sm:$0xff]
    %v264 = vld [vmem:[#allocation8 + $0x618] sm:$0xff]
    %v265 = vld [vmem:[#allocation8 + $0x620] sm:$0xff]
    %v266 = vld [vmem:[#allocation8 + $0x628] sm:$0xff]
    %v267 = vld [vmem:[#allocation8 + $0x630] sm:$0xff]
    %v268 = vld [vmem:[#allocation8 + $0x638] sm:$0xff]
    %v269 = vld [vmem:[#allocation8 + $0x640] sm:$0xff]
    %v270 = vld [vmem:[#allocation8 + $0x648] sm:$0xff]
    %v271 = vld [vmem:[#allocation8 + $0x650] sm:$0xff]
    %v272 = vld [vmem:[#allocation8 + $0x658] sm:$0xff]
    %v273 = vld [vmem:[#allocation8 + $0x660] sm:$0xff]
    %v274 = vld [vmem:[#allocation8 + $0x668] sm:$0xff]
    %v275 = vld [vmem:[#allocation8 + $0x670] sm:$0xff]
    %v276 = vld [vmem:[#allocation8 + $0x678] sm:$0xff]
    %v277 = vld [vmem:[#allocation8 + $0x680] sm:$0xff]
    %v278 = vld [vmem:[#allocation8 + $0x688] sm:$0xff]
    %v279 = vld [vmem:[#allocation8 + $0x690] sm:$0xff]
    %v280 = vld [vmem:[#allocation8 + $0x698] sm:$0xff]
    %v281 = vld [vmem:[#allocation8 + $0x6a0] sm:$0xff]
    %v282 = vld [vmem:[#allocation8 + $0x6a8] sm:$0xff]
    %v283 = vld [vmem:[#allocation8 + $0x6b0] sm:$0xff]
    %v284 = vld [vmem:[#allocation8 + $0x6b8] sm:$0xff]
    %v285 = vld [vmem:[#allocation8 + $0x6c0] sm:$0xff]
    %v286 = vld [vmem:[#allocation8 + $0x6c8] sm:$0xff]
    %v287 = vld [vmem:[#allocation8 + $0x6d0] sm:$0xff]
    %v288 = vld [vmem:[#allocation8 + $0x6d8] sm:$0xff]
    %v289 = vld [vmem:[#allocation8 + $0x6e0] sm:$0xff]
    %v290 = vld [vmem:[#allocation8 + $0x6e8] sm:$0xff]
    %v291 = vld [vmem:[#allocation8 + $0x6f0] sm:$0xff]
    %v292 = vld [vmem:[#allocation8 + $0x6f8] sm:$0xff]
    %v293 = vld [vmem:[#allocation8 + $0x700] sm:$0xff]
    %v294 = vld [vmem:[#allocation8 + $0x708] sm:$0xff]
    %v295 = vld [vmem:[#allocation8 + $0x710] sm:$0xff]
    %v296 = vld [vmem:[#allocation8 + $0x718] sm:$0xff]
    %v297 = vld [vmem:[#allocation8 + $0x720] sm:$0xff]
    %v298 = vld [vmem:[#allocation8 + $0x728] sm:$0xff]
    %v299 = vld [vmem:[#allocation8 + $0x730] sm:$0xff]
    %v300 = vld [vmem:[#allocation8 + $0x738] sm:$0xff]
    %v301 = vld [vmem:[#allocation8 + $0x740] sm:$0xff]
    %v302 = vld [vmem:[#allocation8 + $0x748] sm:$0xff]
    %v303 = vld [vmem:[#allocation8 + $0x750] sm:$0xff]
    %v304 = vld [vmem:[#allocation8 + $0x758] sm:$0xff]
    %v305 = vld [vmem:[#allocation8 + $0x760] sm:$0xff]
    %v306 = vld [vmem:[#allocation8 + $0x768] sm:$0xff]
    %v307 = vld [vmem:[#allocation8 + $0x770] sm:$0xff]
    %v308 = vld [vmem:[#allocation8 + $0x778] sm:$0xff]
    %v309 = vld [vmem:[#allocation8 + $0x780] sm:$0xff]
    %v310 = vld [vmem:[#allocation8 + $0x788] sm:$0xff]
    %v311 = vld [vmem:[#allocation8 + $0x790] sm:$0xff]
    %v312 = vld [vmem:[#allocation8 + $0x798] sm:$0xff]
    %v313 = vld [vmem:[#allocation8 + $0x7a0] sm:$0xff]
    %v314 = vld [vmem:[#allocation8 + $0x7a8] sm:$0xff]
    %v315 = vld [vmem:[#allocation8 + $0x7b0] sm:$0xff]
    %v316 = vld [vmem:[#allocation8 + $0x7b8] sm:$0xff]
    %v317 = vld [vmem:[#allocation8 + $0x7c0] sm:$0xff]
    %v318 = vld [vmem:[#allocation8 + $0x7c8] sm:$0xff]
    %v319 = vld [vmem:[#allocation8 + $0x7d0] sm:$0xff]
    %v320 = vld [vmem:[#allocation8 + $0x7d8] sm:$0xff]
    %v321 = vld [vmem:[#allocation8 + $0x7e0] sm:$0xff]
    %v322 = vld [vmem:[#allocation8 + $0x7e8] sm:$0xff]
    %v323 = vld [vmem:[#allocation8 + $0x7f0] sm:$0xff]
    %v324 = vld [vmem:[#allocation8 + $0x7f8] sm:$0xff]
    %v325 = vld [vmem:[%s2] sm:$0xff]
    %v327 = vlaneseq
    %v328 = vshrl.u32 %v327, 7
    %v329 = vsub.s32 0, %v328
    %v330 = vrot.slane %v325, %v329
    %v331 = vlaneseq
    %v332 = vshrl.u32 %v331, 7
    %v333 = vsub.s32 1, %v332
    %v334 = vrot.slane %v325, %v333
    %v335 = vlaneseq
    %v336 = vshrl.u32 %v335, 7
    %v337 = vsub.s32 2, %v336
    %v338 = vrot.slane %v325, %v337
    %v339 = vlaneseq
    %v340 = vshrl.u32 %v339, 7
    %v341 = vsub.s32 3, %v340
    %v342 = vrot.slane %v325, %v341
    %v343 = vlaneseq
    %v344 = vshrl.u32 %v343, 7
    %v345 = vsub.s32 4, %v344
    %v346 = vrot.slane %v325, %v345
    %v347 = vlaneseq
    %v348 = vshrl.u32 %v347, 7
    %v349 = vsub.s32 5, %v348
    %v350 = vrot.slane %v325, %v349
    %v351 = vlaneseq
    %v352 = vshrl.u32 %v351, 7
    %v353 = vsub.s32 6, %v352
    %v354 = vrot.slane %v325, %v353
    %v355 = vlaneseq
    %v356 = vshrl.u32 %v355, 7
    %v357 = vsub.s32 7, %v356
    %v358 = vrot.slane %v325, %v357
    %v383 = vunpack.c.l.b16 %v53
    %v384 = vunpack.c.h.b16 %v53
    %v385 = vunpack.c.l.b16 %v54
    %v386 = vunpack.c.h.b16 %v54
    %v387 = vunpack.c.l.b16 %v55
    %v388 = vunpack.c.h.b16 %v55
    %v389 = vunpack.c.l.b16 %v56
    %v390 = vunpack.c.h.b16 %v56
    %v391 = vunpack.c.l.b16 %v57
    %v392 = vunpack.c.h.b16 %v57
    %v393 = vunpack.c.l.b16 %v58
    %v394 = vunpack.c.h.b16 %v58
    %v395 = vunpack.c.l.b16 %v59
    %v396 = vunpack.c.h.b16 %v59
    %v397 = vunpack.c.l.b16 %v60
    %v398 = vunpack.c.h.b16 %v60
    %v399 = vunpack.c.l.b16 %v61
    %v400 = vunpack.c.h.b16 %v61
    %v401 = vunpack.c.l.b16 %v62
    %v402 = vunpack.c.h.b16 %v62
    %v403 = vunpack.c.l.b16 %v63
    %v404 = vunpack.c.h.b16 %v63
    %v405 = vunpack.c.l.b16 %v64
    %v406 = vunpack.c.h.b16 %v64
    %v407 = vunpack.c.l.b16 %v65
    %v408 = vunpack.c.h.b16 %v65
    %v409 = vunpack.c.l.b16 %v66
    %v410 = vunpack.c.h.b16 %v66
    %v411 = vunpack.c.l.b16 %v67
    %v412 = vunpack.c.h.b16 %v67
    %v413 = vunpack.c.l.b16 %v68
    %v414 = vunpack.c.h.b16 %v68
    %v415 = vpack.c.b16 %v387, %v383
    %v416 = vpack.c.b16 %v388, %v384
    %v417 = vpack.c.b16 %v389, %v385
    %v418 = vpack.c.b16 %v390, %v386
    %v419 = vpack.c.b16 %v395, %v391
    %v420 = vpack.c.b16 %v396, %v392
    %v421 = vpack.c.b16 %v397, %v393
    %v422 = vpack.c.b16 %v398, %v394
    %v423 = vpack.c.b16 %v403, %v399
    %v424 = vpack.c.b16 %v404, %v400
    %v425 = vpack.c.b16 %v405, %v401
    %v426 = vpack.c.b16 %v406, %v402
    %v427 = vpack.c.b16 %v411, %v407
    %v428 = vpack.c.b16 %v412, %v408
    %v429 = vpack.c.b16 %v413, %v409
    %v430 = vpack.c.b16 %v414, %v410
    %v703 = vunpack.c.l.b16 %v69
    %v704 = vunpack.c.h.b16 %v69
    %v705 = vunpack.c.l.b16 %v70
    %v706 = vunpack.c.h.b16 %v70
    %v707 = vunpack.c.l.b16 %v71
    %v708 = vunpack.c.h.b16 %v71
    %v709 = vunpack.c.l.b16 %v72
    %v710 = vunpack.c.h.b16 %v72
    %v711 = vunpack.c.l.b16 %v73
    %v712 = vunpack.c.h.b16 %v73
    %v713 = vunpack.c.l.b16 %v74
    %v714 = vunpack.c.h.b16 %v74
    %v715 = vunpack.c.l.b16 %v75
    %v716 = vunpack.c.h.b16 %v75
    %v717 = vunpack.c.l.b16 %v76
    %v718 = vunpack.c.h.b16 %v76
    %v719 = vunpack.c.l.b16 %v77
    %v720 = vunpack.c.h.b16 %v77
    %v721 = vunpack.c.l.b16 %v78
    %v722 = vunpack.c.h.b16 %v78
    %v723 = vunpack.c.l.b16 %v79
    %v724 = vunpack.c.h.b16 %v79
    %v725 = vunpack.c.l.b16 %v80
    %v726 = vunpack.c.h.b16 %v80
    %v727 = vunpack.c.l.b16 %v81
    %v728 = vunpack.c.h.b16 %v81
    %v729 = vunpack.c.l.b16 %v82
    %v730 = vunpack.c.h.b16 %v82
    %v731 = vunpack.c.l.b16 %v83
    %v732 = vunpack.c.h.b16 %v83
    %v733 = vunpack.c.l.b16 %v84
    %v734 = vunpack.c.h.b16 %v84
    %v735 = vunpack.c.l.b16 %v85
    %v736 = vunpack.c.h.b16 %v85
    %v737 = vunpack.c.l.b16 %v86
    %v738 = vunpack.c.h.b16 %v86
    %v739 = vunpack.c.l.b16 %v87
    %v740 = vunpack.c.h.b16 %v87
    %v741 = vunpack.c.l.b16 %v88
    %v742 = vunpack.c.h.b16 %v88
    %v743 = vunpack.c.l.b16 %v89
    %v744 = vunpack.c.h.b16 %v89
    %v745 = vunpack.c.l.b16 %v90
    %v746 = vunpack.c.h.b16 %v90
    %v747 = vunpack.c.l.b16 %v91
    %v748 = vunpack.c.h.b16 %v91
    %v749 = vunpack.c.l.b16 %v92
    %v750 = vunpack.c.h.b16 %v92
    %v751 = vunpack.c.l.b16 %v93
    %v752 = vunpack.c.h.b16 %v93
    %v753 = vunpack.c.l.b16 %v94
    %v754 = vunpack.c.h.b16 %v94
    %v755 = vunpack.c.l.b16 %v95
    %v756 = vunpack.c.h.b16 %v95
    %v757 = vunpack.c.l.b16 %v96
    %v758 = vunpack.c.h.b16 %v96
    %v759 = vunpack.c.l.b16 %v97
    %v760 = vunpack.c.h.b16 %v97
    %v761 = vunpack.c.l.b16 %v98
    %v762 = vunpack.c.h.b16 %v98
    %v763 = vunpack.c.l.b16 %v99
    %v764 = vunpack.c.h.b16 %v99
    %v765 = vunpack.c.l.b16 %v100
    %v766 = vunpack.c.h.b16 %v100
    %v767 = vunpack.c.l.b16 %v101
    %v768 = vunpack.c.h.b16 %v101
    %v769 = vunpack.c.l.b16 %v102
    %v770 = vunpack.c.h.b16 %v102
    %v771 = vunpack.c.l.b16 %v103
    %v772 = vunpack.c.h.b16 %v103
    %v773 = vunpack.c.l.b16 %v104
    %v774 = vunpack.c.h.b16 %v104
    %v775 = vunpack.c.l.b16 %v105
    %v776 = vunpack.c.h.b16 %v105
    %v777 = vunpack.c.l.b16 %v106
    %v778 = vunpack.c.h.b16 %v106
    %v779 = vunpack.c.l.b16 %v107
    %v780 = vunpack.c.h.b16 %v107
    %v781 = vunpack.c.l.b16 %v108
    %v782 = vunpack.c.h.b16 %v108
    %v783 = vunpack.c.l.b16 %v109
    %v784 = vunpack.c.h.b16 %v109
    %v785 = vunpack.c.l.b16 %v110
    %v786 = vunpack.c.h.b16 %v110
    %v787 = vunpack.c.l.b16 %v111
    %v788 = vunpack.c.h.b16 %v111
    %v789 = vunpack.c.l.b16 %v112
    %v790 = vunpack.c.h.b16 %v112
    %v791 = vunpack.c.l.b16 %v113
    %v792 = vunpack.c.h.b16 %v113
    %v793 = vunpack.c.l.b16 %v114
    %v794 = vunpack.c.h.b16 %v114
    %v795 = vunpack.c.l.b16 %v115
    %v796 = vunpack.c.h.b16 %v115
    %v797 = vunpack.c.l.b16 %v116
    %v798 = vunpack.c.h.b16 %v116
    %v799 = vunpack.c.l.b16 %v117
    %v800 = vunpack.c.h.b16 %v117
    %v801 = vunpack.c.l.b16 %v118
    %v802 = vunpack.c.h.b16 %v118
    %v803 = vunpack.c.l.b16 %v119
    %v804 = vunpack.c.h.b16 %v119
    %v805 = vunpack.c.l.b16 %v120
    %v806 = vunpack.c.h.b16 %v120
    %v807 = vunpack.c.l.b16 %v121
    %v808 = vunpack.c.h.b16 %v121
    %v809 = vunpack.c.l.b16 %v122
    %v810 = vunpack.c.h.b16 %v122
    %v811 = vunpack.c.l.b16 %v123
    %v812 = vunpack.c.h.b16 %v123
    %v813 = vunpack.c.l.b16 %v124
    %v814 = vunpack.c.h.b16 %v124
    %v815 = vunpack.c.l.b16 %v125
    %v816 = vunpack.c.h.b16 %v125
    %v817 = vunpack.c.l.b16 %v126
    %v818 = vunpack.c.h.b16 %v126
    %v819 = vunpack.c.l.b16 %v127
    %v820 = vunpack.c.h.b16 %v127
    %v821 = vunpack.c.l.b16 %v128
    %v822 = vunpack.c.h.b16 %v128
    %v823 = vunpack.c.l.b16 %v129
    %v824 = vunpack.c.h.b16 %v129
    %v825 = vunpack.c.l.b16 %v130
    %v826 = vunpack.c.h.b16 %v130
    %v827 = vunpack.c.l.b16 %v131
    %v828 = vunpack.c.h.b16 %v131
    %v829 = vunpack.c.l.b16 %v132
    %v830 = vunpack.c.h.b16 %v132
    %v831 = vunpack.c.l.b16 %v133
    %v832 = vunpack.c.h.b16 %v133
    %v833 = vunpack.c.l.b16 %v134
    %v834 = vunpack.c.h.b16 %v134
    %v835 = vunpack.c.l.b16 %v135
    %v836 = vunpack.c.h.b16 %v135
    %v837 = vunpack.c.l.b16 %v136
    %v838 = vunpack.c.h.b16 %v136
    %v839 = vunpack.c.l.b16 %v137
    %v840 = vunpack.c.h.b16 %v137
    %v841 = vunpack.c.l.b16 %v138
    %v842 = vunpack.c.h.b16 %v138
    %v843 = vunpack.c.l.b16 %v139
    %v844 = vunpack.c.h.b16 %v139
    %v845 = vunpack.c.l.b16 %v140
    %v846 = vunpack.c.h.b16 %v140
    %v847 = vunpack.c.l.b16 %v141
    %v848 = vunpack.c.h.b16 %v141
    %v849 = vunpack.c.l.b16 %v142
    %v850 = vunpack.c.h.b16 %v142
    %v851 = vunpack.c.l.b16 %v143
    %v852 = vunpack.c.h.b16 %v143
    %v853 = vunpack.c.l.b16 %v144
    %v854 = vunpack.c.h.b16 %v144
    %v855 = vunpack.c.l.b16 %v145
    %v856 = vunpack.c.h.b16 %v145
    %v857 = vunpack.c.l.b16 %v146
    %v858 = vunpack.c.h.b16 %v146
    %v859 = vunpack.c.l.b16 %v147
    %v860 = vunpack.c.h.b16 %v147
    %v861 = vunpack.c.l.b16 %v148
    %v862 = vunpack.c.h.b16 %v148
    %v863 = vunpack.c.l.b16 %v149
    %v864 = vunpack.c.h.b16 %v149
    %v865 = vunpack.c.l.b16 %v150
    %v866 = vunpack.c.h.b16 %v150
    %v867 = vunpack.c.l.b16 %v151
    %v868 = vunpack.c.h.b16 %v151
    %v869 = vunpack.c.l.b16 %v152
    %v870 = vunpack.c.h.b16 %v152
    %v871 = vunpack.c.l.b16 %v153
    %v872 = vunpack.c.h.b16 %v153
    %v873 = vunpack.c.l.b16 %v154
    %v874 = vunpack.c.h.b16 %v154
    %v875 = vunpack.c.l.b16 %v155
    %v876 = vunpack.c.h.b16 %v155
    %v877 = vunpack.c.l.b16 %v156
    %v878 = vunpack.c.h.b16 %v156
    %v879 = vunpack.c.l.b16 %v157
    %v880 = vunpack.c.h.b16 %v157
    %v881 = vunpack.c.l.b16 %v158
    %v882 = vunpack.c.h.b16 %v158
    %v883 = vunpack.c.l.b16 %v159
    %v884 = vunpack.c.h.b16 %v159
    %v885 = vunpack.c.l.b16 %v160
    %v886 = vunpack.c.h.b16 %v160
    %v887 = vunpack.c.l.b16 %v161
    %v888 = vunpack.c.h.b16 %v161
    %v889 = vunpack.c.l.b16 %v162
    %v890 = vunpack.c.h.b16 %v162
    %v891 = vunpack.c.l.b16 %v163
    %v892 = vunpack.c.h.b16 %v163
    %v893 = vunpack.c.l.b16 %v164
    %v894 = vunpack.c.h.b16 %v164
    %v895 = vunpack.c.l.b16 %v165
    %v896 = vunpack.c.h.b16 %v165
    %v897 = vunpack.c.l.b16 %v166
    %v898 = vunpack.c.h.b16 %v166
    %v899 = vunpack.c.l.b16 %v167
    %v900 = vunpack.c.h.b16 %v167
    %v901 = vunpack.c.l.b16 %v168
    %v902 = vunpack.c.h.b16 %v168
    %v903 = vunpack.c.l.b16 %v169
    %v904 = vunpack.c.h.b16 %v169
    %v905 = vunpack.c.l.b16 %v170
    %v906 = vunpack.c.h.b16 %v170
    %v907 = vunpack.c.l.b16 %v171
    %v908 = vunpack.c.h.b16 %v171
    %v909 = vunpack.c.l.b16 %v172
    %v910 = vunpack.c.h.b16 %v172
    %v911 = vunpack.c.l.b16 %v173
    %v912 = vunpack.c.h.b16 %v173
    %v913 = vunpack.c.l.b16 %v174
    %v914 = vunpack.c.h.b16 %v174
    %v915 = vunpack.c.l.b16 %v175
    %v916 = vunpack.c.h.b16 %v175
    %v917 = vunpack.c.l.b16 %v176
    %v918 = vunpack.c.h.b16 %v176
    %v919 = vunpack.c.l.b16 %v177
    %v920 = vunpack.c.h.b16 %v177
    %v921 = vunpack.c.l.b16 %v178
    %v922 = vunpack.c.h.b16 %v178
    %v923 = vunpack.c.l.b16 %v179
    %v924 = vunpack.c.h.b16 %v179
    %v925 = vunpack.c.l.b16 %v180
    %v926 = vunpack.c.h.b16 %v180
    %v927 = vunpack.c.l.b16 %v181
    %v928 = vunpack.c.h.b16 %v181
    %v929 = vunpack.c.l.b16 %v182
    %v930 = vunpack.c.h.b16 %v182
    %v931 = vunpack.c.l.b16 %v183
    %v932 = vunpack.c.h.b16 %v183
    %v933 = vunpack.c.l.b16 %v184
    %v934 = vunpack.c.h.b16 %v184
    %v935 = vunpack.c.l.b16 %v185
    %v936 = vunpack.c.h.b16 %v185
    %v937 = vunpack.c.l.b16 %v186
    %v938 = vunpack.c.h.b16 %v186
    %v939 = vunpack.c.l.b16 %v187
    %v940 = vunpack.c.h.b16 %v187
    %v941 = vunpack.c.l.b16 %v188
    %v942 = vunpack.c.h.b16 %v188
    %v943 = vunpack.c.l.b16 %v189
    %v944 = vunpack.c.h.b16 %v189
    %v945 = vunpack.c.l.b16 %v190
    %v946 = vunpack.c.h.b16 %v190
    %v947 = vunpack.c.l.b16 %v191
    %v948 = vunpack.c.h.b16 %v191
    %v949 = vunpack.c.l.b16 %v192
    %v950 = vunpack.c.h.b16 %v192
    %v951 = vunpack.c.l.b16 %v193
    %v952 = vunpack.c.h.b16 %v193
    %v953 = vunpack.c.l.b16 %v194
    %v954 = vunpack.c.h.b16 %v194
    %v955 = vunpack.c.l.b16 %v195
    %v956 = vunpack.c.h.b16 %v195
    %v957 = vunpack.c.l.b16 %v196
    %v958 = vunpack.c.h.b16 %v196
    %v959 = vunpack.c.l.b16 %v197
    %v960 = vunpack.c.h.b16 %v197
    %v961 = vunpack.c.l.b16 %v198
    %v962 = vunpack.c.h.b16 %v198
    %v963 = vunpack.c.l.b16 %v199
    %v964 = vunpack.c.h.b16 %v199
    %v965 = vunpack.c.l.b16 %v200
    %v966 = vunpack.c.h.b16 %v200
    %v967 = vunpack.c.l.b16 %v201
    %v968 = vunpack.c.h.b16 %v201
    %v969 = vunpack.c.l.b16 %v202
    %v970 = vunpack.c.h.b16 %v202
    %v971 = vunpack.c.l.b16 %v203
    %v972 = vunpack.c.h.b16 %v203
    %v973 = vunpack.c.l.b16 %v204
    %v974 = vunpack.c.h.b16 %v204
    %v975 = vunpack.c.l.b16 %v205
    %v976 = vunpack.c.h.b16 %v205
    %v977 = vunpack.c.l.b16 %v206
    %v978 = vunpack.c.h.b16 %v206
    %v979 = vunpack.c.l.b16 %v207
    %v980 = vunpack.c.h.b16 %v207
    %v981 = vunpack.c.l.b16 %v208
    %v982 = vunpack.c.h.b16 %v208
    %v983 = vunpack.c.l.b16 %v209
    %v984 = vunpack.c.h.b16 %v209
    %v985 = vunpack.c.l.b16 %v210
    %v986 = vunpack.c.h.b16 %v210
    %v987 = vunpack.c.l.b16 %v211
    %v988 = vunpack.c.h.b16 %v211
    %v989 = vunpack.c.l.b16 %v212
    %v990 = vunpack.c.h.b16 %v212
    %v991 = vunpack.c.l.b16 %v213
    %v992 = vunpack.c.h.b16 %v213
    %v993 = vunpack.c.l.b16 %v214
    %v994 = vunpack.c.h.b16 %v214
    %v995 = vunpack.c.l.b16 %v215
    %v996 = vunpack.c.h.b16 %v215
    %v997 = vunpack.c.l.b16 %v216
    %v998 = vunpack.c.h.b16 %v216
    %v999 = vunpack.c.l.b16 %v217
    %v1000 = vunpack.c.h.b16 %v217
    %v1001 = vunpack.c.l.b16 %v218
    %v1002 = vunpack.c.h.b16 %v218
    %v1003 = vunpack.c.l.b16 %v219
    %v1004 = vunpack.c.h.b16 %v219
    %v1005 = vunpack.c.l.b16 %v220
    %v1006 = vunpack.c.h.b16 %v220
    %v1007 = vunpack.c.l.b16 %v221
    %v1008 = vunpack.c.h.b16 %v221
    %v1009 = vunpack.c.l.b16 %v222
    %v1010 = vunpack.c.h.b16 %v222
    %v1011 = vunpack.c.l.b16 %v223
    %v1012 = vunpack.c.h.b16 %v223
    %v1013 = vunpack.c.l.b16 %v224
    %v1014 = vunpack.c.h.b16 %v224
    %v1015 = vunpack.c.l.b16 %v225
    %v1016 = vunpack.c.h.b16 %v225
    %v1017 = vunpack.c.l.b16 %v226
    %v1018 = vunpack.c.h.b16 %v226
    %v1019 = vunpack.c.l.b16 %v227
    %v1020 = vunpack.c.h.b16 %v227
    %v1021 = vunpack.c.l.b16 %v228
    %v1022 = vunpack.c.h.b16 %v228
    %v1023 = vunpack.c.l.b16 %v229
    %v1024 = vunpack.c.h.b16 %v229
    %v1025 = vunpack.c.l.b16 %v230
    %v1026 = vunpack.c.h.b16 %v230
    %v1027 = vunpack.c.l.b16 %v231
    %v1028 = vunpack.c.h.b16 %v231
    %v1029 = vunpack.c.l.b16 %v232
    %v1030 = vunpack.c.h.b16 %v232
    %v1031 = vunpack.c.l.b16 %v233
    %v1032 = vunpack.c.h.b16 %v233
    %v1033 = vunpack.c.l.b16 %v234
    %v1034 = vunpack.c.h.b16 %v234
    %v1035 = vunpack.c.l.b16 %v235
    %v1036 = vunpack.c.h.b16 %v235
    %v1037 = vunpack.c.l.b16 %v236
    %v1038 = vunpack.c.h.b16 %v236
    %v1039 = vunpack.c.l.b16 %v237
    %v1040 = vunpack.c.h.b16 %v237
    %v1041 = vunpack.c.l.b16 %v238
    %v1042 = vunpack.c.h.b16 %v238
    %v1043 = vunpack.c.l.b16 %v239
    %v1044 = vunpack.c.h.b16 %v239
    %v1045 = vunpack.c.l.b16 %v240
    %v1046 = vunpack.c.h.b16 %v240
    %v1047 = vunpack.c.l.b16 %v241
    %v1048 = vunpack.c.h.b16 %v241
    %v1049 = vunpack.c.l.b16 %v242
    %v1050 = vunpack.c.h.b16 %v242
    %v1051 = vunpack.c.l.b16 %v243
    %v1052 = vunpack.c.h.b16 %v243
    %v1053 = vunpack.c.l.b16 %v244
    %v1054 = vunpack.c.h.b16 %v244
    %v1055 = vunpack.c.l.b16 %v245
    %v1056 = vunpack.c.h.b16 %v245
    %v1057 = vunpack.c.l.b16 %v246
    %v1058 = vunpack.c.h.b16 %v246
    %v1059 = vunpack.c.l.b16 %v247
    %v1060 = vunpack.c.h.b16 %v247
    %v1061 = vunpack.c.l.b16 %v248
    %v1062 = vunpack.c.h.b16 %v248
    %v1063 = vunpack.c.l.b16 %v249
    %v1064 = vunpack.c.h.b16 %v249
    %v1065 = vunpack.c.l.b16 %v250
    %v1066 = vunpack.c.h.b16 %v250
    %v1067 = vunpack.c.l.b16 %v251
    %v1068 = vunpack.c.h.b16 %v251
    %v1069 = vunpack.c.l.b16 %v252
    %v1070 = vunpack.c.h.b16 %v252
    %v1071 = vunpack.c.l.b16 %v253
    %v1072 = vunpack.c.h.b16 %v253
    %v1073 = vunpack.c.l.b16 %v254
    %v1074 = vunpack.c.h.b16 %v254
    %v1075 = vunpack.c.l.b16 %v255
    %v1076 = vunpack.c.h.b16 %v255
    %v1077 = vunpack.c.l.b16 %v256
    %v1078 = vunpack.c.h.b16 %v256
    %v1079 = vunpack.c.l.b16 %v257
    %v1080 = vunpack.c.h.b16 %v257
    %v1081 = vunpack.c.l.b16 %v258
    %v1082 = vunpack.c.h.b16 %v258
    %v1083 = vunpack.c.l.b16 %v259
    %v1084 = vunpack.c.h.b16 %v259
    %v1085 = vunpack.c.l.b16 %v260
    %v1086 = vunpack.c.h.b16 %v260
    %v1087 = vunpack.c.l.b16 %v261
    %v1088 = vunpack.c.h.b16 %v261
    %v1089 = vunpack.c.l.b16 %v262
    %v1090 = vunpack.c.h.b16 %v262
    %v1091 = vunpack.c.l.b16 %v263
    %v1092 = vunpack.c.h.b16 %v263
    %v1093 = vunpack.c.l.b16 %v264
    %v1094 = vunpack.c.h.b16 %v264
    %v1095 = vunpack.c.l.b16 %v265
    %v1096 = vunpack.c.h.b16 %v265
    %v1097 = vunpack.c.l.b16 %v266
    %v1098 = vunpack.c.h.b16 %v266
    %v1099 = vunpack.c.l.b16 %v267
    %v1100 = vunpack.c.h.b16 %v267
    %v1101 = vunpack.c.l.b16 %v268
    %v1102 = vunpack.c.h.b16 %v268
    %v1103 = vunpack.c.l.b16 %v269
    %v1104 = vunpack.c.h.b16 %v269
    %v1105 = vunpack.c.l.b16 %v270
    %v1106 = vunpack.c.h.b16 %v270
    %v1107 = vunpack.c.l.b16 %v271
    %v1108 = vunpack.c.h.b16 %v271
    %v1109 = vunpack.c.l.b16 %v272
    %v1110 = vunpack.c.h.b16 %v272
    %v1111 = vunpack.c.l.b16 %v273
    %v1112 = vunpack.c.h.b16 %v273
    %v1113 = vunpack.c.l.b16 %v274
    %v1114 = vunpack.c.h.b16 %v274
    %v1115 = vunpack.c.l.b16 %v275
    %v1116 = vunpack.c.h.b16 %v275
    %v1117 = vunpack.c.l.b16 %v276
    %v1118 = vunpack.c.h.b16 %v276
    %v1119 = vunpack.c.l.b16 %v277
    %v1120 = vunpack.c.h.b16 %v277
    %v1121 = vunpack.c.l.b16 %v278
    %v1122 = vunpack.c.h.b16 %v278
    %v1123 = vunpack.c.l.b16 %v279
    %v1124 = vunpack.c.h.b16 %v279
    %v1125 = vunpack.c.l.b16 %v280
    %v1126 = vunpack.c.h.b16 %v280
    %v1127 = vunpack.c.l.b16 %v281
    %v1128 = vunpack.c.h.b16 %v281
    %v1129 = vunpack.c.l.b16 %v282
    %v1130 = vunpack.c.h.b16 %v282
    %v1131 = vunpack.c.l.b16 %v283
    %v1132 = vunpack.c.h.b16 %v283
    %v1133 = vunpack.c.l.b16 %v284
    %v1134 = vunpack.c.h.b16 %v284
    %v1135 = vunpack.c.l.b16 %v285
    %v1136 = vunpack.c.h.b16 %v285
    %v1137 = vunpack.c.l.b16 %v286
    %v1138 = vunpack.c.h.b16 %v286
    %v1139 = vunpack.c.l.b16 %v287
    %v1140 = vunpack.c.h.b16 %v287
    %v1141 = vunpack.c.l.b16 %v288
    %v1142 = vunpack.c.h.b16 %v288
    %v1143 = vunpack.c.l.b16 %v289
    %v1144 = vunpack.c.h.b16 %v289
    %v1145 = vunpack.c.l.b16 %v290
    %v1146 = vunpack.c.h.b16 %v290
    %v1147 = vunpack.c.l.b16 %v291
    %v1148 = vunpack.c.h.b16 %v291
    %v1149 = vunpack.c.l.b16 %v292
    %v1150 = vunpack.c.h.b16 %v292
    %v1151 = vunpack.c.l.b16 %v293
    %v1152 = vunpack.c.h.b16 %v293
    %v1153 = vunpack.c.l.b16 %v294
    %v1154 = vunpack.c.h.b16 %v294
    %v1155 = vunpack.c.l.b16 %v295
    %v1156 = vunpack.c.h.b16 %v295
    %v1157 = vunpack.c.l.b16 %v296
    %v1158 = vunpack.c.h.b16 %v296
    %v1159 = vunpack.c.l.b16 %v297
    %v1160 = vunpack.c.h.b16 %v297
    %v1161 = vunpack.c.l.b16 %v298
    %v1162 = vunpack.c.h.b16 %v298
    %v1163 = vunpack.c.l.b16 %v299
    %v1164 = vunpack.c.h.b16 %v299
    %v1165 = vunpack.c.l.b16 %v300
    %v1166 = vunpack.c.h.b16 %v300
    %v1167 = vunpack.c.l.b16 %v301
    %v1168 = vunpack.c.h.b16 %v301
    %v1169 = vunpack.c.l.b16 %v302
    %v1170 = vunpack.c.h.b16 %v302
    %v1171 = vunpack.c.l.b16 %v303
    %v1172 = vunpack.c.h.b16 %v303
    %v1173 = vunpack.c.l.b16 %v304
    %v1174 = vunpack.c.h.b16 %v304
    %v1175 = vunpack.c.l.b16 %v305
    %v1176 = vunpack.c.h.b16 %v305
    %v1177 = vunpack.c.l.b16 %v306
    %v1178 = vunpack.c.h.b16 %v306
    %v1179 = vunpack.c.l.b16 %v307
    %v1180 = vunpack.c.h.b16 %v307
    %v1181 = vunpack.c.l.b16 %v308
    %v1182 = vunpack.c.h.b16 %v308
    %v1183 = vunpack.c.l.b16 %v309
    %v1184 = vunpack.c.h.b16 %v309
    %v1185 = vunpack.c.l.b16 %v310
    %v1186 = vunpack.c.h.b16 %v310
    %v1187 = vunpack.c.l.b16 %v311
    %v1188 = vunpack.c.h.b16 %v311
    %v1189 = vunpack.c.l.b16 %v312
    %v1190 = vunpack.c.h.b16 %v312
    %v1191 = vunpack.c.l.b16 %v313
    %v1192 = vunpack.c.h.b16 %v313
    %v1193 = vunpack.c.l.b16 %v314
    %v1194 = vunpack.c.h.b16 %v314
    %v1195 = vunpack.c.l.b16 %v315
    %v1196 = vunpack.c.h.b16 %v315
    %v1197 = vunpack.c.l.b16 %v316
    %v1198 = vunpack.c.h.b16 %v316
    %v1199 = vunpack.c.l.b16 %v317
    %v1200 = vunpack.c.h.b16 %v317
    %v1201 = vunpack.c.l.b16 %v318
    %v1202 = vunpack.c.h.b16 %v318
    %v1203 = vunpack.c.l.b16 %v319
    %v1204 = vunpack.c.h.b16 %v319
    %v1205 = vunpack.c.l.b16 %v320
    %v1206 = vunpack.c.h.b16 %v320
    %v1207 = vunpack.c.l.b16 %v321
    %v1208 = vunpack.c.h.b16 %v321
    %v1209 = vunpack.c.l.b16 %v322
    %v1210 = vunpack.c.h.b16 %v322
    %v1211 = vunpack.c.l.b16 %v323
    %v1212 = vunpack.c.h.b16 %v323
    %v1213 = vunpack.c.l.b16 %v324
    %v1214 = vunpack.c.h.b16 %v324
    %v1215 = vpack.c.b16 %v711, %v703
    %v1216 = vpack.c.b16 %v712, %v704
    %v1217 = vpack.c.b16 %v713, %v705
    %v1218 = vpack.c.b16 %v714, %v706
    %v1219 = vpack.c.b16 %v715, %v707
    %v1220 = vpack.c.b16 %v716, %v708
    %v1221 = vpack.c.b16 %v717, %v709
    %v1222 = vpack.c.b16 %v718, %v710
    %v1223 = vpack.c.b16 %v727, %v719
    %v1224 = vpack.c.b16 %v728, %v720
    %v1225 = vpack.c.b16 %v729, %v721
    %v1226 = vpack.c.b16 %v730, %v722
    %v1227 = vpack.c.b16 %v731, %v723
    %v1228 = vpack.c.b16 %v732, %v724
    %v1229 = vpack.c.b16 %v733, %v725
    %v1230 = vpack.c.b16 %v734, %v726
    %v1231 = vpack.c.b16 %v743, %v735
    %v1232 = vpack.c.b16 %v744, %v736
    %v1233 = vpack.c.b16 %v745, %v737
    %v1234 = vpack.c.b16 %v746, %v738
    %v1235 = vpack.c.b16 %v747, %v739
    %v1236 = vpack.c.b16 %v748, %v740
    %v1237 = vpack.c.b16 %v749, %v741
    %v1238 = vpack.c.b16 %v750, %v742
    %v1239 = vpack.c.b16 %v759, %v751
    %v1240 = vpack.c.b16 %v760, %v752
    %v1241 = vpack.c.b16 %v761, %v753
    %v1242 = vpack.c.b16 %v762, %v754
    %v1243 = vpack.c.b16 %v763, %v755
    %v1244 = vpack.c.b16 %v764, %v756
    %v1245 = vpack.c.b16 %v765, %v757
    %v1246 = vpack.c.b16 %v766, %v758
    %v1247 = vpack.c.b16 %v775, %v767
    %v1248 = vpack.c.b16 %v776, %v768
    %v1249 = vpack.c.b16 %v777, %v769
    %v1250 = vpack.c.b16 %v778, %v770
    %v1251 = vpack.c.b16 %v779, %v771
    %v1252 = vpack.c.b16 %v780, %v772
    %v1253 = vpack.c.b16 %v781, %v773
    %v1254 = vpack.c.b16 %v782, %v774
    %v1255 = vpack.c.b16 %v791, %v783
    %v1256 = vpack.c.b16 %v792, %v784
    %v1257 = vpack.c.b16 %v793, %v785
    %v1258 = vpack.c.b16 %v794, %v786
    %v1259 = vpack.c.b16 %v795, %v787
    %v1260 = vpack.c.b16 %v796, %v788
    %v1261 = vpack.c.b16 %v797, %v789
    %v1262 = vpack.c.b16 %v798, %v790
    %v1263 = vpack.c.b16 %v807, %v799
    %v1264 = vpack.c.b16 %v808, %v800
    %v1265 = vpack.c.b16 %v809, %v801
    %v1266 = vpack.c.b16 %v810, %v802
    %v1267 = vpack.c.b16 %v811, %v803
    %v1268 = vpack.c.b16 %v812, %v804
    %v1269 = vpack.c.b16 %v813, %v805
    %v1270 = vpack.c.b16 %v814, %v806
    %v1271 = vpack.c.b16 %v823, %v815
    %v1272 = vpack.c.b16 %v824, %v816
    %v1273 = vpack.c.b16 %v825, %v817
    %v1274 = vpack.c.b16 %v826, %v818
    %v1275 = vpack.c.b16 %v827, %v819
    %v1276 = vpack.c.b16 %v828, %v820
    %v1277 = vpack.c.b16 %v829, %v821
    %v1278 = vpack.c.b16 %v830, %v822
    %v1279 = vpack.c.b16 %v839, %v831
    %v1280 = vpack.c.b16 %v840, %v832
    %v1281 = vpack.c.b16 %v841, %v833
    %v1282 = vpack.c.b16 %v842, %v834
    %v1283 = vpack.c.b16 %v843, %v835
    %v1284 = vpack.c.b16 %v844, %v836
    %v1285 = vpack.c.b16 %v845, %v837
    %v1286 = vpack.c.b16 %v846, %v838
    %v1287 = vpack.c.b16 %v855, %v847
    %v1288 = vpack.c.b16 %v856, %v848
    %v1289 = vpack.c.b16 %v857, %v849
    %v1290 = vpack.c.b16 %v858, %v850
    %v1291 = vpack.c.b16 %v859, %v851
    %v1292 = vpack.c.b16 %v860, %v852
    %v1293 = vpack.c.b16 %v861, %v853
    %v1294 = vpack.c.b16 %v862, %v854
    %v1295 = vpack.c.b16 %v871, %v863
    %v1296 = vpack.c.b16 %v872, %v864
    %v1297 = vpack.c.b16 %v873, %v865
    %v1298 = vpack.c.b16 %v874, %v866
    %v1299 = vpack.c.b16 %v875, %v867
    %v1300 = vpack.c.b16 %v876, %v868
    %v1301 = vpack.c.b16 %v877, %v869
    %v1302 = vpack.c.b16 %v878, %v870
    %v1303 = vpack.c.b16 %v887, %v879
    %v1304 = vpack.c.b16 %v888, %v880
    %v1305 = vpack.c.b16 %v889, %v881
    %v1306 = vpack.c.b16 %v890, %v882
    %v1307 = vpack.c.b16 %v891, %v883
    %v1308 = vpack.c.b16 %v892, %v884
    %v1309 = vpack.c.b16 %v893, %v885
    %v1310 = vpack.c.b16 %v894, %v886
    %v1311 = vpack.c.b16 %v903, %v895
    %v1312 = vpack.c.b16 %v904, %v896
    %v1313 = vpack.c.b16 %v905, %v897
    %v1314 = vpack.c.b16 %v906, %v898
    %v1315 = vpack.c.b16 %v907, %v899
    %v1316 = vpack.c.b16 %v908, %v900
    %v1317 = vpack.c.b16 %v909, %v901
    %v1318 = vpack.c.b16 %v910, %v902
    %v1319 = vpack.c.b16 %v919, %v911
    %v1320 = vpack.c.b16 %v920, %v912
    %v1321 = vpack.c.b16 %v921, %v913
    %v1322 = vpack.c.b16 %v922, %v914
    %v1323 = vpack.c.b16 %v923, %v915
    %v1324 = vpack.c.b16 %v924, %v916
    %v1325 = vpack.c.b16 %v925, %v917
    %v1326 = vpack.c.b16 %v926, %v918
    %v1327 = vpack.c.b16 %v935, %v927
    %v1328 = vpack.c.b16 %v936, %v928
    %v1329 = vpack.c.b16 %v937, %v929
    %v1330 = vpack.c.b16 %v938, %v930
    %v1331 = vpack.c.b16 %v939, %v931
    %v1332 = vpack.c.b16 %v940, %v932
    %v1333 = vpack.c.b16 %v941, %v933
    %v1334 = vpack.c.b16 %v942, %v934
    %v1335 = vpack.c.b16 %v951, %v943
    %v1336 = vpack.c.b16 %v952, %v944
    %v1337 = vpack.c.b16 %v953, %v945
    %v1338 = vpack.c.b16 %v954, %v946
    %v1339 = vpack.c.b16 %v955, %v947
    %v1340 = vpack.c.b16 %v956, %v948
    %v1341 = vpack.c.b16 %v957, %v949
    %v1342 = vpack.c.b16 %v958, %v950
    %v1343 = vpack.c.b16 %v967, %v959
    %v1344 = vpack.c.b16 %v968, %v960
    %v1345 = vpack.c.b16 %v969, %v961
    %v1346 = vpack.c.b16 %v970, %v962
    %v1347 = vpack.c.b16 %v971, %v963
    %v1348 = vpack.c.b16 %v972, %v964
    %v1349 = vpack.c.b16 %v973, %v965
    %v1350 = vpack.c.b16 %v974, %v966
    %v1351 = vpack.c.b16 %v983, %v975
    %v1352 = vpack.c.b16 %v984, %v976
    %v1353 = vpack.c.b16 %v985, %v977
    %v1354 = vpack.c.b16 %v986, %v978
    %v1355 = vpack.c.b16 %v987, %v979
    %v1356 = vpack.c.b16 %v988, %v980
    %v1357 = vpack.c.b16 %v989, %v981
    %v1358 = vpack.c.b16 %v990, %v982
    %v1359 = vpack.c.b16 %v999, %v991
    %v1360 = vpack.c.b16 %v1000, %v992
    %v1361 = vpack.c.b16 %v1001, %v993
    %v1362 = vpack.c.b16 %v1002, %v994
    %v1363 = vpack.c.b16 %v1003, %v995
    %v1364 = vpack.c.b16 %v1004, %v996
    %v1365 = vpack.c.b16 %v1005, %v997
    %v1366 = vpack.c.b16 %v1006, %v998
    %v1367 = vpack.c.b16 %v1015, %v1007
    %v1368 = vpack.c.b16 %v1016, %v1008
    %v1369 = vpack.c.b16 %v1017, %v1009
    %v1370 = vpack.c.b16 %v1018, %v1010
    %v1371 = vpack.c.b16 %v1019, %v1011
    %v1372 = vpack.c.b16 %v1020, %v1012
    %v1373 = vpack.c.b16 %v1021, %v1013
    %v1374 = vpack.c.b16 %v1022, %v1014
    %v1375 = vpack.c.b16 %v1031, %v1023
    %v1376 = vpack.c.b16 %v1032, %v1024
    %v1377 = vpack.c.b16 %v1033, %v1025
    %v1378 = vpack.c.b16 %v1034, %v1026
    %v1379 = vpack.c.b16 %v1035, %v1027
    %v1380 = vpack.c.b16 %v1036, %v1028
    %v1381 = vpack.c.b16 %v1037, %v1029
    %v1382 = vpack.c.b16 %v1038, %v1030
    %v1383 = vpack.c.b16 %v1047, %v1039
    %v1384 = vpack.c.b16 %v1048, %v1040
    %v1385 = vpack.c.b16 %v1049, %v1041
    %v1386 = vpack.c.b16 %v1050, %v1042
    %v1387 = vpack.c.b16 %v1051, %v1043
    %v1388 = vpack.c.b16 %v1052, %v1044
    %v1389 = vpack.c.b16 %v1053, %v1045
    %v1390 = vpack.c.b16 %v1054, %v1046
    %v1391 = vpack.c.b16 %v1063, %v1055
    %v1392 = vpack.c.b16 %v1064, %v1056
    %v1393 = vpack.c.b16 %v1065, %v1057
    %v1394 = vpack.c.b16 %v1066, %v1058
    %v1395 = vpack.c.b16 %v1067, %v1059
    %v1396 = vpack.c.b16 %v1068, %v1060
    %v1397 = vpack.c.b16 %v1069, %v1061
    %v1398 = vpack.c.b16 %v1070, %v1062
    %v1399 = vpack.c.b16 %v1079, %v1071
    %v1400 = vpack.c.b16 %v1080, %v1072
    %v1401 = vpack.c.b16 %v1081, %v1073
    %v1402 = vpack.c.b16 %v1082, %v1074
    %v1403 = vpack.c.b16 %v1083, %v1075
    %v1404 = vpack.c.b16 %v1084, %v1076
    %v1405 = vpack.c.b16 %v1085, %v1077
    %v1406 = vpack.c.b16 %v1086, %v1078
    %v1407 = vpack.c.b16 %v1095, %v1087
    %v1408 = vpack.c.b16 %v1096, %v1088
    %v1409 = vpack.c.b16 %v1097, %v1089
    %v1410 = vpack.c.b16 %v1098, %v1090
    %v1411 = vpack.c.b16 %v1099, %v1091
    %v1412 = vpack.c.b16 %v1100, %v1092
    %v1413 = vpack.c.b16 %v1101, %v1093
    %v1414 = vpack.c.b16 %v1102, %v1094
    %v1415 = vpack.c.b16 %v1111, %v1103
    %v1416 = vpack.c.b16 %v1112, %v1104
    %v1417 = vpack.c.b16 %v1113, %v1105
    %v1418 = vpack.c.b16 %v1114, %v1106
    %v1419 = vpack.c.b16 %v1115, %v1107
    %v1420 = vpack.c.b16 %v1116, %v1108
    %v1421 = vpack.c.b16 %v1117, %v1109
    %v1422 = vpack.c.b16 %v1118, %v1110
    %v1423 = vpack.c.b16 %v1127, %v1119
    %v1424 = vpack.c.b16 %v1128, %v1120
    %v1425 = vpack.c.b16 %v1129, %v1121
    %v1426 = vpack.c.b16 %v1130, %v1122
    %v1427 = vpack.c.b16 %v1131, %v1123
    %v1428 = vpack.c.b16 %v1132, %v1124
    %v1429 = vpack.c.b16 %v1133, %v1125
    %v1430 = vpack.c.b16 %v1134, %v1126
    %v1431 = vpack.c.b16 %v1143, %v1135
    %v1432 = vpack.c.b16 %v1144, %v1136
    %v1433 = vpack.c.b16 %v1145, %v1137
    %v1434 = vpack.c.b16 %v1146, %v1138
    %v1435 = vpack.c.b16 %v1147, %v1139
    %v1436 = vpack.c.b16 %v1148, %v1140
    %v1437 = vpack.c.b16 %v1149, %v1141
    %v1438 = vpack.c.b16 %v1150, %v1142
    %v1439 = vpack.c.b16 %v1159, %v1151
    %v1440 = vpack.c.b16 %v1160, %v1152
    %v1441 = vpack.c.b16 %v1161, %v1153
    %v1442 = vpack.c.b16 %v1162, %v1154
    %v1443 = vpack.c.b16 %v1163, %v1155
    %v1444 = vpack.c.b16 %v1164, %v1156
    %v1445 = vpack.c.b16 %v1165, %v1157
    %v1446 = vpack.c.b16 %v1166, %v1158
    %v1447 = vpack.c.b16 %v1175, %v1167
    %v1448 = vpack.c.b16 %v1176, %v1168
    %v1449 = vpack.c.b16 %v1177, %v1169
    %v1450 = vpack.c.b16 %v1178, %v1170
    %v1451 = vpack.c.b16 %v1179, %v1171
    %v1452 = vpack.c.b16 %v1180, %v1172
    %v1453 = vpack.c.b16 %v1181, %v1173
    %v1454 = vpack.c.b16 %v1182, %v1174
    %v1455 = vpack.c.b16 %v1191, %v1183
    %v1456 = vpack.c.b16 %v1192, %v1184
    %v1457 = vpack.c.b16 %v1193, %v1185
    %v1458 = vpack.c.b16 %v1194, %v1186
    %v1459 = vpack.c.b16 %v1195, %v1187
    %v1460 = vpack.c.b16 %v1196, %v1188
    %v1461 = vpack.c.b16 %v1197, %v1189
    %v1462 = vpack.c.b16 %v1198, %v1190
    %v1463 = vpack.c.b16 %v1207, %v1199
    %v1464 = vpack.c.b16 %v1208, %v1200
    %v1465 = vpack.c.b16 %v1209, %v1201
    %v1466 = vpack.c.b16 %v1210, %v1202
    %v1467 = vpack.c.b16 %v1211, %v1203
    %v1468 = vpack.c.b16 %v1212, %v1204
    %v1469 = vpack.c.b16 %v1213, %v1205
    %v1470 = vpack.c.b16 %v1214, %v1206
    %1727 = vmatprep.subr.bf16.mxu0 %v1272
    %1728 = vmatpush1.bf16.msra.mxu0 %v1271
    %1729 = vmatprep.subr.bf16.mxu0 %v1264
    %1730 = vmatpush1.bf16.msra.mxu0 %v1263
    %1731 = vmatprep.subr.bf16.mxu0 %v1256
    %1732 = vmatpush1.bf16.msra.mxu0 %v1255
    %1733 = vmatprep.subr.bf16.mxu0 %v1248
    %1734 = vmatpush1.bf16.msra.mxu0 %v1247
    %1735 = vmatprep.subr.bf16.mxu0 %v1240
    %1736 = vmatpush1.bf16.msra.mxu0 %v1239
    %1737 = vmatprep.subr.bf16.mxu0 %v1232
    %1738 = vmatpush1.bf16.msra.mxu0 %v1231
    %1739 = vmatprep.subr.bf16.mxu0 %v1224
    %1740 = vmatpush1.bf16.msra.mxu0 %v1223
    %1741 = vmatprep.subr.bf16.mxu0 %v1216
    %1742 = vmatpush1.bf16.msra.mxu0 %v1215
    %1743 = vmatprep.subr.bf16.mxu0 %v1336
    %1744 = vmatpush2.bf16.msra.mxu0 %v1335
    %1745 = vmatprep.subr.bf16.mxu0 %v1328
    %1746 = vmatpush2.bf16.msra.mxu0 %v1327
    %1747 = vmatprep.subr.bf16.mxu0 %v1320
    %1748 = vmatpush2.bf16.msra.mxu0 %v1319
    %1749 = vmatprep.subr.bf16.mxu0 %v1312
    %1750 = vmatpush2.bf16.msra.mxu0 %v1311
    %1751 = vmatprep.subr.bf16.mxu0 %v1304
    %1752 = vmatpush2.bf16.msra.mxu0 %v1303
    %1753 = vmatprep.subr.bf16.mxu0 %v1296
    %1754 = vmatpush2.bf16.msra.mxu0 %v1295
    %1755 = vmatprep.subr.bf16.mxu0 %v1288
    %1756 = vmatpush2.bf16.msra.mxu0 %v1287
    %1757 = vmatprep.subr.bf16.mxu0 %v1280
    %1758 = vmatpush2.bf16.msra.mxu0 %v1279
    %1759 = vmatprep.mubr.bf16.mxu0 %v416
    %1760 = vmatmul.mubr.bf16.gmra.mxu0 %v415
    %v1761 = vpop.f32.mrf.mxu0
    %v1762 = vadd.f32 %v330, %v1761
    %v1763 = vpop.f32.mrf.mxu0
    %v1764 = vadd.f32 %v334, %v1763
    %v1765 = vpop.f32.mrf.mxu0
    %v1766 = vadd.f32 %v330, %v1765
    %v1767 = vpop.f32.mrf.mxu0
    %v1768 = vadd.f32 %v334, %v1767
    %1769 = vmatprep.mubr.bf16.mxu0 %v420
    %1770 = vmatmul.mubr.bf16.gmra.mxu0 %v419
    %v1771 = vpop.f32.mrf.mxu0
    %v1772 = vadd.f32 %v330, %v1771
    %v1773 = vpop.f32.mrf.mxu0
    %v1774 = vadd.f32 %v334, %v1773
    %v1775 = vpop.f32.mrf.mxu0
    %v1776 = vadd.f32 %v330, %v1775
    %v1777 = vpop.f32.mrf.mxu0
    %v1778 = vadd.f32 %v334, %v1777
    %1779 = vmatprep.mubr.bf16.mxu0 %v424
    %1780 = vmatmul.mubr.bf16.gmra.mxu0 %v423
    %v1781 = vpop.f32.mrf.mxu0
    %v1782 = vadd.f32 %v330, %v1781
    %v1783 = vpop.f32.mrf.mxu0
    %v1784 = vadd.f32 %v334, %v1783
    %v1785 = vpop.f32.mrf.mxu0
    %v1786 = vadd.f32 %v330, %v1785
    %v1787 = vpop.f32.mrf.mxu0
    %v1788 = vadd.f32 %v334, %v1787
    %1789 = vmatprep.mubr.bf16.mxu0 %v428
    %1790 = vmatmul.mubr.bf16.gmra.mxu0 %v427
    %v1791 = vpop.f32.mrf.mxu0
    %v1792 = vadd.f32 %v330, %v1791
    %v1793 = vpop.f32.mrf.mxu0
    %v1794 = vadd.f32 %v334, %v1793
    %v1795 = vpop.f32.mrf.mxu0
    %v1796 = vadd.f32 %v330, %v1795
    %v1797 = vpop.f32.mrf.mxu0
    %v1798 = vadd.f32 %v334, %v1797
    %1799 = vdwg.mxu0
    %1800 = vmatprep.subr.bf16.mxu0 %v1400
    %1801 = vmatpush1.bf16.msra.mxu0 %v1399
    %1802 = vmatprep.subr.bf16.mxu0 %v1392
    %1803 = vmatpush1.bf16.msra.mxu0 %v1391
    %1804 = vmatprep.subr.bf16.mxu0 %v1384
    %1805 = vmatpush1.bf16.msra.mxu0 %v1383
    %1806 = vmatprep.subr.bf16.mxu0 %v1376
    %1807 = vmatpush1.bf16.msra.mxu0 %v1375
    %1808 = vmatprep.subr.bf16.mxu0 %v1368
    %1809 = vmatpush1.bf16.msra.mxu0 %v1367
    %1810 = vmatprep.subr.bf16.mxu0 %v1360
    %1811 = vmatpush1.bf16.msra.mxu0 %v1359
    %1812 = vmatprep.subr.bf16.mxu0 %v1352
    %1813 = vmatpush1.bf16.msra.mxu0 %v1351
    %1814 = vmatprep.subr.bf16.mxu0 %v1344
    %1815 = vmatpush1.bf16.msra.mxu0 %v1343
    %1816 = vmatprep.subr.bf16.mxu0 %v1464
    %1817 = vmatpush2.bf16.msra.mxu0 %v1463
    %1818 = vmatprep.subr.bf16.mxu0 %v1456
    %1819 = vmatpush2.bf16.msra.mxu0 %v1455
    %1820 = vmatprep.subr.bf16.mxu0 %v1448
    %1821 = vmatpush2.bf16.msra.mxu0 %v1447
    %1822 = vmatprep.subr.bf16.mxu0 %v1440
    %1823 = vmatpush2.bf16.msra.mxu0 %v1439
    %1824 = vmatprep.subr.bf16.mxu0 %v1432
    %1825 = vmatpush2.bf16.msra.mxu0 %v1431
    %1826 = vmatprep.subr.bf16.mxu0 %v1424
    %1827 = vmatpush2.bf16.msra.mxu0 %v1423
    %1828 = vmatprep.subr.bf16.mxu0 %v1416
    %1829 = vmatpush2.bf16.msra.mxu0 %v1415
    %1830 = vmatprep.subr.bf16.mxu0 %v1408
    %1831 = vmatpush2.bf16.msra.mxu0 %v1407
    %1832 = vmatprep.mubr.bf16.mxu0 %v418
    %1833 = vmatmul.mubr.bf16.gmra.mxu0 %v417
    %v1834 = vpop.f32.mrf.mxu0
    %v1835 = vadd.f32 %v1762, %v1834
    %v1836 = vpop.f32.mrf.mxu0
    %v1837 = vadd.f32 %v1764, %v1836
    %v1838 = vpop.f32.mrf.mxu0
    %v1839 = vadd.f32 %v1766, %v1838
    %v1840 = vpop.f32.mrf.mxu0
    %v1841 = vadd.f32 %v1768, %v1840
    %1842 = vmatprep.mubr.bf16.mxu0 %v422
    %1843 = vmatmul.mubr.bf16.gmra.mxu0 %v421
    %v1844 = vpop.f32.mrf.mxu0
    %v1845 = vadd.f32 %v1772, %v1844
    %v1846 = vpop.f32.mrf.mxu0
    %v1847 = vadd.f32 %v1774, %v1846
    %v1848 = vpop.f32.mrf.mxu0
    %v1849 = vadd.f32 %v1776, %v1848
    %v1850 = vpop.f32.mrf.mxu0
    %v1851 = vadd.f32 %v1778, %v1850
    %1852 = vmatprep.mubr.bf16.mxu0 %v426
    %1853 = vmatmul.mubr.bf16.gmra.mxu0 %v425
    %v1854 = vpop.f32.mrf.mxu0
    %v1855 = vadd.f32 %v1782, %v1854
    %v1856 = vpop.f32.mrf.mxu0
    %v1857 = vadd.f32 %v1784, %v1856
    %v1858 = vpop.f32.mrf.mxu0
    %v1859 = vadd.f32 %v1786, %v1858
    %v1860 = vpop.f32.mrf.mxu0
    %v1861 = vadd.f32 %v1788, %v1860
    %1862 = vmatprep.mubr.bf16.mxu0 %v430
    %1863 = vmatmul.mubr.bf16.gmra.mxu0 %v429
    %v1864 = vpop.f32.mrf.mxu0
    %v1865 = vadd.f32 %v1792, %v1864
    %v1866 = vpop.f32.mrf.mxu0
    %v1867 = vadd.f32 %v1794, %v1866
    %v1868 = vpop.f32.mrf.mxu0
    %v1869 = vadd.f32 %v1796, %v1868
    %v1870 = vpop.f32.mrf.mxu0
    %v1871 = vadd.f32 %v1798, %v1870
    %1872 = vdwg.mxu0
    %1873 = vmatprep.subr.bf16.mxu0 %v1274
    %1874 = vmatpush1.bf16.msra.mxu0 %v1273
    %1875 = vmatprep.subr.bf16.mxu0 %v1266
    %1876 = vmatpush1.bf16.msra.mxu0 %v1265
    %1877 = vmatprep.subr.bf16.mxu0 %v1258
    %1878 = vmatpush1.bf16.msra.mxu0 %v1257
    %1879 = vmatprep.subr.bf16.mxu0 %v1250
    %1880 = vmatpush1.bf16.msra.mxu0 %v1249
    %1881 = vmatprep.subr.bf16.mxu0 %v1242
    %1882 = vmatpush1.bf16.msra.mxu0 %v1241
    %1883 = vmatprep.subr.bf16.mxu0 %v1234
    %1884 = vmatpush1.bf16.msra.mxu0 %v1233
    %1885 = vmatprep.subr.bf16.mxu0 %v1226
    %1886 = vmatpush1.bf16.msra.mxu0 %v1225
    %1887 = vmatprep.subr.bf16.mxu0 %v1218
    %1888 = vmatpush1.bf16.msra.mxu0 %v1217
    %1889 = vmatprep.subr.bf16.mxu0 %v1338
    %1890 = vmatpush2.bf16.msra.mxu0 %v1337
    %1891 = vmatprep.subr.bf16.mxu0 %v1330
    %1892 = vmatpush2.bf16.msra.mxu0 %v1329
    %1893 = vmatprep.subr.bf16.mxu0 %v1322
    %1894 = vmatpush2.bf16.msra.mxu0 %v1321
    %1895 = vmatprep.subr.bf16.mxu0 %v1314
    %1896 = vmatpush2.bf16.msra.mxu0 %v1313
    %1897 = vmatprep.subr.bf16.mxu0 %v1306
    %1898 = vmatpush2.bf16.msra.mxu0 %v1305
    %1899 = vmatprep.subr.bf16.mxu0 %v1298
    %1900 = vmatpush2.bf16.msra.mxu0 %v1297
    %1901 = vmatprep.subr.bf16.mxu0 %v1290
    %1902 = vmatpush2.bf16.msra.mxu0 %v1289
    %1903 = vmatprep.subr.bf16.mxu0 %v1282
    %1904 = vmatpush2.bf16.msra.mxu0 %v1281
    %1905 = vmatprep.mubr.bf16.mxu0 %v416
    %1906 = vmatmul.mubr.bf16.gmra.mxu0 %v415
    %v1907 = vpop.f32.mrf.mxu0
    %v1908 = vadd.f32 %v338, %v1907
    %v1909 = vpop.f32.mrf.mxu0
    %v1910 = vadd.f32 %v342, %v1909
    %v1911 = vpop.f32.mrf.mxu0
    %v1912 = vadd.f32 %v338, %v1911
    %v1913 = vpop.f32.mrf.mxu0
    %v1914 = vadd.f32 %v342, %v1913
    %1915 = vmatprep.mubr.bf16.mxu0 %v420
    %1916 = vmatmul.mubr.bf16.gmra.mxu0 %v419
    %v1917 = vpop.f32.mrf.mxu0
    %v1918 = vadd.f32 %v338, %v1917
    %v1919 = vpop.f32.mrf.mxu0
    %v1920 = vadd.f32 %v342, %v1919
    %v1921 = vpop.f32.mrf.mxu0
    %v1922 = vadd.f32 %v338, %v1921
    %v1923 = vpop.f32.mrf.mxu0
    %v1924 = vadd.f32 %v342, %v1923
    %1925 = vmatprep.mubr.bf16.mxu0 %v424
    %1926 = vmatmul.mubr.bf16.gmra.mxu0 %v423
    %v1927 = vpop.f32.mrf.mxu0
    %v1928 = vadd.f32 %v338, %v1927
    %v1929 = vpop.f32.mrf.mxu0
    %v1930 = vadd.f32 %v342, %v1929
    %v1931 = vpop.f32.mrf.mxu0
    %v1932 = vadd.f32 %v338, %v1931
    %v1933 = vpop.f32.mrf.mxu0
    %v1934 = vadd.f32 %v342, %v1933
    %1935 = vmatprep.mubr.bf16.mxu0 %v428
    %1936 = vmatmul.mubr.bf16.gmra.mxu0 %v427
    %v1937 = vpop.f32.mrf.mxu0
    %v1938 = vadd.f32 %v338, %v1937
    %v1939 = vpop.f32.mrf.mxu0
    %v1940 = vadd.f32 %v342, %v1939
    %v1941 = vpop.f32.mrf.mxu0
    %v1942 = vadd.f32 %v338, %v1941
    %v1943 = vpop.f32.mrf.mxu0
    %v1944 = vadd.f32 %v342, %v1943
    %1945 = vdwg.mxu0
    %1946 = vmatprep.subr.bf16.mxu0 %v1402
    %1947 = vmatpush1.bf16.msra.mxu0 %v1401
    %1948 = vmatprep.subr.bf16.mxu0 %v1394
    %1949 = vmatpush1.bf16.msra.mxu0 %v1393
    %1950 = vmatprep.subr.bf16.mxu0 %v1386
    %1951 = vmatpush1.bf16.msra.mxu0 %v1385
    %1952 = vmatprep.subr.bf16.mxu0 %v1378
    %1953 = vmatpush1.bf16.msra.mxu0 %v1377
    %1954 = vmatprep.subr.bf16.mxu0 %v1370
    %1955 = vmatpush1.bf16.msra.mxu0 %v1369
    %1956 = vmatprep.subr.bf16.mxu0 %v1362
    %1957 = vmatpush1.bf16.msra.mxu0 %v1361
    %1958 = vmatprep.subr.bf16.mxu0 %v1354
    %1959 = vmatpush1.bf16.msra.mxu0 %v1353
    %1960 = vmatprep.subr.bf16.mxu0 %v1346
    %1961 = vmatpush1.bf16.msra.mxu0 %v1345
    %1962 = vmatprep.subr.bf16.mxu0 %v1466
    %1963 = vmatpush2.bf16.msra.mxu0 %v1465
    %1964 = vmatprep.subr.bf16.mxu0 %v1458
    %1965 = vmatpush2.bf16.msra.mxu0 %v1457
    %1966 = vmatprep.subr.bf16.mxu0 %v1450
    %1967 = vmatpush2.bf16.msra.mxu0 %v1449
    %1968 = vmatprep.subr.bf16.mxu0 %v1442
    %1969 = vmatpush2.bf16.msra.mxu0 %v1441
    %1970 = vmatprep.subr.bf16.mxu0 %v1434
    %1971 = vmatpush2.bf16.msra.mxu0 %v1433
    %1972 = vmatprep.subr.bf16.mxu0 %v1426
    %1973 = vmatpush2.bf16.msra.mxu0 %v1425
    %1974 = vmatprep.subr.bf16.mxu0 %v1418
    %1975 = vmatpush2.bf16.msra.mxu0 %v1417
    %1976 = vmatprep.subr.bf16.mxu0 %v1410
    %1977 = vmatpush2.bf16.msra.mxu0 %v1409
    %1978 = vmatprep.mubr.bf16.mxu0 %v418
    %1979 = vmatmul.mubr.bf16.gmra.mxu0 %v417
    %v1980 = vpop.f32.mrf.mxu0
    %v1981 = vadd.f32 %v1908, %v1980
    %v1982 = vpop.f32.mrf.mxu0
    %v1983 = vadd.f32 %v1910, %v1982
    %v1984 = vpop.f32.mrf.mxu0
    %v1985 = vadd.f32 %v1912, %v1984
    %v1986 = vpop.f32.mrf.mxu0
    %v1987 = vadd.f32 %v1914, %v1986
    %1988 = vmatprep.mubr.bf16.mxu0 %v422
    %1989 = vmatmul.mubr.bf16.gmra.mxu0 %v421
    %v1990 = vpop.f32.mrf.mxu0
    %v1991 = vadd.f32 %v1918, %v1990
    %v1992 = vpop.f32.mrf.mxu0
    %v1993 = vadd.f32 %v1920, %v1992
    %v1994 = vpop.f32.mrf.mxu0
    %v1995 = vadd.f32 %v1922, %v1994
    %v1996 = vpop.f32.mrf.mxu0
    %v1997 = vadd.f32 %v1924, %v1996
    %1998 = vmatprep.mubr.bf16.mxu0 %v426
    %1999 = vmatmul.mubr.bf16.gmra.mxu0 %v425
    %v2000 = vpop.f32.mrf.mxu0
    %v2001 = vadd.f32 %v1928, %v2000
    %v2002 = vpop.f32.mrf.mxu0
    %v2003 = vadd.f32 %v1930, %v2002
    %v2004 = vpop.f32.mrf.mxu0
    %v2005 = vadd.f32 %v1932, %v2004
    %v2006 = vpop.f32.mrf.mxu0
    %v2007 = vadd.f32 %v1934, %v2006
    %2008 = vmatprep.mubr.bf16.mxu0 %v430
    %2009 = vmatmul.mubr.bf16.gmra.mxu0 %v429
    %v2010 = vpop.f32.mrf.mxu0
    %v2011 = vadd.f32 %v1938, %v2010
    %v2012 = vpop.f32.mrf.mxu0
    %v2013 = vadd.f32 %v1940, %v2012
    %v2014 = vpop.f32.mrf.mxu0
    %v2015 = vadd.f32 %v1942, %v2014
    %v2016 = vpop.f32.mrf.mxu0
    %v2017 = vadd.f32 %v1944, %v2016
    %2018 = vdwg.mxu0
    %2019 = vmatprep.subr.bf16.mxu0 %v1276
    %2020 = vmatpush1.bf16.msra.mxu0 %v1275
    %2021 = vmatprep.subr.bf16.mxu0 %v1268
    %2022 = vmatpush1.bf16.msra.mxu0 %v1267
    %2023 = vmatprep.subr.bf16.mxu0 %v1260
    %2024 = vmatpush1.bf16.msra.mxu0 %v1259
    %2025 = vmatprep.subr.bf16.mxu0 %v1252
    %2026 = vmatpush1.bf16.msra.mxu0 %v1251
    %2027 = vmatprep.subr.bf16.mxu0 %v1244
    %2028 = vmatpush1.bf16.msra.mxu0 %v1243
    %2029 = vmatprep.subr.bf16.mxu0 %v1236
    %2030 = vmatpush1.bf16.msra.mxu0 %v1235
    %2031 = vmatprep.subr.bf16.mxu0 %v1228
    %2032 = vmatpush1.bf16.msra.mxu0 %v1227
    %2033 = vmatprep.subr.bf16.mxu0 %v1220
    %2034 = vmatpush1.bf16.msra.mxu0 %v1219
    %2035 = vmatprep.subr.bf16.mxu0 %v1340
    %2036 = vmatpush2.bf16.msra.mxu0 %v1339
    %2037 = vmatprep.subr.bf16.mxu0 %v1332
    %2038 = vmatpush2.bf16.msra.mxu0 %v1331
    %2039 = vmatprep.subr.bf16.mxu0 %v1324
    %2040 = vmatpush2.bf16.msra.mxu0 %v1323
    %2041 = vmatprep.subr.bf16.mxu0 %v1316
    %2042 = vmatpush2.bf16.msra.mxu0 %v1315
    %2043 = vmatprep.subr.bf16.mxu0 %v1308
    %2044 = vmatpush2.bf16.msra.mxu0 %v1307
    %2045 = vmatprep.subr.bf16.mxu0 %v1300
    %2046 = vmatpush2.bf16.msra.mxu0 %v1299
    %2047 = vmatprep.subr.bf16.mxu0 %v1292
    %2048 = vmatpush2.bf16.msra.mxu0 %v1291
    %2049 = vmatprep.subr.bf16.mxu0 %v1284
    %2050 = vmatpush2.bf16.msra.mxu0 %v1283
    %2051 = vmatprep.mubr.bf16.mxu0 %v416
    %2052 = vmatmul.mubr.bf16.gmra.mxu0 %v415
    %v2053 = vpop.f32.mrf.mxu0
    %v2054 = vadd.f32 %v346, %v2053
    %v2055 = vpop.f32.mrf.mxu0
    %v2056 = vadd.f32 %v350, %v2055
    %v2057 = vpop.f32.mrf.mxu0
    %v2058 = vadd.f32 %v346, %v2057
    %v2059 = vpop.f32.mrf.mxu0
    %v2060 = vadd.f32 %v350, %v2059
    %2061 = vmatprep.mubr.bf16.mxu0 %v420
    %2062 = vmatmul.mubr.bf16.gmra.mxu0 %v419
    %v2063 = vpop.f32.mrf.mxu0
    %v2064 = vadd.f32 %v346, %v2063
    %v2065 = vpop.f32.mrf.mxu0
    %v2066 = vadd.f32 %v350, %v2065
    %v2067 = vpop.f32.mrf.mxu0
    %v2068 = vadd.f32 %v346, %v2067
    %v2069 = vpop.f32.mrf.mxu0
    %v2070 = vadd.f32 %v350, %v2069
    %2071 = vmatprep.mubr.bf16.mxu0 %v424
    %2072 = vmatmul.mubr.bf16.gmra.mxu0 %v423
    %v2073 = vpop.f32.mrf.mxu0
    %v2074 = vadd.f32 %v346, %v2073
    %v2075 = vpop.f32.mrf.mxu0
    %v2076 = vadd.f32 %v350, %v2075
    %v2077 = vpop.f32.mrf.mxu0
    %v2078 = vadd.f32 %v346, %v2077
    %v2079 = vpop.f32.mrf.mxu0
    %v2080 = vadd.f32 %v350, %v2079
    %2081 = vmatprep.mubr.bf16.mxu0 %v428
    %2082 = vmatmul.mubr.bf16.gmra.mxu0 %v427
    %v2083 = vpop.f32.mrf.mxu0
    %v2084 = vadd.f32 %v346, %v2083
    %v2085 = vpop.f32.mrf.mxu0
    %v2086 = vadd.f32 %v350, %v2085
    %v2087 = vpop.f32.mrf.mxu0
    %v2088 = vadd.f32 %v346, %v2087
    %v2089 = vpop.f32.mrf.mxu0
    %v2090 = vadd.f32 %v350, %v2089
    %2091 = vdwg.mxu0
    %2092 = vmatprep.subr.bf16.mxu0 %v1404
    %2093 = vmatpush1.bf16.msra.mxu0 %v1403
    %2094 = vmatprep.subr.bf16.mxu0 %v1396
    %2095 = vmatpush1.bf16.msra.mxu0 %v1395
    %2096 = vmatprep.subr.bf16.mxu0 %v1388
    %2097 = vmatpush1.bf16.msra.mxu0 %v1387
    %2098 = vmatprep.subr.bf16.mxu0 %v1380
    %2099 = vmatpush1.bf16.msra.mxu0 %v1379
    %2100 = vmatprep.subr.bf16.mxu0 %v1372
    %2101 = vmatpush1.bf16.msra.mxu0 %v1371
    %2102 = vmatprep.subr.bf16.mxu0 %v1364
    %2103 = vmatpush1.bf16.msra.mxu0 %v1363
    %2104 = vmatprep.subr.bf16.mxu0 %v1356
    %2105 = vmatpush1.bf16.msra.mxu0 %v1355
    %2106 = vmatprep.subr.bf16.mxu0 %v1348
    %2107 = vmatpush1.bf16.msra.mxu0 %v1347
    %2108 = vmatprep.subr.bf16.mxu0 %v1468
    %2109 = vmatpush2.bf16.msra.mxu0 %v1467
    %2110 = vmatprep.subr.bf16.mxu0 %v1460
    %2111 = vmatpush2.bf16.msra.mxu0 %v1459
    %2112 = vmatprep.subr.bf16.mxu0 %v1452
    %2113 = vmatpush2.bf16.msra.mxu0 %v1451
    %2114 = vmatprep.subr.bf16.mxu0 %v1444
    %2115 = vmatpush2.bf16.msra.mxu0 %v1443
    %2116 = vmatprep.subr.bf16.mxu0 %v1436
    %2117 = vmatpush2.bf16.msra.mxu0 %v1435
    %2118 = vmatprep.subr.bf16.mxu0 %v1428
    %2119 = vmatpush2.bf16.msra.mxu0 %v1427
    %2120 = vmatprep.subr.bf16.mxu0 %v1420
    %2121 = vmatpush2.bf16.msra.mxu0 %v1419
    %2122 = vmatprep.subr.bf16.mxu0 %v1412
    %2123 = vmatpush2.bf16.msra.mxu0 %v1411
    %2124 = vmatprep.mubr.bf16.mxu0 %v418
    %2125 = vmatmul.mubr.bf16.gmra.mxu0 %v417
    %v2126 = vpop.f32.mrf.mxu0
    %v2127 = vadd.f32 %v2054, %v2126
    %v2128 = vpop.f32.mrf.mxu0
    %v2129 = vadd.f32 %v2056, %v2128
    %v2130 = vpop.f32.mrf.mxu0
    %v2131 = vadd.f32 %v2058, %v2130
    %v2132 = vpop.f32.mrf.mxu0
    %v2133 = vadd.f32 %v2060, %v2132
    %2134 = vmatprep.mubr.bf16.mxu0 %v422
    %2135 = vmatmul.mubr.bf16.gmra.mxu0 %v421
    %v2136 = vpop.f32.mrf.mxu0
    %v2137 = vadd.f32 %v2064, %v2136
    %v2138 = vpop.f32.mrf.mxu0
    %v2139 = vadd.f32 %v2066, %v2138
    %v2140 = vpop.f32.mrf.mxu0
    %v2141 = vadd.f32 %v2068, %v2140
    %v2142 = vpop.f32.mrf.mxu0
    %v2143 = vadd.f32 %v2070, %v2142
    %2144 = vmatprep.mubr.bf16.mxu0 %v426
    %2145 = vmatmul.mubr.bf16.gmra.mxu0 %v425
    %v2146 = vpop.f32.mrf.mxu0
    %v2147 = vadd.f32 %v2074, %v2146
    %v2148 = vpop.f32.mrf.mxu0
    %v2149 = vadd.f32 %v2076, %v2148
    %v2150 = vpop.f32.mrf.mxu0
    %v2151 = vadd.f32 %v2078, %v2150
    %v2152 = vpop.f32.mrf.mxu0
    %v2153 = vadd.f32 %v2080, %v2152
    %2154 = vmatprep.mubr.bf16.mxu0 %v430
    %2155 = vmatmul.mubr.bf16.gmra.mxu0 %v429
    %v2156 = vpop.f32.mrf.mxu0
    %v2157 = vadd.f32 %v2084, %v2156
    %v2158 = vpop.f32.mrf.mxu0
    %v2159 = vadd.f32 %v2086, %v2158
    %v2160 = vpop.f32.mrf.mxu0
    %v2161 = vadd.f32 %v2088, %v2160
    %v2162 = vpop.f32.mrf.mxu0
    %v2163 = vadd.f32 %v2090, %v2162
    %2164 = vdwg.mxu0
    %2165 = vmatprep.subr.bf16.mxu0 %v1278
    %2166 = vmatpush1.bf16.msra.mxu0 %v1277
    %2167 = vmatprep.subr.bf16.mxu0 %v1270
    %2168 = vmatpush1.bf16.msra.mxu0 %v1269
    %2169 = vmatprep.subr.bf16.mxu0 %v1262
    %2170 = vmatpush1.bf16.msra.mxu0 %v1261
    %2171 = vmatprep.subr.bf16.mxu0 %v1254
    %2172 = vmatpush1.bf16.msra.mxu0 %v1253
    %2173 = vmatprep.subr.bf16.mxu0 %v1246
    %2174 = vmatpush1.bf16.msra.mxu0 %v1245
    %2175 = vmatprep.subr.bf16.mxu0 %v1238
    %2176 = vmatpush1.bf16.msra.mxu0 %v1237
    %2177 = vmatprep.subr.bf16.mxu0 %v1230
    %2178 = vmatpush1.bf16.msra.mxu0 %v1229
    %2179 = vmatprep.subr.bf16.mxu0 %v1222
    %2180 = vmatpush1.bf16.msra.mxu0 %v1221
    %2181 = vmatprep.subr.bf16.mxu0 %v1342
    %2182 = vmatpush2.bf16.msra.mxu0 %v1341
    %2183 = vmatprep.subr.bf16.mxu0 %v1334
    %2184 = vmatpush2.bf16.msra.mxu0 %v1333
    %2185 = vmatprep.subr.bf16.mxu0 %v1326
    %2186 = vmatpush2.bf16.msra.mxu0 %v1325
    %2187 = vmatprep.subr.bf16.mxu0 %v1318
    %2188 = vmatpush2.bf16.msra.mxu0 %v1317
    %2189 = vmatprep.subr.bf16.mxu0 %v1310
    %2190 = vmatpush2.bf16.msra.mxu0 %v1309
    %2191 = vmatprep.subr.bf16.mxu0 %v1302
    %2192 = vmatpush2.bf16.msra.mxu0 %v1301
    %2193 = vmatprep.subr.bf16.mxu0 %v1294
    %2194 = vmatpush2.bf16.msra.mxu0 %v1293
    %2195 = vmatprep.subr.bf16.mxu0 %v1286
    %2196 = vmatpush2.bf16.msra.mxu0 %v1285
    %2197 = vmatprep.mubr.bf16.mxu0 %v416
    %2198 = vmatmul.mubr.bf16.gmra.mxu0 %v415
    %v2199 = vpop.f32.mrf.mxu0
    %v2200 = vadd.f32 %v354, %v2199
    %v2201 = vpop.f32.mrf.mxu0
    %v2202 = vadd.f32 %v358, %v2201
    %v2203 = vpop.f32.mrf.mxu0
    %v2204 = vadd.f32 %v354, %v2203
    %v2205 = vpop.f32.mrf.mxu0
    %v2206 = vadd.f32 %v358, %v2205
    %2207 = vmatprep.mubr.bf16.mxu0 %v420
    %2208 = vmatmul.mubr.bf16.gmra.mxu0 %v419
    %v2209 = vpop.f32.mrf.mxu0
    %v2210 = vadd.f32 %v354, %v2209
    %v2211 = vpop.f32.mrf.mxu0
    %v2212 = vadd.f32 %v358, %v2211
    %v2213 = vpop.f32.mrf.mxu0
    %v2214 = vadd.f32 %v354, %v2213
    %v2215 = vpop.f32.mrf.mxu0
    %v2216 = vadd.f32 %v358, %v2215
    %2217 = vmatprep.mubr.bf16.mxu0 %v424
    %2218 = vmatmul.mubr.bf16.gmra.mxu0 %v423
    %v2219 = vpop.f32.mrf.mxu0
    %v2220 = vadd.f32 %v354, %v2219
    %v2221 = vpop.f32.mrf.mxu0
    %v2222 = vadd.f32 %v358, %v2221
    %v2223 = vpop.f32.mrf.mxu0
    %v2224 = vadd.f32 %v354, %v2223
    %v2225 = vpop.f32.mrf.mxu0
    %v2226 = vadd.f32 %v358, %v2225
    %2227 = vmatprep.mubr.bf16.mxu0 %v428
    %2228 = vmatmul.mubr.bf16.gmra.mxu0 %v427
    %v2229 = vpop.f32.mrf.mxu0
    %v2230 = vadd.f32 %v354, %v2229
    %v2231 = vpop.f32.mrf.mxu0
    %v2232 = vadd.f32 %v358, %v2231
    %v2233 = vpop.f32.mrf.mxu0
    %v2234 = vadd.f32 %v354, %v2233
    %v2235 = vpop.f32.mrf.mxu0
    %v2236 = vadd.f32 %v358, %v2235
    %2237 = vdwg.mxu0
    %2238 = vmatprep.subr.bf16.mxu0 %v1406
    %2239 = vmatpush1.bf16.msra.mxu0 %v1405
    %2240 = vmatprep.subr.bf16.mxu0 %v1398
    %2241 = vmatpush1.bf16.msra.mxu0 %v1397
    %2242 = vmatprep.subr.bf16.mxu0 %v1390
    %2243 = vmatpush1.bf16.msra.mxu0 %v1389
    %2244 = vmatprep.subr.bf16.mxu0 %v1382
    %2245 = vmatpush1.bf16.msra.mxu0 %v1381
    %2246 = vmatprep.subr.bf16.mxu0 %v1374
    %2247 = vmatpush1.bf16.msra.mxu0 %v1373
    %2248 = vmatprep.subr.bf16.mxu0 %v1366
    %2249 = vmatpush1.bf16.msra.mxu0 %v1365
    %2250 = vmatprep.subr.bf16.mxu0 %v1358
    %2251 = vmatpush1.bf16.msra.mxu0 %v1357
    %2252 = vmatprep.subr.bf16.mxu0 %v1350
    %2253 = vmatpush1.bf16.msra.mxu0 %v1349
    %2254 = vmatprep.subr.bf16.mxu0 %v1470
    %2255 = vmatpush2.bf16.msra.mxu0 %v1469
    %2256 = vmatprep.subr.bf16.mxu0 %v1462
    %2257 = vmatpush2.bf16.msra.mxu0 %v1461
    %2258 = vmatprep.subr.bf16.mxu0 %v1454
    %2259 = vmatpush2.bf16.msra.mxu0 %v1453
    %2260 = vmatprep.subr.bf16.mxu0 %v1446
    %2261 = vmatpush2.bf16.msra.mxu0 %v1445
    %2262 = vmatprep.subr.bf16.mxu0 %v1438
    %2263 = vmatpush2.bf16.msra.mxu0 %v1437
    %2264 = vmatprep.subr.bf16.mxu0 %v1430
    %2265 = vmatpush2.bf16.msra.mxu0 %v1429
    %2266 = vmatprep.subr.bf16.mxu0 %v1422
    %2267 = vmatpush2.bf16.msra.mxu0 %v1421
    %2268 = vmatprep.subr.bf16.mxu0 %v1414
    %2269 = vmatpush2.bf16.msra.mxu0 %v1413
    %2270 = vmatprep.mubr.bf16.mxu0 %v418
    %2271 = vmatmul.mubr.bf16.gmra.mxu0 %v417
    %v2272 = vpop.f32.mrf.mxu0
    %v2273 = vadd.f32 %v2200, %v2272
    %v2274 = vpop.f32.mrf.mxu0
    %v2275 = vadd.f32 %v2202, %v2274
    %v2276 = vpop.f32.mrf.mxu0
    %v2277 = vadd.f32 %v2204, %v2276
    %v2278 = vpop.f32.mrf.mxu0
    %v2279 = vadd.f32 %v2206, %v2278
    %2280 = vmatprep.mubr.bf16.mxu0 %v422
    %2281 = vmatmul.mubr.bf16.gmra.mxu0 %v421
    %v2282 = vpop.f32.mrf.mxu0
    %v2283 = vadd.f32 %v2210, %v2282
    %v2284 = vpop.f32.mrf.mxu0
    %v2285 = vadd.f32 %v2212, %v2284
    %v2286 = vpop.f32.mrf.mxu0
    %v2287 = vadd.f32 %v2214, %v2286
    %v2288 = vpop.f32.mrf.mxu0
    %v2289 = vadd.f32 %v2216, %v2288
    %2290 = vmatprep.mubr.bf16.mxu0 %v426
    %2291 = vmatmul.mubr.bf16.gmra.mxu0 %v425
    %v2292 = vpop.f32.mrf.mxu0
    %v2293 = vadd.f32 %v2220, %v2292
    %v2294 = vpop.f32.mrf.mxu0
    %v2295 = vadd.f32 %v2222, %v2294
    %v2296 = vpop.f32.mrf.mxu0
    %v2297 = vadd.f32 %v2224, %v2296
    %v2298 = vpop.f32.mrf.mxu0
    %v2299 = vadd.f32 %v2226, %v2298
    %2300 = vmatprep.mubr.bf16.mxu0 %v430
    %2301 = vmatmul.mubr.bf16.gmra.mxu0 %v429
    %v2302 = vpop.f32.mrf.mxu0
    %v2303 = vadd.f32 %v2230, %v2302
    %v2304 = vpop.f32.mrf.mxu0
    %v2305 = vadd.f32 %v2232, %v2304
    %v2306 = vpop.f32.mrf.mxu0
    %v2307 = vadd.f32 %v2234, %v2306
    %v2308 = vpop.f32.mrf.mxu0
    %v2309 = vadd.f32 %v2236, %v2308
    %2310 = vdwg.mxu0
    %2311 = vst [vmem:[#allocation3] sm:$0xff] %v1835
    %2312 = vst [vmem:[#allocation3 + $0x8] sm:$0xff] %v1837
    %2313 = vst [vmem:[#allocation3 + $0x10] sm:$0xff] %v1981
    %2314 = vst [vmem:[#allocation3 + $0x18] sm:$0xff] %v1983
    %2315 = vst [vmem:[#allocation3 + $0x20] sm:$0xff] %v2127
    %2316 = vst [vmem:[#allocation3 + $0x28] sm:$0xff] %v2129
    %2317 = vst [vmem:[#allocation3 + $0x30] sm:$0xff] %v2273
    %2318 = vst [vmem:[#allocation3 + $0x38] sm:$0xff] %v2275
    %2319 = vst [vmem:[#allocation3 + $0x40] sm:$0xff] %v1839
    %2320 = vst [vmem:[#allocation3 + $0x48] sm:$0xff] %v1841
    %2321 = vst [vmem:[#allocation3 + $0x50] sm:$0xff] %v1985
    %2322 = vst [vmem:[#allocation3 + $0x58] sm:$0xff] %v1987
    %2323 = vst [vmem:[#allocation3 + $0x60] sm:$0xff] %v2131
    %2324 = vst [vmem:[#allocation3 + $0x68] sm:$0xff] %v2133
    %2325 = vst [vmem:[#allocation3 + $0x70] sm:$0xff] %v2277
    %2326 = vst [vmem:[#allocation3 + $0x78] sm:$0xff] %v2279
    %2327 = vst [vmem:[#allocation3 + $0x80] sm:$0xff] %v1845
    %2328 = vst [vmem:[#allocation3 + $0x88] sm:$0xff] %v1847
    %2329 = vst [vmem:[#allocation3 + $0x90] sm:$0xff] %v1991
    %2330 = vst [vmem:[#allocation3 + $0x98] sm:$0xff] %v1993
    %2331 = vst [vmem:[#allocation3 + $0xa0] sm:$0xff] %v2137
    %2332 = vst [vmem:[#allocation3 + $0xa8] sm:$0xff] %v2139
    %2333 = vst [vmem:[#allocation3 + $0xb0] sm:$0xff] %v2283
    %2334 = vst [vmem:[#allocation3 + $0xb8] sm:$0xff] %v2285
    %2335 = vst [vmem:[#allocation3 + $0xc0] sm:$0xff] %v1849
    %2336 = vst [vmem:[#allocation3 + $0xc8] sm:$0xff] %v1851
    %2337 = vst [vmem:[#allocation3 + $0xd0] sm:$0xff] %v1995
    %2338 = vst [vmem:[#allocation3 + $0xd8] sm:$0xff] %v1997
    %2339 = vst [vmem:[#allocation3 + $0xe0] sm:$0xff] %v2141
    %2340 = vst [vmem:[#allocation3 + $0xe8] sm:$0xff] %v2143
    %2341 = vst [vmem:[#allocation3 + $0xf0] sm:$0xff] %v2287
    %2342 = vst [vmem:[#allocation3 + $0xf8] sm:$0xff] %v2289
    %2343 = vst [vmem:[#allocation3 + $0x100] sm:$0xff] %v1855
    %2344 = vst [vmem:[#allocation3 + $0x108] sm:$0xff] %v1857
    %2345 = vst [vmem:[#allocation3 + $0x110] sm:$0xff] %v2001
    %2346 = vst [vmem:[#allocation3 + $0x118] sm:$0xff] %v2003
    %2347 = vst [vmem:[#allocation3 + $0x120] sm:$0xff] %v2147
    %2348 = vst [vmem:[#allocation3 + $0x128] sm:$0xff] %v2149
    %2349 = vst [vmem:[#allocation3 + $0x130] sm:$0xff] %v2293
    %2350 = vst [vmem:[#allocation3 + $0x138] sm:$0xff] %v2295
    %2351 = vst [vmem:[#allocation3 + $0x140] sm:$0xff] %v1859
    %2352 = vst [vmem:[#allocation3 + $0x148] sm:$0xff] %v1861
    %2353 = vst [vmem:[#allocation3 + $0x150] sm:$0xff] %v2005
    %2354 = vst [vmem:[#allocation3 + $0x158] sm:$0xff] %v2007
    %2355 = vst [vmem:[#allocation3 + $0x160] sm:$0xff] %v2151
    %2356 = vst [vmem:[#allocation3 + $0x168] sm:$0xff] %v2153
    %2357 = vst [vmem:[#allocation3 + $0x170] sm:$0xff] %v2297
    %2358 = vst [vmem:[#allocation3 + $0x178] sm:$0xff] %v2299
    %2359 = vst [vmem:[#allocation3 + $0x180] sm:$0xff] %v1865
    %2360 = vst [vmem:[#allocation3 + $0x188] sm:$0xff] %v1867
    %2361 = vst [vmem:[#allocation3 + $0x190] sm:$0xff] %v2011
    %2362 = vst [vmem:[#allocation3 + $0x198] sm:$0xff] %v2013
    %2363 = vst [vmem:[#allocation3 + $0x1a0] sm:$0xff] %v2157
    %2364 = vst [vmem:[#allocation3 + $0x1a8] sm:$0xff] %v2159
    %2365 = vst [vmem:[#allocation3 + $0x1b0] sm:$0xff] %v2303
    %2366 = vst [vmem:[#allocation3 + $0x1b8] sm:$0xff] %v2305
    %2367 = vst [vmem:[#allocation3 + $0x1c0] sm:$0xf] %v1869
    %2368 = vst [vmem:[#allocation3 + $0x1c8] sm:$0xf] %v1871
    %2369 = vst [vmem:[#allocation3 + $0x1d0] sm:$0xf] %v2015
    %2370 = vst [vmem:[#allocation3 + $0x1d8] sm:$0xf] %v2017
    %2371 = vst [vmem:[#allocation3 + $0x1e0] sm:$0xf] %v2161
    %2372 = vst [vmem:[#allocation3 + $0x1e8] sm:$0xf] %v2163
    %2373 = vst [vmem:[#allocation3 + $0x1f0] sm:$0xf] %v2307
    %2374 = vst [vmem:[#allocation3 + $0x1f8] sm:$0xf] %v2309
    %v2375 = vld [vmem:[#allocation3 + $0x20] sm:$0xff]
    %v2376 = vld [vmem:[#allocation3 + $0x28] sm:$0xff]
    %v2377 = vld [vmem:[#allocation3 + $0x60] sm:$0xf]
    %v2378 = vld [vmem:[#allocation3 + $0x68] sm:$0xf]
    %2379 = vst [vmem:[#allocation5] sm:$0xff] %v2375
    %2380 = vst [vmem:[#allocation5 + $0x8] sm:$0xff] %v2376
    %2381 = vst [vmem:[#allocation5 + $0x10] sm:$0xf] %v2377
    %2382 = vst [vmem:[#allocation5 + $0x18] sm:$0xf] %v2378
    %v2383 = vld [vmem:[#allocation3 + $0x30] sm:$0xff]
    %v2384 = vld [vmem:[#allocation3 + $0x38] sm:$0xff]
    %v2385 = vld [vmem:[#allocation3 + $0x70] sm:$0xf]
    %v2386 = vld [vmem:[#allocation3 + $0x78] sm:$0xf]
    %2387 = vst [vmem:[#allocation6] sm:$0xff] %v2383
    %2388 = vst [vmem:[#allocation6 + $0x8] sm:$0xff] %v2384
    %2389 = vst [vmem:[#allocation6 + $0x10] sm:$0xf] %v2385
    %2390 = vst [vmem:[#allocation6 + $0x18] sm:$0xf] %v2386
    %v2391 = vld [vmem:[#allocation3 + $0x60] sm:$0xf0]
    %v2392 = vld [vmem:[#allocation3 + $0x68] sm:$0xf0]
    %v2393 = vld [vmem:[#allocation3 + $0xa0] sm:$0xff]
    %v2394 = vld [vmem:[#allocation3 + $0xa8] sm:$0xff]
    %vm2399 = vcmask 1043456
    %v2400 = vrot.slane %v2391, 4
    %v2401 = vrot.slane %v2393, 4
    %v2402 = vsel %vm2399, %v2400, %v2401
    %v2403 = vrot.slane %v2392, 4
    %v2404 = vrot.slane %v2394, 4
    %v2405 = vsel %vm2399, %v2403, %v2404
    %s2410 = scalar_lea.vmem [#allocation5], 32
    %2411 = vst [vmem:[%s2410] sm:$0xff] %v2402
    %2412 = vst [vmem:[%s2410 + $0x8] sm:$0xff] %v2405
    %2413 = vst [vmem:[%s2410 + $0x10] sm:$0xf] %v2401
    %2414 = vst [vmem:[%s2410 + $0x18] sm:$0xf] %v2404
    %v2415 = vld [vmem:[#allocation3 + $0x70] sm:$0xf0]
    %v2416 = vld [vmem:[#allocation3 + $0x78] sm:$0xf0]
    %v2417 = vld [vmem:[#allocation3 + $0xb0] sm:$0xff]
    %v2418 = vld [vmem:[#allocation3 + $0xb8] sm:$0xff]
    %v2423 = vrot.slane %v2415, 4
    %v2424 = vrot.slane %v2417, 4
    %v2425 = vsel %vm2399, %v2423, %v2424
    %v2426 = vrot.slane %v2416, 4
    %v2427 = vrot.slane %v2418, 4
    %v2428 = vsel %vm2399, %v2426, %v2427
    %s2433 = scalar_lea.vmem [#allocation6], 32
    %2434 = vst [vmem:[%s2433] sm:$0xff] %v2425
    %2435 = vst [vmem:[%s2433 + $0x8] sm:$0xff] %v2428
    %2436 = vst [vmem:[%s2433 + $0x10] sm:$0xf] %v2424
    %2437 = vst [vmem:[%s2433 + $0x18] sm:$0xf] %v2427
    %v2438 = vld [vmem:[#allocation3 + $0xe0] sm:$0xff]
    %v2439 = vld [vmem:[#allocation3 + $0xe8] sm:$0xff]
    %v2440 = vld [vmem:[#allocation3 + $0x120] sm:$0xf]
    %v2441 = vld [vmem:[#allocation3 + $0x128] sm:$0xf]
    %s2442 = scalar_lea.vmem [#allocation5], 64
    %2443 = vst [vmem:[%s2442] sm:$0xff] %v2438
    %2444 = vst [vmem:[%s2442 + $0x8] sm:$0xff] %v2439
    %2445 = vst [vmem:[%s2442 + $0x10] sm:$0xf] %v2440
    %2446 = vst [vmem:[%s2442 + $0x18] sm:$0xf] %v2441
    %v2447 = vld [vmem:[#allocation3 + $0xf0] sm:$0xff]
    %v2448 = vld [vmem:[#allocation3 + $0xf8] sm:$0xff]
    %v2449 = vld [vmem:[#allocation3 + $0x130] sm:$0xf]
    %v2450 = vld [vmem:[#allocation3 + $0x138] sm:$0xf]
    %s2451 = scalar_lea.vmem [#allocation6], 64
    %2452 = vst [vmem:[%s2451] sm:$0xff] %v2447
    %2453 = vst [vmem:[%s2451 + $0x8] sm:$0xff] %v2448
    %2454 = vst [vmem:[%s2451 + $0x10] sm:$0xf] %v2449
    %2455 = vst [vmem:[%s2451 + $0x18] sm:$0xf] %v2450
    %v2456 = vld [vmem:[#allocation3 + $0x120] sm:$0xf0]
    %v2457 = vld [vmem:[#allocation3 + $0x128] sm:$0xf0]
    %v2458 = vld [vmem:[#allocation3 + $0x160] sm:$0xff]
    %v2459 = vld [vmem:[#allocation3 + $0x168] sm:$0xff]
    %v2464 = vrot.slane %v2456, 4
    %v2465 = vrot.slane %v2458, 4
    %v2466 = vsel %vm2399, %v2464, %v2465
    %v2467 = vrot.slane %v2457, 4
    %v2468 = vrot.slane %v2459, 4
    %v2469 = vsel %vm2399, %v2467, %v2468
    %s2474 = scalar_lea.vmem [#allocation5], 96
    %2475 = vst [vmem:[%s2474] sm:$0xff] %v2466
    %2476 = vst [vmem:[%s2474 + $0x8] sm:$0xff] %v2469
    %2477 = vst [vmem:[%s2474 + $0x10] sm:$0xf] %v2465
    %2478 = vst [vmem:[%s2474 + $0x18] sm:$0xf] %v2468
    %v2479 = vld [vmem:[#allocation3 + $0x130] sm:$0xf0]
    %v2480 = vld [vmem:[#allocation3 + $0x138] sm:$0xf0]
    %v2481 = vld [vmem:[#allocation3 + $0x170] sm:$0xff]
    %v2482 = vld [vmem:[#allocation3 + $0x178] sm:$0xff]
    %v2487 = vrot.slane %v2479, 4
    %v2488 = vrot.slane %v2481, 4
    %v2489 = vsel %vm2399, %v2487, %v2488
    %v2490 = vrot.slane %v2480, 4
    %v2491 = vrot.slane %v2482, 4
    %v2492 = vsel %vm2399, %v2490, %v2491
    %s2497 = scalar_lea.vmem [#allocation6], 96
    %2498 = vst [vmem:[%s2497] sm:$0xff] %v2489
    %2499 = vst [vmem:[%s2497 + $0x8] sm:$0xff] %v2492
    %2500 = vst [vmem:[%s2497 + $0x10] sm:$0xf] %v2488
    %2501 = vst [vmem:[%s2497 + $0x18] sm:$0xf] %v2491
    %v2502 = vld [vmem:[#allocation3 + $0x1a0] sm:$0xff]
    %v2503 = vld [vmem:[#allocation3 + $0x1a8] sm:$0xff]
    %v2504 = vld [vmem:[#allocation3 + $0x1e0] sm:$0xf]
    %v2505 = vld [vmem:[#allocation3 + $0x1e8] sm:$0xf]
    %s2506 = scalar_lea.vmem [#allocation5], 128
    %2507 = vst [vmem:[%s2506] sm:$0xff] %v2502
    %2508 = vst [vmem:[%s2506 + $0x8] sm:$0xff] %v2503
    %2509 = vst [vmem:[%s2506 + $0x10] sm:$0xf] %v2504
    %2510 = vst [vmem:[%s2506 + $0x18] sm:$0xf] %v2505
    %v2511 = vld [vmem:[#allocation3 + $0x1b0] sm:$0xff]
    %v2512 = vld [vmem:[#allocation3 + $0x1b8] sm:$0xff]
    %v2513 = vld [vmem:[#allocation3 + $0x1f0] sm:$0xf]
    %v2514 = vld [vmem:[#allocation3 + $0x1f8] sm:$0xf]
    %s2515 = scalar_lea.vmem [#allocation6], 128
    %2516 = vst [vmem:[%s2515] sm:$0xff] %v2511
    %2517 = vst [vmem:[%s2515 + $0x8] sm:$0xff] %v2512
    %2518 = vst [vmem:[%s2515 + $0x10] sm:$0xf] %v2513
    %2519 = vst [vmem:[%s2515 + $0x18] sm:$0xf] %v2514
    %s2520 = scalar_lea.sflag [#allocation7], 1
    // Predicated region
    $region30: #{tpu_custom_call.1} parent=1 // pred_check
      _
    $region31: #{tpu_custom_call.1} parent=1 // pred_check_branch
      %2522 = sbr.rel target = $region33
    $region32: #{tpu_custom_call.1} parent=1 // pred_region
      %2523 = sst [smem:[#allocation14]] [#allocation17]
      %2524 = sst [smem:[#allocation15]] [#allocation16]
    $region33: #{tpu_custom_call.1} parent=1 // pred_fallthru
      _
    %2526 = shalt.err (0)
    %s2528 = sshll.u32 [#allocation5], 4
    %s2529 = int_to_ptr.vmem [resolvable:$true] %s2528
    %2531 = dma.vmem_to_hbm [thread:$0]  %s2529, 2560, %s9, %s2520
    %s2532 = scalar_lea.sflag [#allocation7], 2
    // Predicated region
    $region34: #{tpu_custom_call.1} parent=1 // pred_check
      _
    $region35: #{tpu_custom_call.1} parent=1 // pred_check_branch
      %2534 = sbr.rel target = $region37
    $region36: #{tpu_custom_call.1} parent=1 // pred_region
      %2535 = sst [smem:[#allocation14]] [#allocation19]
      %2536 = sst [smem:[#allocation15]] [#allocation18]
    $region37: #{tpu_custom_call.1} parent=1 // pred_fallthru
      _
    %2538 = shalt.err (0)
    %s2540 = sshll.u32 [#allocation6], 4
    %s2541 = int_to_ptr.vmem [resolvable:$true] %s2540
    %2543 = dma.vmem_to_hbm [thread:$0]  %s2541, 2560, %s10, %s2532
    %v2544 = vld [vmem:[%s5] sm:$0xff]
    %v2545 = vld [vmem:[%s5 + $0x8] sm:$0xff]
    %v2546 = vld [vmem:[%s5 + $0x10] sm:$0xff]
    %v2547 = vld [vmem:[%s5 + $0x18] sm:$0xff]
    %v2548 = vld [vmem:[%s5 + $0x20] sm:$0xff]
    %v2549 = vld [vmem:[%s5 + $0x28] sm:$0xff]
    %v2550 = vld [vmem:[%s5 + $0x30] sm:$0xff]
    %v2551 = vld [vmem:[%s5 + $0x38] sm:$0xf]
    %v2552 = vld [vmem:[#allocation3 + $0x20] sm:$0xff]
    %v2553 = vld [vmem:[#allocation3 + $0x60] sm:$0xff]
    %v2554 = vld [vmem:[#allocation3 + $0xa0] sm:$0xff]
    %v2555 = vld [vmem:[#allocation3 + $0xe0] sm:$0xff]
    %v2556 = vld [vmem:[#allocation3 + $0x120] sm:$0xff]
    %v2557 = vld [vmem:[#allocation3 + $0x160] sm:$0xff]
    %v2558 = vld [vmem:[#allocation3 + $0x1a0] sm:$0xff]
    %v2559 = vld [vmem:[#allocation3 + $0x1e0] sm:$0xf]
    %v2560 = vpack.c.bf16 %v2553, %v2552
    %v2561 = vpack.c.bf16 %v2555, %v2554
    %v2562 = vpack.c.bf16 %v2557, %v2556
    %v2563 = vpack.c.bf16 %v2559, %v2558
    %v2564 = vld [vmem:[#allocation3 + $0x30] sm:$0xff]
    %v2565 = vld [vmem:[#allocation3 + $0x70] sm:$0xff]
    %v2566 = vld [vmem:[#allocation3 + $0xb0] sm:$0xff]
    %v2567 = vld [vmem:[#allocation3 + $0xf0] sm:$0xff]
    %v2568 = vld [vmem:[#allocation3 + $0x130] sm:$0xff]
    %v2569 = vld [vmem:[#allocation3 + $0x170] sm:$0xff]
    %v2570 = vld [vmem:[#allocation3 + $0x1b0] sm:$0xff]
    %v2571 = vld [vmem:[#allocation3 + $0x1f0] sm:$0xf]
    %v2572 = vpack.c.bf16 %v2565, %v2564
    %v2573 = vpack.c.bf16 %v2567, %v2566
    %v2574 = vpack.c.bf16 %v2569, %v2568
    %v2575 = vpack.c.bf16 %v2571, %v2570
    %v2576 = vld [vmem:[#allocation3] sm:$0xff]
    %v2577 = vld [vmem:[#allocation3 + $0x40] sm:$0xff]
    %v2578 = vld [vmem:[#allocation3 + $0x80] sm:$0xff]
    %v2579 = vld [vmem:[#allocation3 + $0xc0] sm:$0xff]
    %v2580 = vld [vmem:[#allocation3 + $0x100] sm:$0xff]
    %v2581 = vld [vmem:[#allocation3 + $0x140] sm:$0xff]
    %v2582 = vld [vmem:[#allocation3 + $0x180] sm:$0xff]
    %v2583 = vld [vmem:[#allocation3 + $0x1c0] sm:$0xf]
    %v2584 = vmul.f32 %v2576, 0.125
    %v2585 = vmul.f32 %v2577, 0.125
    %v2586 = vmul.f32 %v2578, 0.125
    %v2587 = vmul.f32 %v2579, 0.125
    %v2588 = vmul.f32 %v2580, 0.125
    %v2589 = vmul.f32 %v2581, 0.125
    %v2590 = vmul.f32 %v2582, 0.125
    %v2591 = vmul.f32 %v2583, 0.125
    %v2592 = vpack.c.bf16 %v2585, %v2584
    %v2593 = vpack.c.bf16 %v2587, %v2586
    %v2594 = vpack.c.bf16 %v2589, %v2588
    %v2595 = vpack.c.bf16 %v2591, %v2590
    %vm2596 = vcmask 523264
    %v2598 = vsel %vm2596, %v2592, 0
    %v2601 = vsel %vm2596, %v2593, 0
    %v2604 = vsel %vm2596, %v2594, 0
    %v2607 = vsel %vm2596, %v2595, 0
    %v2610 = vsel %vm2596, %v2560, 0
    %v2613 = vsel %vm2596, %v2561, 0
    %v2616 = vsel %vm2596, %v2562, 0
    %v2619 = vsel %vm2596, %v2563, 0
    %2621 = vmatprep.subr.bf16.mxu0 0
    %2622 = vmatpush1.bf16.xpose.msra.mxu0 0
    %2623 = vmatprep.subr.bf16.mxu0 0
    %2624 = vmatpush1.bf16.xpose.msra.mxu0 0
    %2625 = vmatprep.subr.bf16.mxu0 0
    %2626 = vmatpush1.bf16.xpose.msra.mxu0 0
    %2627 = vmatprep.subr.bf16.mxu0 0
    %2628 = vmatpush1.bf16.xpose.msra.mxu0 0
    %2629 = vmatprep.subr.bf16.mxu0 0
    %2630 = vmatpush1.bf16.xpose.msra.mxu0 %v2619
    %2631 = vmatprep.subr.bf16.mxu0 0
    %2632 = vmatpush1.bf16.xpose.msra.mxu0 %v2616
    %2633 = vmatprep.subr.bf16.mxu0 0
    %2634 = vmatpush1.bf16.xpose.msra.mxu0 %v2613
    %2635 = vmatprep.subr.bf16.mxu0 0
    %2636 = vmatpush1.bf16.xpose.msra.mxu0 %v2610
    %2637 = vmatprep.subr.bf16.mxu0 0
    %2638 = vmatpush2.bf16.xpose.msra.mxu0 0
    %2639 = vmatprep.subr.bf16.mxu0 0
    %2640 = vmatpush2.bf16.xpose.msra.mxu0 0
    %2641 = vmatprep.subr.bf16.mxu0 0
    %2642 = vmatpush2.bf16.xpose.msra.mxu0 0
    %2643 = vmatprep.subr.bf16.mxu0 0
    %2644 = vmatpush2.bf16.xpose.msra.mxu0 0
    %2645 = vmatprep.subr.bf16.mxu0 0
    %2646 = vmatpush2.bf16.xpose.msra.mxu0 0
    %2647 = vmatprep.subr.bf16.mxu0 0
    %2648 = vmatpush2.bf16.xpose.msra.mxu0 0
    %2649 = vmatprep.subr.bf16.mxu0 0
    %2650 = vmatpush2.bf16.xpose.msra.mxu0 0
    %2651 = vmatprep.subr.bf16.mxu0 0
    %2652 = vmatpush2.bf16.xpose.msra.mxu0 0
    %2653 = vmatprep.mubr.bf16.mxu0 0
    %2654 = vmatmul.mubr.bf16.gmra.mxu0 %v2598
    %v2655 = vpop.f32.mrf.mxu0
    %v2656 = vadd.f32 %v2544, %v2655
    %v2657 = vpop.f32.mrf.mxu0
    %v2658 = vpop.f32.mrf.mxu0
    %v2659 = vadd.f32 %v2545, %v2658
    %v2660 = vpop.f32.mrf.mxu0
    %2661 = vmatprep.mubr.bf16.mxu0 0
    %2662 = vmatmul.mubr.bf16.gmra.mxu0 %v2601
    %v2663 = vpop.f32.mrf.mxu0
    %v2664 = vadd.f32 %v2546, %v2663
    %v2665 = vpop.f32.mrf.mxu0
    %v2666 = vpop.f32.mrf.mxu0
    %v2667 = vadd.f32 %v2547, %v2666
    %v2668 = vpop.f32.mrf.mxu0
    %2669 = vmatprep.mubr.bf16.mxu0 0
    %2670 = vmatmul.mubr.bf16.gmra.mxu0 %v2604
    %v2671 = vpop.f32.mrf.mxu0
    %v2672 = vadd.f32 %v2548, %v2671
    %v2673 = vpop.f32.mrf.mxu0
    %v2674 = vpop.f32.mrf.mxu0
    %v2675 = vadd.f32 %v2549, %v2674
    %v2676 = vpop.f32.mrf.mxu0
    %2677 = vmatprep.mubr.bf16.mxu0 0
    %2678 = vmatmul.mubr.bf16.gmra.mxu0 %v2607
    %v2679 = vpop.f32.mrf.mxu0
    %v2680 = vadd.f32 %v2550, %v2679
    %v2681 = vpop.f32.mrf.mxu0
    %v2682 = vpop.f32.mrf.mxu0
    %v2683 = vadd.f32 %v2551, %v2682
    %v2684 = vpop.f32.mrf.mxu0
    %2685 = vdwg.mxu0
    %vm2686 = vcmask 490496
    %v2687 = vsel %vm2686, %v2656, -inf
    %2688 = vmax.xlane.f32.xlu0 %v2687
    %v2689 = vpop.xlane.xlu0 %2688
    %v2690 = vsel %vm2686, %v2659, -inf
    %2691 = vmax.xlane.f32.xlu0 %v2690
    %v2692 = vpop.xlane.xlu0 %2691
    %v2693 = vsel %vm2686, %v2664, -inf
    %2694 = vmax.xlane.f32.xlu0 %v2693
    %v2695 = vpop.xlane.xlu0 %2694
    %v2696 = vsel %vm2686, %v2667, -inf
    %2697 = vmax.xlane.f32.xlu0 %v2696
    %v2698 = vpop.xlane.xlu0 %2697
    %v2699 = vsel %vm2686, %v2672, -inf
    %2700 = vmax.xlane.f32.xlu0 %v2699
    %v2701 = vpop.xlane.xlu0 %2700
    %v2702 = vsel %vm2686, %v2675, -inf
    %2703 = vmax.xlane.f32.xlu0 %v2702
    %v2704 = vpop.xlane.xlu0 %2703
    %v2705 = vsel %vm2686, %v2680, -inf
    %2706 = vmax.xlane.f32.xlu0 %v2705
    %v2707 = vpop.xlane.xlu0 %2706
    %vm2708 = vcmask 486400
    %v2709 = vsel %vm2708, %v2683, -inf
    %2710 = vmax.xlane.f32.xlu0 %v2709
    %v2711 = vpop.xlane.xlu0 %2710
    %v2712 = vsub.f32 %v2656, %v2689
    %v2713 = vsub.f32 %v2659, %v2692
    %v2714 = vsub.f32 %v2664, %v2695
    %v2715 = vsub.f32 %v2667, %v2698
    %v2716 = vsub.f32 %v2672, %v2701
    %v2717 = vsub.f32 %v2675, %v2704
    %v2718 = vsub.f32 %v2680, %v2707
    %v2719 = vsub.f32 %v2683, %v2711
    %v2720 = vmul.f32 %v2712, 1.442695
    %v2721 = vpow.pop %v2720
    %v2722 = vmul.f32 %v2713, 1.442695
    %v2723 = vpow.pop %v2722
    %v2724 = vmul.f32 %v2714, 1.442695
    %v2725 = vpow.pop %v2724
    %v2726 = vmul.f32 %v2715, 1.442695
    %v2727 = vpow.pop %v2726
    %v2728 = vmul.f32 %v2716, 1.442695
    %v2729 = vpow.pop %v2728
    %v2730 = vmul.f32 %v2717, 1.442695
    %v2731 = vpow.pop %v2730
    %v2732 = vmul.f32 %v2718, 1.442695
    %v2733 = vpow.pop %v2732
    %v2734 = vmul.f32 %v2719, 1.442695
    %v2735 = vpow.pop %v2734
    %v2736 = vsel %vm2686, %v2721, 0.0
    %2737 = vadd.xlane.f32.xlu0 %v2736
    %v2738 = vpop.xlane.xlu0 %2737
    %v2739 = vsel %vm2686, %v2723, 0.0
    %2740 = vadd.xlane.f32.xlu0 %v2739
    %v2741 = vpop.xlane.xlu0 %2740
    %v2742 = vsel %vm2686, %v2725, 0.0
    %2743 = vadd.xlane.f32.xlu0 %v2742
    %v2744 = vpop.xlane.xlu0 %2743
    %v2745 = vsel %vm2686, %v2727, 0.0
    %2746 = vadd.xlane.f32.xlu0 %v2745
    %v2747 = vpop.xlane.xlu0 %2746
    %v2748 = vsel %vm2686, %v2729, 0.0
    %2749 = vadd.xlane.f32.xlu0 %v2748
    %v2750 = vpop.xlane.xlu0 %2749
    %v2751 = vsel %vm2686, %v2731, 0.0
    %2752 = vadd.xlane.f32.xlu0 %v2751
    %v2753 = vpop.xlane.xlu0 %2752
    %v2754 = vsel %vm2686, %v2733, 0.0
    %2755 = vadd.xlane.f32.xlu0 %v2754
    %v2756 = vpop.xlane.xlu0 %2755
    %v2757 = vsel %vm2708, %v2735, 0.0
    %2758 = vadd.xlane.f32.xlu0 %v2757
    %v2759 = vpop.xlane.xlu0 %2758
    %v2760 = vpack.c.bf16 %v2723, %v2721
    %v2761 = vpack.c.bf16 %v2727, %v2725
    %v2762 = vpack.c.bf16 %v2731, %v2729
    %v2763 = vpack.c.bf16 %v2735, %v2733
    %v2765 = vsel %vm2686, %v2760, 0
    %v2768 = vsel %vm2686, %v2761, 0
    %v2771 = vsel %vm2686, %v2762, 0
    %v2774 = vsel %vm2686, %v2763, 0
    %vm2776 = vcmask 1045504
    %v2778 = vsel %vm2776, %v2575, 0
    %2780 = vmatprep.subr.bf16.mxu0 0
    %2781 = vmatpush1.bf16.msra.mxu0 0
    %2782 = vmatprep.subr.bf16.mxu0 0
    %2783 = vmatpush1.bf16.msra.mxu0 0
    %2784 = vmatprep.subr.bf16.mxu0 0
    %2785 = vmatpush1.bf16.msra.mxu0 0
    %2786 = vmatprep.subr.bf16.mxu0 0
    %2787 = vmatpush1.bf16.msra.mxu0 0
    %2788 = vmatprep.subr.bf16.mxu0 0
    %2789 = vmatpush1.bf16.msra.mxu0 %v2778
    %2790 = vmatprep.subr.bf16.mxu0 0
    %2791 = vmatpush1.bf16.msra.mxu0 %v2574
    %2792 = vmatprep.subr.bf16.mxu0 0
    %2793 = vmatpush1.bf16.msra.mxu0 %v2573
    %2794 = vmatprep.subr.bf16.mxu0 0
    %2795 = vmatpush1.bf16.msra.mxu0 %v2572
    %2796 = vmatprep.subr.bf16.mxu0 0
    %2797 = vmatpush2.bf16.msra.mxu0 0
    %2798 = vmatprep.subr.bf16.mxu0 0
    %2799 = vmatpush2.bf16.msra.mxu0 0
    %2800 = vmatprep.subr.bf16.mxu0 0
    %2801 = vmatpush2.bf16.msra.mxu0 0
    %2802 = vmatprep.subr.bf16.mxu0 0
    %2803 = vmatpush2.bf16.msra.mxu0 0
    %2804 = vmatprep.subr.bf16.mxu0 0
    %2805 = vmatpush2.bf16.msra.mxu0 0
    %2806 = vmatprep.subr.bf16.mxu0 0
    %2807 = vmatpush2.bf16.msra.mxu0 0
    %2808 = vmatprep.subr.bf16.mxu0 0
    %2809 = vmatpush2.bf16.msra.mxu0 0
    %2810 = vmatprep.subr.bf16.mxu0 0
    %2811 = vmatpush2.bf16.msra.mxu0 0
    %2812 = vmatprep.mubr.bf16.mxu0 0
    %2813 = vmatmul.mubr.bf16.gmra.mxu0 %v2765
    %v2814 = vpop.f32.mrf.mxu0
    %v2815 = vadd.f32 0.0, %v2814
    %v2816 = vpop.f32.mrf.mxu0
    %v2817 = vpop.f32.mrf.mxu0
    %v2818 = vadd.f32 0.0, %v2817
    %v2819 = vpop.f32.mrf.mxu0
    %2820 = vmatprep.mubr.bf16.mxu0 0
    %2821 = vmatmul.mubr.bf16.gmra.mxu0 %v2768
    %v2822 = vpop.f32.mrf.mxu0
    %v2823 = vadd.f32 0.0, %v2822
    %v2824 = vpop.f32.mrf.mxu0
    %v2825 = vpop.f32.mrf.mxu0
    %v2826 = vadd.f32 0.0, %v2825
    %v2827 = vpop.f32.mrf.mxu0
    %2828 = vmatprep.mubr.bf16.mxu0 0
    %2829 = vmatmul.mubr.bf16.gmra.mxu0 %v2771
    %v2830 = vpop.f32.mrf.mxu0
    %v2831 = vadd.f32 0.0, %v2830
    %v2832 = vpop.f32.mrf.mxu0
    %v2833 = vpop.f32.mrf.mxu0
    %v2834 = vadd.f32 0.0, %v2833
    %v2835 = vpop.f32.mrf.mxu0
    %2836 = vmatprep.mubr.bf16.mxu0 0
    %2837 = vmatmul.mubr.bf16.gmra.mxu0 %v2774
    %v2838 = vpop.f32.mrf.mxu0
    %v2839 = vadd.f32 0.0, %v2838
    %v2840 = vpop.f32.mrf.mxu0
    %v2841 = vpop.f32.mrf.mxu0
    %v2842 = vadd.f32 0.0, %v2841
    %v2843 = vpop.f32.mrf.mxu0
    %2844 = vdwg.mxu0
    %v2845 = vrcp.pop %v2738
    %v2846 = vrcp.pop %v2741
    %v2847 = vrcp.pop %v2744
    %v2848 = vrcp.pop %v2747
    %v2849 = vrcp.pop %v2750
    %v2850 = vrcp.pop %v2753
    %v2851 = vrcp.pop %v2756
    %v2852 = vrcp.pop %v2759
    %v2853 = vmul.f32 %v2815, %v2845
    %v2854 = vmul.f32 %v2818, %v2846
    %v2855 = vmul.f32 %v2823, %v2847
    %v2856 = vmul.f32 %v2826, %v2848
    %v2857 = vmul.f32 %v2831, %v2849
    %v2858 = vmul.f32 %v2834, %v2850
    %v2859 = vmul.f32 %v2839, %v2851
    %v2860 = vmul.f32 %v2842, %v2852
    %2865 = vrot.lane.b32.xlu0 %v2592, 64
    %v2866 = vpop.permute.xlu0 %2865
    %2867 = vrot.lane.b32.xlu0 %v2593, 64
    %v2868 = vpop.permute.xlu0 %2867
    %2869 = vrot.lane.b32.xlu0 %v2594, 64
    %v2870 = vpop.permute.xlu0 %2869
    %2871 = vrot.lane.b32.xlu0 %v2595, 64
    %v2872 = vpop.permute.xlu0 %2871
    %v2874 = vsel %vm2596, %v2866, 0
    %v2877 = vsel %vm2596, %v2868, 0
    %v2880 = vsel %vm2596, %v2870, 0
    %v2883 = vsel %vm2596, %v2872, 0
    %2885 = vmatprep.subr.bf16.mxu0 0
    %2886 = vmatpush1.bf16.xpose.msra.mxu0 0
    %2887 = vmatprep.subr.bf16.mxu0 0
    %2888 = vmatpush1.bf16.xpose.msra.mxu0 0
    %2889 = vmatprep.subr.bf16.mxu0 0
    %2890 = vmatpush1.bf16.xpose.msra.mxu0 0
    %2891 = vmatprep.subr.bf16.mxu0 0
    %2892 = vmatpush1.bf16.xpose.msra.mxu0 0
    %2893 = vmatprep.subr.bf16.mxu0 0
    %2894 = vmatpush1.bf16.xpose.msra.mxu0 %v2619
    %2895 = vmatprep.subr.bf16.mxu0 0
    %2896 = vmatpush1.bf16.xpose.msra.mxu0 %v2616
    %2897 = vmatprep.subr.bf16.mxu0 0
    %2898 = vmatpush1.bf16.xpose.msra.mxu0 %v2613
    %2899 = vmatprep.subr.bf16.mxu0 0
    %2900 = vmatpush1.bf16.xpose.msra.mxu0 %v2610
    %2901 = vmatprep.subr.bf16.mxu0 0
    %2902 = vmatpush2.bf16.xpose.msra.mxu0 0
    %2903 = vmatprep.subr.bf16.mxu0 0
    %2904 = vmatpush2.bf16.xpose.msra.mxu0 0
    %2905 = vmatprep.subr.bf16.mxu0 0
    %2906 = vmatpush2.bf16.xpose.msra.mxu0 0
    %2907 = vmatprep.subr.bf16.mxu0 0
    %2908 = vmatpush2.bf16.xpose.msra.mxu0 0
    %2909 = vmatprep.subr.bf16.mxu0 0
    %2910 = vmatpush2.bf16.xpose.msra.mxu0 0
    %2911 = vmatprep.subr.bf16.mxu0 0
    %2912 = vmatpush2.bf16.xpose.msra.mxu0 0
    %2913 = vmatprep.subr.bf16.mxu0 0
    %2914 = vmatpush2.bf16.xpose.msra.mxu0 0
    %2915 = vmatprep.subr.bf16.mxu0 0
    %2916 = vmatpush2.bf16.xpose.msra.mxu0 0
    %2917 = vmatprep.mubr.bf16.mxu0 0
    %2918 = vmatmul.mubr.bf16.gmra.mxu0 %v2874
    %v2919 = vpop.f32.mrf.mxu0
    %v2920 = vadd.f32 %v2544, %v2919
    %v2921 = vpop.f32.mrf.mxu0
    %v2922 = vpop.f32.mrf.mxu0
    %v2923 = vadd.f32 %v2545, %v2922
    %v2924 = vpop.f32.mrf.mxu0
    %2925 = vmatprep.mubr.bf16.mxu0 0
    %2926 = vmatmul.mubr.bf16.gmra.mxu0 %v2877
    %v2927 = vpop.f32.mrf.mxu0
    %v2928 = vadd.f32 %v2546, %v2927
    %v2929 = vpop.f32.mrf.mxu0
    %v2930 = vpop.f32.mrf.mxu0
    %v2931 = vadd.f32 %v2547, %v2930
    %v2932 = vpop.f32.mrf.mxu0
    %2933 = vmatprep.mubr.bf16.mxu0 0
    %2934 = vmatmul.mubr.bf16.gmra.mxu0 %v2880
    %v2935 = vpop.f32.mrf.mxu0
    %v2936 = vadd.f32 %v2548, %v2935
    %v2937 = vpop.f32.mrf.mxu0
    %v2938 = vpop.f32.mrf.mxu0
    %v2939 = vadd.f32 %v2549, %v2938
    %v2940 = vpop.f32.mrf.mxu0
    %2941 = vmatprep.mubr.bf16.mxu0 0
    %2942 = vmatmul.mubr.bf16.gmra.mxu0 %v2883
    %v2943 = vpop.f32.mrf.mxu0
    %v2944 = vadd.f32 %v2550, %v2943
    %v2945 = vpop.f32.mrf.mxu0
    %v2946 = vpop.f32.mrf.mxu0
    %v2947 = vadd.f32 %v2551, %v2946
    %v2948 = vpop.f32.mrf.mxu0
    %2949 = vdwg.mxu0
    %v2950 = vsel %vm2686, %v2920, -inf
    %2951 = vmax.xlane.f32.xlu0 %v2950
    %v2952 = vpop.xlane.xlu0 %2951
    %v2953 = vsel %vm2686, %v2923, -inf
    %2954 = vmax.xlane.f32.xlu0 %v2953
    %v2955 = vpop.xlane.xlu0 %2954
    %v2956 = vsel %vm2686, %v2928, -inf
    %2957 = vmax.xlane.f32.xlu0 %v2956
    %v2958 = vpop.xlane.xlu0 %2957
    %v2959 = vsel %vm2686, %v2931, -inf
    %2960 = vmax.xlane.f32.xlu0 %v2959
    %v2961 = vpop.xlane.xlu0 %2960
    %v2962 = vsel %vm2686, %v2936, -inf
    %2963 = vmax.xlane.f32.xlu0 %v2962
    %v2964 = vpop.xlane.xlu0 %2963
    %v2965 = vsel %vm2686, %v2939, -inf
    %2966 = vmax.xlane.f32.xlu0 %v2965
    %v2967 = vpop.xlane.xlu0 %2966
    %v2968 = vsel %vm2686, %v2944, -inf
    %2969 = vmax.xlane.f32.xlu0 %v2968
    %v2970 = vpop.xlane.xlu0 %2969
    %v2971 = vsel %vm2708, %v2947, -inf
    %2972 = vmax.xlane.f32.xlu0 %v2971
    %v2973 = vpop.xlane.xlu0 %2972
    %v2974 = vsub.f32 %v2920, %v2952
    %v2975 = vsub.f32 %v2923, %v2955
    %v2976 = vsub.f32 %v2928, %v2958
    %v2977 = vsub.f32 %v2931, %v2961
    %v2978 = vsub.f32 %v2936, %v2964
    %v2979 = vsub.f32 %v2939, %v2967
    %v2980 = vsub.f32 %v2944, %v2970
    %v2981 = vsub.f32 %v2947, %v2973
    %v2982 = vmul.f32 %v2974, 1.442695
    %v2983 = vpow.pop %v2982
    %v2984 = vmul.f32 %v2975, 1.442695
    %v2985 = vpow.pop %v2984
    %v2986 = vmul.f32 %v2976, 1.442695
    %v2987 = vpow.pop %v2986
    %v2988 = vmul.f32 %v2977, 1.442695
    %v2989 = vpow.pop %v2988
    %v2990 = vmul.f32 %v2978, 1.442695
    %v2991 = vpow.pop %v2990
    %v2992 = vmul.f32 %v2979, 1.442695
    %v2993 = vpow.pop %v2992
    %v2994 = vmul.f32 %v2980, 1.442695
    %v2995 = vpow.pop %v2994
    %v2996 = vmul.f32 %v2981, 1.442695
    %v2997 = vpow.pop %v2996
    %v2998 = vsel %vm2686, %v2983, 0.0
    %2999 = vadd.xlane.f32.xlu0 %v2998
    %v3000 = vpop.xlane.xlu0 %2999
    %v3001 = vsel %vm2686, %v2985, 0.0
    %3002 = vadd.xlane.f32.xlu0 %v3001
    %v3003 = vpop.xlane.xlu0 %3002
    %v3004 = vsel %vm2686, %v2987, 0.0
    %3005 = vadd.xlane.f32.xlu0 %v3004
    %v3006 = vpop.xlane.xlu0 %3005
    %v3007 = vsel %vm2686, %v2989, 0.0
    %3008 = vadd.xlane.f32.xlu0 %v3007
    %v3009 = vpop.xlane.xlu0 %3008
    %v3010 = vsel %vm2686, %v2991, 0.0
    %3011 = vadd.xlane.f32.xlu0 %v3010
    %v3012 = vpop.xlane.xlu0 %3011
    %v3013 = vsel %vm2686, %v2993, 0.0
    %3014 = vadd.xlane.f32.xlu0 %v3013
    %v3015 = vpop.xlane.xlu0 %3014
    %v3016 = vsel %vm2686, %v2995, 0.0
    %3017 = vadd.xlane.f32.xlu0 %v3016
    %v3018 = vpop.xlane.xlu0 %3017
    %v3019 = vsel %vm2708, %v2997, 0.0
    %3020 = vadd.xlane.f32.xlu0 %v3019
    %v3021 = vpop.xlane.xlu0 %3020
    %v3022 = vpack.c.bf16 %v2985, %v2983
    %v3023 = vpack.c.bf16 %v2989, %v2987
    %v3024 = vpack.c.bf16 %v2993, %v2991
    %v3025 = vpack.c.bf16 %v2997, %v2995
    %v3027 = vsel %vm2686, %v3022, 0
    %v3030 = vsel %vm2686, %v3023, 0
    %v3033 = vsel %vm2686, %v3024, 0
    %v3036 = vsel %vm2686, %v3025, 0
    %3038 = vmatprep.subr.bf16.mxu0 0
    %3039 = vmatpush1.bf16.msra.mxu0 0
    %3040 = vmatprep.subr.bf16.mxu0 0
    %3041 = vmatpush1.bf16.msra.mxu0 0
    %3042 = vmatprep.subr.bf16.mxu0 0
    %3043 = vmatpush1.bf16.msra.mxu0 0
    %3044 = vmatprep.subr.bf16.mxu0 0
    %3045 = vmatpush1.bf16.msra.mxu0 0
    %3046 = vmatprep.subr.bf16.mxu0 0
    %3047 = vmatpush1.bf16.msra.mxu0 %v2778
    %3048 = vmatprep.subr.bf16.mxu0 0
    %3049 = vmatpush1.bf16.msra.mxu0 %v2574
    %3050 = vmatprep.subr.bf16.mxu0 0
    %3051 = vmatpush1.bf16.msra.mxu0 %v2573
    %3052 = vmatprep.subr.bf16.mxu0 0
    %3053 = vmatpush1.bf16.msra.mxu0 %v2572
    %3054 = vmatprep.subr.bf16.mxu0 0
    %3055 = vmatpush2.bf16.msra.mxu0 0
    %3056 = vmatprep.subr.bf16.mxu0 0
    %3057 = vmatpush2.bf16.msra.mxu0 0
    %3058 = vmatprep.subr.bf16.mxu0 0
    %3059 = vmatpush2.bf16.msra.mxu0 0
    %3060 = vmatprep.subr.bf16.mxu0 0
    %3061 = vmatpush2.bf16.msra.mxu0 0
    %3062 = vmatprep.subr.bf16.mxu0 0
    %3063 = vmatpush2.bf16.msra.mxu0 0
    %3064 = vmatprep.subr.bf16.mxu0 0
    %3065 = vmatpush2.bf16.msra.mxu0 0
    %3066 = vmatprep.subr.bf16.mxu0 0
    %3067 = vmatpush2.bf16.msra.mxu0 0
    %3068 = vmatprep.subr.bf16.mxu0 0
    %3069 = vmatpush2.bf16.msra.mxu0 0
    %3070 = vmatprep.mubr.bf16.mxu0 0
    %3071 = vmatmul.mubr.bf16.gmra.mxu0 %v3027
    %v3072 = vpop.f32.mrf.mxu0
    %v3073 = vadd.f32 0.0, %v3072
    %v3074 = vpop.f32.mrf.mxu0
    %v3075 = vpop.f32.mrf.mxu0
    %v3076 = vadd.f32 0.0, %v3075
    %v3077 = vpop.f32.mrf.mxu0
    %3078 = vmatprep.mubr.bf16.mxu0 0
    %3079 = vmatmul.mubr.bf16.gmra.mxu0 %v3030
    %v3080 = vpop.f32.mrf.mxu0
    %v3081 = vadd.f32 0.0, %v3080
    %v3082 = vpop.f32.mrf.mxu0
    %v3083 = vpop.f32.mrf.mxu0
    %v3084 = vadd.f32 0.0, %v3083
    %v3085 = vpop.f32.mrf.mxu0
    %3086 = vmatprep.mubr.bf16.mxu0 0
    %3087 = vmatmul.mubr.bf16.gmra.mxu0 %v3033
    %v3088 = vpop.f32.mrf.mxu0
    %v3089 = vadd.f32 0.0, %v3088
    %v3090 = vpop.f32.mrf.mxu0
    %v3091 = vpop.f32.mrf.mxu0
    %v3092 = vadd.f32 0.0, %v3091
    %v3093 = vpop.f32.mrf.mxu0
    %3094 = vmatprep.mubr.bf16.mxu0 0
    %3095 = vmatmul.mubr.bf16.gmra.mxu0 %v3036
    %v3096 = vpop.f32.mrf.mxu0
    %v3097 = vadd.f32 0.0, %v3096
    %v3098 = vpop.f32.mrf.mxu0
    %v3099 = vpop.f32.mrf.mxu0
    %v3100 = vadd.f32 0.0, %v3099
    %v3101 = vpop.f32.mrf.mxu0
    %3102 = vdwg.mxu0
    %v3103 = vrcp.pop %v3000
    %v3104 = vrcp.pop %v3003
    %v3105 = vrcp.pop %v3006
    %v3106 = vrcp.pop %v3009
    %v3107 = vrcp.pop %v3012
    %v3108 = vrcp.pop %v3015
    %v3109 = vrcp.pop %v3018
    %v3110 = vrcp.pop %v3021
    %v3111 = vmul.f32 %v3073, %v3103
    %v3112 = vmul.f32 %v3076, %v3104
    %v3113 = vmul.f32 %v3081, %v3105
    %v3114 = vmul.f32 %v3084, %v3106
    %v3115 = vmul.f32 %v3089, %v3107
    %v3116 = vmul.f32 %v3092, %v3108
    %v3117 = vmul.f32 %v3097, %v3109
    %v3118 = vmul.f32 %v3100, %v3110
    %3127 = vrot.lane.b32.xlu0 %v3111, 64
    %v3128 = vpop.permute.xlu0 %3127
    %3129 = vrot.lane.b32.xlu0 %v3112, 64
    %v3130 = vpop.permute.xlu0 %3129
    %3131 = vrot.lane.b32.xlu0 %v3113, 64
    %v3132 = vpop.permute.xlu0 %3131
    %3133 = vrot.lane.b32.xlu0 %v3114, 64
    %v3134 = vpop.permute.xlu0 %3133
    %3135 = vrot.lane.b32.xlu0 %v3115, 64
    %v3136 = vpop.permute.xlu0 %3135
    %3137 = vrot.lane.b32.xlu0 %v3116, 64
    %v3138 = vpop.permute.xlu0 %3137
    %3139 = vrot.lane.b32.xlu0 %v3117, 64
    %v3140 = vpop.permute.xlu0 %3139
    %3141 = vrot.lane.b32.xlu0 %v3118, 64
    %v3142 = vpop.permute.xlu0 %3141
    %v3151 = vsel %vm2596, %v2853, %v3128
    %v3152 = vsel %vm2596, %v2854, %v3130
    %v3153 = vsel %vm2596, %v2855, %v3132
    %v3154 = vsel %vm2596, %v2856, %v3134
    %v3155 = vsel %vm2596, %v2857, %v3136
    %v3156 = vsel %vm2596, %v2858, %v3138
    %v3157 = vsel %vm2596, %v2859, %v3140
    %v3158 = vsel %vm2596, %v2860, %v3142
    %3159 = vst [vmem:[#allocation4] sm:$0xff] %v3151
    %3160 = vst [vmem:[#allocation4 + $0x20] sm:$0xff] %v3152
    %3161 = vst [vmem:[#allocation4 + $0x40] sm:$0xff] %v3153
    %3162 = vst [vmem:[#allocation4 + $0x60] sm:$0xff] %v3154
    %3163 = vst [vmem:[#allocation4 + $0x80] sm:$0xff] %v3155
    %3164 = vst [vmem:[#allocation4 + $0xa0] sm:$0xff] %v3156
    %3165 = vst [vmem:[#allocation4 + $0xc0] sm:$0xff] %v3157
    %3166 = vst [vmem:[#allocation4 + $0xe0] sm:$0xf] %v3158
    %v3167 = vld [vmem:[#allocation3 + $0x20] sm:$0xff]
    %v3168 = vld [vmem:[#allocation3 + $0x60] sm:$0xff]
    %v3169 = vld [vmem:[#allocation3 + $0xa0] sm:$0xff]
    %v3170 = vld [vmem:[#allocation3 + $0xe0] sm:$0xff]
    %v3171 = vld [vmem:[#allocation3 + $0x120] sm:$0xff]
    %v3172 = vld [vmem:[#allocation3 + $0x160] sm:$0xff]
    %v3173 = vld [vmem:[#allocation3 + $0x1a0] sm:$0xff]
    %v3174 = vld [vmem:[#allocation3 + $0x1e0] sm:$0xf]
    %v3175 = vpack.c.bf16 %v3168, %v3167
    %v3176 = vpack.c.bf16 %v3170, %v3169
    %v3177 = vpack.c.bf16 %v3172, %v3171
    %v3178 = vpack.c.bf16 %v3174, %v3173
    %v3179 = vld [vmem:[#allocation3 + $0x30] sm:$0xff]
    %v3180 = vld [vmem:[#allocation3 + $0x70] sm:$0xff]
    %v3181 = vld [vmem:[#allocation3 + $0xb0] sm:$0xff]
    %v3182 = vld [vmem:[#allocation3 + $0xf0] sm:$0xff]
    %v3183 = vld [vmem:[#allocation3 + $0x130] sm:$0xff]
    %v3184 = vld [vmem:[#allocation3 + $0x170] sm:$0xff]
    %v3185 = vld [vmem:[#allocation3 + $0x1b0] sm:$0xff]
    %v3186 = vld [vmem:[#allocation3 + $0x1f0] sm:$0xf]
    %v3187 = vpack.c.bf16 %v3180, %v3179
    %v3188 = vpack.c.bf16 %v3182, %v3181
    %v3189 = vpack.c.bf16 %v3184, %v3183
    %v3190 = vpack.c.bf16 %v3186, %v3185
    %v3191 = vld [vmem:[#allocation3 + $0x8] sm:$0xff]
    %v3192 = vld [vmem:[#allocation3 + $0x48] sm:$0xff]
    %v3193 = vld [vmem:[#allocation3 + $0x88] sm:$0xff]
    %v3194 = vld [vmem:[#allocation3 + $0xc8] sm:$0xff]
    %v3195 = vld [vmem:[#allocation3 + $0x108] sm:$0xff]
    %v3196 = vld [vmem:[#allocation3 + $0x148] sm:$0xff]
    %v3197 = vld [vmem:[#allocation3 + $0x188] sm:$0xff]
    %v3198 = vld [vmem:[#allocation3 + $0x1c8] sm:$0xf]
    %v3199 = vmul.f32 %v3191, 0.125
    %v3200 = vmul.f32 %v3192, 0.125
    %v3201 = vmul.f32 %v3193, 0.125
    %v3202 = vmul.f32 %v3194, 0.125
    %v3203 = vmul.f32 %v3195, 0.125
    %v3204 = vmul.f32 %v3196, 0.125
    %v3205 = vmul.f32 %v3197, 0.125
    %v3206 = vmul.f32 %v3198, 0.125
    %v3207 = vpack.c.bf16 %v3200, %v3199
    %v3208 = vpack.c.bf16 %v3202, %v3201
    %v3209 = vpack.c.bf16 %v3204, %v3203
    %v3210 = vpack.c.bf16 %v3206, %v3205
    %3215 = vrot.lane.b32.xlu0 %v3175, 64
    %v3216 = vpop.permute.xlu0 %3215
    %3217 = vrot.lane.b32.xlu0 %v3176, 64
    %v3218 = vpop.permute.xlu0 %3217
    %3219 = vrot.lane.b32.xlu0 %v3177, 64
    %v3220 = vpop.permute.xlu0 %3219
    %3221 = vrot.lane.b32.xlu0 %v3178, 64
    %v3222 = vpop.permute.xlu0 %3221
    %v3224 = vsel %vm2596, %v3207, 0
    %v3227 = vsel %vm2596, %v3208, 0
    %v3230 = vsel %vm2596, %v3209, 0
    %v3233 = vsel %vm2596, %v3210, 0
    %v3236 = vsel %vm2596, %v3216, 0
    %v3239 = vsel %vm2596, %v3218, 0
    %v3242 = vsel %vm2596, %v3220, 0
    %v3245 = vsel %vm2596, %v3222, 0
    %3247 = vmatprep.subr.bf16.mxu0 0
    %3248 = vmatpush1.bf16.xpose.msra.mxu0 0
    %3249 = vmatprep.subr.bf16.mxu0 0
    %3250 = vmatpush1.bf16.xpose.msra.mxu0 0
    %3251 = vmatprep.subr.bf16.mxu0 0
    %3252 = vmatpush1.bf16.xpose.msra.mxu0 0
    %3253 = vmatprep.subr.bf16.mxu0 0
    %3254 = vmatpush1.bf16.xpose.msra.mxu0 0
    %3255 = vmatprep.subr.bf16.mxu0 0
    %3256 = vmatpush1.bf16.xpose.msra.mxu0 %v3245
    %3257 = vmatprep.subr.bf16.mxu0 0
    %3258 = vmatpush1.bf16.xpose.msra.mxu0 %v3242
    %3259 = vmatprep.subr.bf16.mxu0 0
    %3260 = vmatpush1.bf16.xpose.msra.mxu0 %v3239
    %3261 = vmatprep.subr.bf16.mxu0 0
    %3262 = vmatpush1.bf16.xpose.msra.mxu0 %v3236
    %3263 = vmatprep.subr.bf16.mxu0 0
    %3264 = vmatpush2.bf16.xpose.msra.mxu0 0
    %3265 = vmatprep.subr.bf16.mxu0 0
    %3266 = vmatpush2.bf16.xpose.msra.mxu0 0
    %3267 = vmatprep.subr.bf16.mxu0 0
    %3268 = vmatpush2.bf16.xpose.msra.mxu0 0
    %3269 = vmatprep.subr.bf16.mxu0 0
    %3270 = vmatpush2.bf16.xpose.msra.mxu0 0
    %3271 = vmatprep.subr.bf16.mxu0 0
    %3272 = vmatpush2.bf16.xpose.msra.mxu0 0
    %3273 = vmatprep.subr.bf16.mxu0 0
    %3274 = vmatpush2.bf16.xpose.msra.mxu0 0
    %3275 = vmatprep.subr.bf16.mxu0 0
    %3276 = vmatpush2.bf16.xpose.msra.mxu0 0
    %3277 = vmatprep.subr.bf16.mxu0 0
    %3278 = vmatpush2.bf16.xpose.msra.mxu0 0
    %3279 = vmatprep.mubr.bf16.mxu0 0
    %3280 = vmatmul.mubr.bf16.gmra.mxu0 %v3224
    %v3281 = vpop.f32.mrf.mxu0
    %v3282 = vadd.f32 %v2544, %v3281
    %v3283 = vpop.f32.mrf.mxu0
    %v3284 = vpop.f32.mrf.mxu0
    %v3285 = vadd.f32 %v2545, %v3284
    %v3286 = vpop.f32.mrf.mxu0
    %3287 = vmatprep.mubr.bf16.mxu0 0
    %3288 = vmatmul.mubr.bf16.gmra.mxu0 %v3227
    %v3289 = vpop.f32.mrf.mxu0
    %v3290 = vadd.f32 %v2546, %v3289
    %v3291 = vpop.f32.mrf.mxu0
    %v3292 = vpop.f32.mrf.mxu0
    %v3293 = vadd.f32 %v2547, %v3292
    %v3294 = vpop.f32.mrf.mxu0
    %3295 = vmatprep.mubr.bf16.mxu0 0
    %3296 = vmatmul.mubr.bf16.gmra.mxu0 %v3230
    %v3297 = vpop.f32.mrf.mxu0
    %v3298 = vadd.f32 %v2548, %v3297
    %v3299 = vpop.f32.mrf.mxu0
    %v3300 = vpop.f32.mrf.mxu0
    %v3301 = vadd.f32 %v2549, %v3300
    %v3302 = vpop.f32.mrf.mxu0
    %3303 = vmatprep.mubr.bf16.mxu0 0
    %3304 = vmatmul.mubr.bf16.gmra.mxu0 %v3233
    %v3305 = vpop.f32.mrf.mxu0
    %v3306 = vadd.f32 %v2550, %v3305
    %v3307 = vpop.f32.mrf.mxu0
    %v3308 = vpop.f32.mrf.mxu0
    %v3309 = vadd.f32 %v2551, %v3308
    %v3310 = vpop.f32.mrf.mxu0
    %3311 = vdwg.mxu0
    %v3312 = vsel %vm2686, %v3282, -inf
    %3313 = vmax.xlane.f32.xlu0 %v3312
    %v3314 = vpop.xlane.xlu0 %3313
    %v3315 = vsel %vm2686, %v3285, -inf
    %3316 = vmax.xlane.f32.xlu0 %v3315
    %v3317 = vpop.xlane.xlu0 %3316
    %v3318 = vsel %vm2686, %v3290, -inf
    %3319 = vmax.xlane.f32.xlu0 %v3318
    %v3320 = vpop.xlane.xlu0 %3319
    %v3321 = vsel %vm2686, %v3293, -inf
    %3322 = vmax.xlane.f32.xlu0 %v3321
    %v3323 = vpop.xlane.xlu0 %3322
    %v3324 = vsel %vm2686, %v3298, -inf
    %3325 = vmax.xlane.f32.xlu0 %v3324
    %v3326 = vpop.xlane.xlu0 %3325
    %v3327 = vsel %vm2686, %v3301, -inf
    %3328 = vmax.xlane.f32.xlu0 %v3327
    %v3329 = vpop.xlane.xlu0 %3328
    %v3330 = vsel %vm2686, %v3306, -inf
    %3331 = vmax.xlane.f32.xlu0 %v3330
    %v3332 = vpop.xlane.xlu0 %3331
    %v3333 = vsel %vm2708, %v3309, -inf
    %3334 = vmax.xlane.f32.xlu0 %v3333
    %v3335 = vpop.xlane.xlu0 %3334
    %v3336 = vsub.f32 %v3282, %v3314
    %v3337 = vsub.f32 %v3285, %v3317
    %v3338 = vsub.f32 %v3290, %v3320
    %v3339 = vsub.f32 %v3293, %v3323
    %v3340 = vsub.f32 %v3298, %v3326
    %v3341 = vsub.f32 %v3301, %v3329
    %v3342 = vsub.f32 %v3306, %v3332
    %v3343 = vsub.f32 %v3309, %v3335
    %v3344 = vmul.f32 %v3336, 1.442695
    %v3345 = vpow.pop %v3344
    %v3346 = vmul.f32 %v3337, 1.442695
    %v3347 = vpow.pop %v3346
    %v3348 = vmul.f32 %v3338, 1.442695
    %v3349 = vpow.pop %v3348
    %v3350 = vmul.f32 %v3339, 1.442695
    %v3351 = vpow.pop %v3350
    %v3352 = vmul.f32 %v3340, 1.442695
    %v3353 = vpow.pop %v3352
    %v3354 = vmul.f32 %v3341, 1.442695
    %v3355 = vpow.pop %v3354
    %v3356 = vmul.f32 %v3342, 1.442695
    %v3357 = vpow.pop %v3356
    %v3358 = vmul.f32 %v3343, 1.442695
    %v3359 = vpow.pop %v3358
    %v3360 = vsel %vm2686, %v3345, 0.0
    %3361 = vadd.xlane.f32.xlu0 %v3360
    %v3362 = vpop.xlane.xlu0 %3361
    %v3363 = vsel %vm2686, %v3347, 0.0
    %3364 = vadd.xlane.f32.xlu0 %v3363
    %v3365 = vpop.xlane.xlu0 %3364
    %v3366 = vsel %vm2686, %v3349, 0.0
    %3367 = vadd.xlane.f32.xlu0 %v3366
    %v3368 = vpop.xlane.xlu0 %3367
    %v3369 = vsel %vm2686, %v3351, 0.0
    %3370 = vadd.xlane.f32.xlu0 %v3369
    %v3371 = vpop.xlane.xlu0 %3370
    %v3372 = vsel %vm2686, %v3353, 0.0
    %3373 = vadd.xlane.f32.xlu0 %v3372
    %v3374 = vpop.xlane.xlu0 %3373
    %v3375 = vsel %vm2686, %v3355, 0.0
    %3376 = vadd.xlane.f32.xlu0 %v3375
    %v3377 = vpop.xlane.xlu0 %3376
    %v3378 = vsel %vm2686, %v3357, 0.0
    %3379 = vadd.xlane.f32.xlu0 %v3378
    %v3380 = vpop.xlane.xlu0 %3379
    %v3381 = vsel %vm2708, %v3359, 0.0
    %3382 = vadd.xlane.f32.xlu0 %v3381
    %v3383 = vpop.xlane.xlu0 %3382
    %v3384 = vpack.c.bf16 %v3347, %v3345
    %v3385 = vpack.c.bf16 %v3351, %v3349
    %v3386 = vpack.c.bf16 %v3355, %v3353
    %v3387 = vpack.c.bf16 %v3359, %v3357
    %3392 = vrot.lane.b32.xlu0 %v3187, 64
    %v3393 = vpop.permute.xlu0 %3392
    %3394 = vrot.lane.b32.xlu0 %v3188, 64
    %v3395 = vpop.permute.xlu0 %3394
    %3396 = vrot.lane.b32.xlu0 %v3189, 64
    %v3397 = vpop.permute.xlu0 %3396
    %3398 = vrot.lane.b32.xlu0 %v3190, 64
    %v3399 = vpop.permute.xlu0 %3398
    %v3404 = vsel %vm2686, %v3384, 0
    %v3407 = vsel %vm2686, %v3385, 0
    %v3410 = vsel %vm2686, %v3386, 0
    %v3413 = vsel %vm2686, %v3387, 0
    %v3416 = vsel %vm2776, %v3399, 0
    %3418 = vmatprep.subr.bf16.mxu0 0
    %3419 = vmatpush1.bf16.msra.mxu0 0
    %3420 = vmatprep.subr.bf16.mxu0 0
    %3421 = vmatpush1.bf16.msra.mxu0 0
    %3422 = vmatprep.subr.bf16.mxu0 0
    %3423 = vmatpush1.bf16.msra.mxu0 0
    %3424 = vmatprep.subr.bf16.mxu0 0
    %3425 = vmatpush1.bf16.msra.mxu0 0
    %3426 = vmatprep.subr.bf16.mxu0 0
    %3427 = vmatpush1.bf16.msra.mxu0 %v3416
    %3428 = vmatprep.subr.bf16.mxu0 0
    %3429 = vmatpush1.bf16.msra.mxu0 %v3397
    %3430 = vmatprep.subr.bf16.mxu0 0
    %3431 = vmatpush1.bf16.msra.mxu0 %v3395
    %3432 = vmatprep.subr.bf16.mxu0 0
    %3433 = vmatpush1.bf16.msra.mxu0 %v3393
    %3434 = vmatprep.subr.bf16.mxu0 0
    %3435 = vmatpush2.bf16.msra.mxu0 0
    %3436 = vmatprep.subr.bf16.mxu0 0
    %3437 = vmatpush2.bf16.msra.mxu0 0
    %3438 = vmatprep.subr.bf16.mxu0 0
    %3439 = vmatpush2.bf16.msra.mxu0 0
    %3440 = vmatprep.subr.bf16.mxu0 0
    %3441 = vmatpush2.bf16.msra.mxu0 0
    %3442 = vmatprep.subr.bf16.mxu0 0
    %3443 = vmatpush2.bf16.msra.mxu0 0
    %3444 = vmatprep.subr.bf16.mxu0 0
    %3445 = vmatpush2.bf16.msra.mxu0 0
    %3446 = vmatprep.subr.bf16.mxu0 0
    %3447 = vmatpush2.bf16.msra.mxu0 0
    %3448 = vmatprep.subr.bf16.mxu0 0
    %3449 = vmatpush2.bf16.msra.mxu0 0
    %3450 = vmatprep.mubr.bf16.mxu0 0
    %3451 = vmatmul.mubr.bf16.gmra.mxu0 %v3404
    %v3452 = vpop.f32.mrf.mxu0
    %v3453 = vadd.f32 0.0, %v3452
    %v3454 = vpop.f32.mrf.mxu0
    %v3455 = vpop.f32.mrf.mxu0
    %v3456 = vadd.f32 0.0, %v3455
    %v3457 = vpop.f32.mrf.mxu0
    %3458 = vmatprep.mubr.bf16.mxu0 0
    %3459 = vmatmul.mubr.bf16.gmra.mxu0 %v3407
    %v3460 = vpop.f32.mrf.mxu0
    %v3461 = vadd.f32 0.0, %v3460
    %v3462 = vpop.f32.mrf.mxu0
    %v3463 = vpop.f32.mrf.mxu0
    %v3464 = vadd.f32 0.0, %v3463
    %v3465 = vpop.f32.mrf.mxu0
    %3466 = vmatprep.mubr.bf16.mxu0 0
    %3467 = vmatmul.mubr.bf16.gmra.mxu0 %v3410
    %v3468 = vpop.f32.mrf.mxu0
    %v3469 = vadd.f32 0.0, %v3468
    %v3470 = vpop.f32.mrf.mxu0
    %v3471 = vpop.f32.mrf.mxu0
    %v3472 = vadd.f32 0.0, %v3471
    %v3473 = vpop.f32.mrf.mxu0
    %3474 = vmatprep.mubr.bf16.mxu0 0
    %3475 = vmatmul.mubr.bf16.gmra.mxu0 %v3413
    %v3476 = vpop.f32.mrf.mxu0
    %v3477 = vadd.f32 0.0, %v3476
    %v3478 = vpop.f32.mrf.mxu0
    %v3479 = vpop.f32.mrf.mxu0
    %v3480 = vadd.f32 0.0, %v3479
    %v3481 = vpop.f32.mrf.mxu0
    %3482 = vdwg.mxu0
    %v3483 = vrcp.pop %v3362
    %v3484 = vrcp.pop %v3365
    %v3485 = vrcp.pop %v3368
    %v3486 = vrcp.pop %v3371
    %v3487 = vrcp.pop %v3374
    %v3488 = vrcp.pop %v3377
    %v3489 = vrcp.pop %v3380
    %v3490 = vrcp.pop %v3383
    %v3491 = vmul.f32 %v3453, %v3483
    %v3492 = vmul.f32 %v3456, %v3484
    %v3493 = vmul.f32 %v3461, %v3485
    %v3494 = vmul.f32 %v3464, %v3486
    %v3495 = vmul.f32 %v3469, %v3487
    %v3496 = vmul.f32 %v3472, %v3488
    %v3497 = vmul.f32 %v3477, %v3489
    %v3498 = vmul.f32 %v3480, %v3490
    %3503 = vrot.lane.b32.xlu0 %v3207, 64
    %v3504 = vpop.permute.xlu0 %3503
    %3505 = vrot.lane.b32.xlu0 %v3208, 64
    %v3506 = vpop.permute.xlu0 %3505
    %3507 = vrot.lane.b32.xlu0 %v3209, 64
    %v3508 = vpop.permute.xlu0 %3507
    %3509 = vrot.lane.b32.xlu0 %v3210, 64
    %v3510 = vpop.permute.xlu0 %3509
    %v3512 = vsel %vm2596, %v3504, 0
    %v3515 = vsel %vm2596, %v3506, 0
    %v3518 = vsel %vm2596, %v3508, 0
    %v3521 = vsel %vm2596, %v3510, 0
    %3523 = vmatprep.subr.bf16.mxu0 0
    %3524 = vmatpush1.bf16.xpose.msra.mxu0 0
    %3525 = vmatprep.subr.bf16.mxu0 0
    %3526 = vmatpush1.bf16.xpose.msra.mxu0 0
    %3527 = vmatprep.subr.bf16.mxu0 0
    %3528 = vmatpush1.bf16.xpose.msra.mxu0 0
    %3529 = vmatprep.subr.bf16.mxu0 0
    %3530 = vmatpush1.bf16.xpose.msra.mxu0 0
    %3531 = vmatprep.subr.bf16.mxu0 0
    %3532 = vmatpush1.bf16.xpose.msra.mxu0 %v3245
    %3533 = vmatprep.subr.bf16.mxu0 0
    %3534 = vmatpush1.bf16.xpose.msra.mxu0 %v3242
    %3535 = vmatprep.subr.bf16.mxu0 0
    %3536 = vmatpush1.bf16.xpose.msra.mxu0 %v3239
    %3537 = vmatprep.subr.bf16.mxu0 0
    %3538 = vmatpush1.bf16.xpose.msra.mxu0 %v3236
    %3539 = vmatprep.subr.bf16.mxu0 0
    %3540 = vmatpush2.bf16.xpose.msra.mxu0 0
    %3541 = vmatprep.subr.bf16.mxu0 0
    %3542 = vmatpush2.bf16.xpose.msra.mxu0 0
    %3543 = vmatprep.subr.bf16.mxu0 0
    %3544 = vmatpush2.bf16.xpose.msra.mxu0 0
    %3545 = vmatprep.subr.bf16.mxu0 0
    %3546 = vmatpush2.bf16.xpose.msra.mxu0 0
    %3547 = vmatprep.subr.bf16.mxu0 0
    %3548 = vmatpush2.bf16.xpose.msra.mxu0 0
    %3549 = vmatprep.subr.bf16.mxu0 0
    %3550 = vmatpush2.bf16.xpose.msra.mxu0 0
    %3551 = vmatprep.subr.bf16.mxu0 0
    %3552 = vmatpush2.bf16.xpose.msra.mxu0 0
    %3553 = vmatprep.subr.bf16.mxu0 0
    %3554 = vmatpush2.bf16.xpose.msra.mxu0 0
    %3555 = vmatprep.mubr.bf16.mxu0 0
    %3556 = vmatmul.mubr.bf16.gmra.mxu0 %v3512
    %v3557 = vpop.f32.mrf.mxu0
    %v3558 = vadd.f32 %v2544, %v3557
    %v3559 = vpop.f32.mrf.mxu0
    %v3560 = vpop.f32.mrf.mxu0
    %v3561 = vadd.f32 %v2545, %v3560
    %v3562 = vpop.f32.mrf.mxu0
    %3563 = vmatprep.mubr.bf16.mxu0 0
    %3564 = vmatmul.mubr.bf16.gmra.mxu0 %v3515
    %v3565 = vpop.f32.mrf.mxu0
    %v3566 = vadd.f32 %v2546, %v3565
    %v3567 = vpop.f32.mrf.mxu0
    %v3568 = vpop.f32.mrf.mxu0
    %v3569 = vadd.f32 %v2547, %v3568
    %v3570 = vpop.f32.mrf.mxu0
    %3571 = vmatprep.mubr.bf16.mxu0 0
    %3572 = vmatmul.mubr.bf16.gmra.mxu0 %v3518
    %v3573 = vpop.f32.mrf.mxu0
    %v3574 = vadd.f32 %v2548, %v3573
    %v3575 = vpop.f32.mrf.mxu0
    %v3576 = vpop.f32.mrf.mxu0
    %v3577 = vadd.f32 %v2549, %v3576
    %v3578 = vpop.f32.mrf.mxu0
    %3579 = vmatprep.mubr.bf16.mxu0 0
    %3580 = vmatmul.mubr.bf16.gmra.mxu0 %v3521
    %v3581 = vpop.f32.mrf.mxu0
    %v3582 = vadd.f32 %v2550, %v3581
    %v3583 = vpop.f32.mrf.mxu0
    %v3584 = vpop.f32.mrf.mxu0
    %v3585 = vadd.f32 %v2551, %v3584
    %v3586 = vpop.f32.mrf.mxu0
    %3587 = vdwg.mxu0
    %v3588 = vsel %vm2686, %v3558, -inf
    %3589 = vmax.xlane.f32.xlu0 %v3588
    %v3590 = vpop.xlane.xlu0 %3589
    %v3591 = vsel %vm2686, %v3561, -inf
    %3592 = vmax.xlane.f32.xlu0 %v3591
    %v3593 = vpop.xlane.xlu0 %3592
    %v3594 = vsel %vm2686, %v3566, -inf
    %3595 = vmax.xlane.f32.xlu0 %v3594
    %v3596 = vpop.xlane.xlu0 %3595
    %v3597 = vsel %vm2686, %v3569, -inf
    %3598 = vmax.xlane.f32.xlu0 %v3597
    %v3599 = vpop.xlane.xlu0 %3598
    %v3600 = vsel %vm2686, %v3574, -inf
    %3601 = vmax.xlane.f32.xlu0 %v3600
    %v3602 = vpop.xlane.xlu0 %3601
    %v3603 = vsel %vm2686, %v3577, -inf
    %3604 = vmax.xlane.f32.xlu0 %v3603
    %v3605 = vpop.xlane.xlu0 %3604
    %v3606 = vsel %vm2686, %v3582, -inf
    %3607 = vmax.xlane.f32.xlu0 %v3606
    %v3608 = vpop.xlane.xlu0 %3607
    %v3609 = vsel %vm2708, %v3585, -inf
    %3610 = vmax.xlane.f32.xlu0 %v3609
    %v3611 = vpop.xlane.xlu0 %3610
    %v3612 = vsub.f32 %v3558, %v3590
    %v3613 = vsub.f32 %v3561, %v3593
    %v3614 = vsub.f32 %v3566, %v3596
    %v3615 = vsub.f32 %v3569, %v3599
    %v3616 = vsub.f32 %v3574, %v3602
    %v3617 = vsub.f32 %v3577, %v3605
    %v3618 = vsub.f32 %v3582, %v3608
    %v3619 = vsub.f32 %v3585, %v3611
    %v3620 = vmul.f32 %v3612, 1.442695
    %v3621 = vpow.pop %v3620
    %v3622 = vmul.f32 %v3613, 1.442695
    %v3623 = vpow.pop %v3622
    %v3624 = vmul.f32 %v3614, 1.442695
    %v3625 = vpow.pop %v3624
    %v3626 = vmul.f32 %v3615, 1.442695
    %v3627 = vpow.pop %v3626
    %v3628 = vmul.f32 %v3616, 1.442695
    %v3629 = vpow.pop %v3628
    %v3630 = vmul.f32 %v3617, 1.442695
    %v3631 = vpow.pop %v3630
    %v3632 = vmul.f32 %v3618, 1.442695
    %v3633 = vpow.pop %v3632
    %v3634 = vmul.f32 %v3619, 1.442695
    %v3635 = vpow.pop %v3634
    %v3636 = vsel %vm2686, %v3621, 0.0
    %3637 = vadd.xlane.f32.xlu0 %v3636
    %v3638 = vpop.xlane.xlu0 %3637
    %v3639 = vsel %vm2686, %v3623, 0.0
    %3640 = vadd.xlane.f32.xlu0 %v3639
    %v3641 = vpop.xlane.xlu0 %3640
    %v3642 = vsel %vm2686, %v3625, 0.0
    %3643 = vadd.xlane.f32.xlu0 %v3642
    %v3644 = vpop.xlane.xlu0 %3643
    %v3645 = vsel %vm2686, %v3627, 0.0
    %3646 = vadd.xlane.f32.xlu0 %v3645
    %v3647 = vpop.xlane.xlu0 %3646
    %v3648 = vsel %vm2686, %v3629, 0.0
    %3649 = vadd.xlane.f32.xlu0 %v3648
    %v3650 = vpop.xlane.xlu0 %3649
    %v3651 = vsel %vm2686, %v3631, 0.0
    %3652 = vadd.xlane.f32.xlu0 %v3651
    %v3653 = vpop.xlane.xlu0 %3652
    %v3654 = vsel %vm2686, %v3633, 0.0
    %3655 = vadd.xlane.f32.xlu0 %v3654
    %v3656 = vpop.xlane.xlu0 %3655
    %v3657 = vsel %vm2708, %v3635, 0.0
    %3658 = vadd.xlane.f32.xlu0 %v3657
    %v3659 = vpop.xlane.xlu0 %3658
    %v3660 = vpack.c.bf16 %v3623, %v3621
    %v3661 = vpack.c.bf16 %v3627, %v3625
    %v3662 = vpack.c.bf16 %v3631, %v3629
    %v3663 = vpack.c.bf16 %v3635, %v3633
    %v3665 = vsel %vm2686, %v3660, 0
    %v3668 = vsel %vm2686, %v3661, 0
    %v3671 = vsel %vm2686, %v3662, 0
    %v3674 = vsel %vm2686, %v3663, 0
    %3676 = vmatprep.subr.bf16.mxu0 0
    %3677 = vmatpush1.bf16.msra.mxu0 0
    %3678 = vmatprep.subr.bf16.mxu0 0
    %3679 = vmatpush1.bf16.msra.mxu0 0
    %3680 = vmatprep.subr.bf16.mxu0 0
    %3681 = vmatpush1.bf16.msra.mxu0 0
    %3682 = vmatprep.subr.bf16.mxu0 0
    %3683 = vmatpush1.bf16.msra.mxu0 0
    %3684 = vmatprep.subr.bf16.mxu0 0
    %3685 = vmatpush1.bf16.msra.mxu0 %v3416
    %3686 = vmatprep.subr.bf16.mxu0 0
    %3687 = vmatpush1.bf16.msra.mxu0 %v3397
    %3688 = vmatprep.subr.bf16.mxu0 0
    %3689 = vmatpush1.bf16.msra.mxu0 %v3395
    %3690 = vmatprep.subr.bf16.mxu0 0
    %3691 = vmatpush1.bf16.msra.mxu0 %v3393
    %3692 = vmatprep.subr.bf16.mxu0 0
    %3693 = vmatpush2.bf16.msra.mxu0 0
    %3694 = vmatprep.subr.bf16.mxu0 0
    %3695 = vmatpush2.bf16.msra.mxu0 0
    %3696 = vmatprep.subr.bf16.mxu0 0
    %3697 = vmatpush2.bf16.msra.mxu0 0
    %3698 = vmatprep.subr.bf16.mxu0 0
    %3699 = vmatpush2.bf16.msra.mxu0 0
    %3700 = vmatprep.subr.bf16.mxu0 0
    %3701 = vmatpush2.bf16.msra.mxu0 0
    %3702 = vmatprep.subr.bf16.mxu0 0
    %3703 = vmatpush2.bf16.msra.mxu0 0
    %3704 = vmatprep.subr.bf16.mxu0 0
    %3705 = vmatpush2.bf16.msra.mxu0 0
    %3706 = vmatprep.subr.bf16.mxu0 0
    %3707 = vmatpush2.bf16.msra.mxu0 0
    %3708 = vmatprep.mubr.bf16.mxu0 0
    %3709 = vmatmul.mubr.bf16.gmra.mxu0 %v3665
    %v3710 = vpop.f32.mrf.mxu0
    %v3711 = vadd.f32 0.0, %v3710
    %v3712 = vpop.f32.mrf.mxu0
    %v3713 = vpop.f32.mrf.mxu0
    %v3714 = vadd.f32 0.0, %v3713
    %v3715 = vpop.f32.mrf.mxu0
    %3716 = vmatprep.mubr.bf16.mxu0 0
    %3717 = vmatmul.mubr.bf16.gmra.mxu0 %v3668
    %v3718 = vpop.f32.mrf.mxu0
    %v3719 = vadd.f32 0.0, %v3718
    %v3720 = vpop.f32.mrf.mxu0
    %v3721 = vpop.f32.mrf.mxu0
    %v3722 = vadd.f32 0.0, %v3721
    %v3723 = vpop.f32.mrf.mxu0
    %3724 = vmatprep.mubr.bf16.mxu0 0
    %3725 = vmatmul.mubr.bf16.gmra.mxu0 %v3671
    %v3726 = vpop.f32.mrf.mxu0
    %v3727 = vadd.f32 0.0, %v3726
    %v3728 = vpop.f32.mrf.mxu0
    %v3729 = vpop.f32.mrf.mxu0
    %v3730 = vadd.f32 0.0, %v3729
    %v3731 = vpop.f32.mrf.mxu0
    %3732 = vmatprep.mubr.bf16.mxu0 0
    %3733 = vmatmul.mubr.bf16.gmra.mxu0 %v3674
    %v3734 = vpop.f32.mrf.mxu0
    %v3735 = vadd.f32 0.0, %v3734
    %v3736 = vpop.f32.mrf.mxu0
    %v3737 = vpop.f32.mrf.mxu0
    %v3738 = vadd.f32 0.0, %v3737
    %v3739 = vpop.f32.mrf.mxu0
    %3740 = vdwg.mxu0
    %v3741 = vrcp.pop %v3638
    %v3742 = vrcp.pop %v3641
    %v3743 = vrcp.pop %v3644
    %v3744 = vrcp.pop %v3647
    %v3745 = vrcp.pop %v3650
    %v3746 = vrcp.pop %v3653
    %v3747 = vrcp.pop %v3656
    %v3748 = vrcp.pop %v3659
    %v3749 = vmul.f32 %v3711, %v3741
    %v3750 = vmul.f32 %v3714, %v3742
    %v3751 = vmul.f32 %v3719, %v3743
    %v3752 = vmul.f32 %v3722, %v3744
    %v3753 = vmul.f32 %v3727, %v3745
    %v3754 = vmul.f32 %v3730, %v3746
    %v3755 = vmul.f32 %v3735, %v3747
    %v3756 = vmul.f32 %v3738, %v3748
    %3765 = vrot.lane.b32.xlu0 %v3749, 64
    %v3766 = vpop.permute.xlu0 %3765
    %3767 = vrot.lane.b32.xlu0 %v3750, 64
    %v3768 = vpop.permute.xlu0 %3767
    %3769 = vrot.lane.b32.xlu0 %v3751, 64
    %v3770 = vpop.permute.xlu0 %3769
    %3771 = vrot.lane.b32.xlu0 %v3752, 64
    %v3772 = vpop.permute.xlu0 %3771
    %3773 = vrot.lane.b32.xlu0 %v3753, 64
    %v3774 = vpop.permute.xlu0 %3773
    %3775 = vrot.lane.b32.xlu0 %v3754, 64
    %v3776 = vpop.permute.xlu0 %3775
    %3777 = vrot.lane.b32.xlu0 %v3755, 64
    %v3778 = vpop.permute.xlu0 %3777
    %3779 = vrot.lane.b32.xlu0 %v3756, 64
    %v3780 = vpop.permute.xlu0 %3779
    %v3789 = vsel %vm2596, %v3491, %v3766
    %v3790 = vsel %vm2596, %v3492, %v3768
    %v3791 = vsel %vm2596, %v3493, %v3770
    %v3792 = vsel %vm2596, %v3494, %v3772
    %v3793 = vsel %vm2596, %v3495, %v3774
    %v3794 = vsel %vm2596, %v3496, %v3776
    %v3795 = vsel %vm2596, %v3497, %v3778
    %v3796 = vsel %vm2596, %v3498, %v3780
    %3797 = vst [vmem:[#allocation4 + $0x8] sm:$0xff] %v3789
    %3798 = vst [vmem:[#allocation4 + $0x28] sm:$0xff] %v3790
    %3799 = vst [vmem:[#allocation4 + $0x48] sm:$0xff] %v3791
    %3800 = vst [vmem:[#allocation4 + $0x68] sm:$0xff] %v3792
    %3801 = vst [vmem:[#allocation4 + $0x88] sm:$0xff] %v3793
    %3802 = vst [vmem:[#allocation4 + $0xa8] sm:$0xff] %v3794
    %3803 = vst [vmem:[#allocation4 + $0xc8] sm:$0xff] %v3795
    %3804 = vst [vmem:[#allocation4 + $0xe8] sm:$0xf] %v3796
    %v3805 = vld [vmem:[#allocation3 + $0x28] sm:$0xff]
    %v3806 = vld [vmem:[#allocation3 + $0x68] sm:$0xff]
    %v3807 = vld [vmem:[#allocation3 + $0xa8] sm:$0xff]
    %v3808 = vld [vmem:[#allocation3 + $0xe8] sm:$0xff]
    %v3809 = vld [vmem:[#allocation3 + $0x128] sm:$0xff]
    %v3810 = vld [vmem:[#allocation3 + $0x168] sm:$0xff]
    %v3811 = vld [vmem:[#allocation3 + $0x1a8] sm:$0xff]
    %v3812 = vld [vmem:[#allocation3 + $0x1e8] sm:$0xf]
    %v3813 = vpack.c.bf16 %v3806, %v3805
    %v3814 = vpack.c.bf16 %v3808, %v3807
    %v3815 = vpack.c.bf16 %v3810, %v3809
    %v3816 = vpack.c.bf16 %v3812, %v3811
    %v3817 = vld [vmem:[#allocation3 + $0x38] sm:$0xff]
    %v3818 = vld [vmem:[#allocation3 + $0x78] sm:$0xff]
    %v3819 = vld [vmem:[#allocation3 + $0xb8] sm:$0xff]
    %v3820 = vld [vmem:[#allocation3 + $0xf8] sm:$0xff]
    %v3821 = vld [vmem:[#allocation3 + $0x138] sm:$0xff]
    %v3822 = vld [vmem:[#allocation3 + $0x178] sm:$0xff]
    %v3823 = vld [vmem:[#allocation3 + $0x1b8] sm:$0xff]
    %v3824 = vld [vmem:[#allocation3 + $0x1f8] sm:$0xf]
    %v3825 = vpack.c.bf16 %v3818, %v3817
    %v3826 = vpack.c.bf16 %v3820, %v3819
    %v3827 = vpack.c.bf16 %v3822, %v3821
    %v3828 = vpack.c.bf16 %v3824, %v3823
    %v3829 = vld [vmem:[#allocation3 + $0x10] sm:$0xff]
    %v3830 = vld [vmem:[#allocation3 + $0x50] sm:$0xff]
    %v3831 = vld [vmem:[#allocation3 + $0x90] sm:$0xff]
    %v3832 = vld [vmem:[#allocation3 + $0xd0] sm:$0xff]
    %v3833 = vld [vmem:[#allocation3 + $0x110] sm:$0xff]
    %v3834 = vld [vmem:[#allocation3 + $0x150] sm:$0xff]
    %v3835 = vld [vmem:[#allocation3 + $0x190] sm:$0xff]
    %v3836 = vld [vmem:[#allocation3 + $0x1d0] sm:$0xf]
    %v3837 = vmul.f32 %v3829, 0.125
    %v3838 = vmul.f32 %v3830, 0.125
    %v3839 = vmul.f32 %v3831, 0.125
    %v3840 = vmul.f32 %v3832, 0.125
    %v3841 = vmul.f32 %v3833, 0.125
    %v3842 = vmul.f32 %v3834, 0.125
    %v3843 = vmul.f32 %v3835, 0.125
    %v3844 = vmul.f32 %v3836, 0.125
    %v3845 = vpack.c.bf16 %v3838, %v3837
    %v3846 = vpack.c.bf16 %v3840, %v3839
    %v3847 = vpack.c.bf16 %v3842, %v3841
    %v3848 = vpack.c.bf16 %v3844, %v3843
    %v3850 = vsel %vm2596, %v3845, 0
    %v3853 = vsel %vm2596, %v3846, 0
    %v3856 = vsel %vm2596, %v3847, 0
    %v3859 = vsel %vm2596, %v3848, 0
    %v3862 = vsel %vm2596, %v3813, 0
    %v3865 = vsel %vm2596, %v3814, 0
    %v3868 = vsel %vm2596, %v3815, 0
    %v3871 = vsel %vm2596, %v3816, 0
    %3873 = vmatprep.subr.bf16.mxu0 0
    %3874 = vmatpush1.bf16.xpose.msra.mxu0 0
    %3875 = vmatprep.subr.bf16.mxu0 0
    %3876 = vmatpush1.bf16.xpose.msra.mxu0 0
    %3877 = vmatprep.subr.bf16.mxu0 0
    %3878 = vmatpush1.bf16.xpose.msra.mxu0 0
    %3879 = vmatprep.subr.bf16.mxu0 0
    %3880 = vmatpush1.bf16.xpose.msra.mxu0 0
    %3881 = vmatprep.subr.bf16.mxu0 0
    %3882 = vmatpush1.bf16.xpose.msra.mxu0 %v3871
    %3883 = vmatprep.subr.bf16.mxu0 0
    %3884 = vmatpush1.bf16.xpose.msra.mxu0 %v3868
    %3885 = vmatprep.subr.bf16.mxu0 0
    %3886 = vmatpush1.bf16.xpose.msra.mxu0 %v3865
    %3887 = vmatprep.subr.bf16.mxu0 0
    %3888 = vmatpush1.bf16.xpose.msra.mxu0 %v3862
    %3889 = vmatprep.subr.bf16.mxu0 0
    %3890 = vmatpush2.bf16.xpose.msra.mxu0 0
    %3891 = vmatprep.subr.bf16.mxu0 0
    %3892 = vmatpush2.bf16.xpose.msra.mxu0 0
    %3893 = vmatprep.subr.bf16.mxu0 0
    %3894 = vmatpush2.bf16.xpose.msra.mxu0 0
    %3895 = vmatprep.subr.bf16.mxu0 0
    %3896 = vmatpush2.bf16.xpose.msra.mxu0 0
    %3897 = vmatprep.subr.bf16.mxu0 0
    %3898 = vmatpush2.bf16.xpose.msra.mxu0 0
    %3899 = vmatprep.subr.bf16.mxu0 0
    %3900 = vmatpush2.bf16.xpose.msra.mxu0 0
    %3901 = vmatprep.subr.bf16.mxu0 0
    %3902 = vmatpush2.bf16.xpose.msra.mxu0 0
    %3903 = vmatprep.subr.bf16.mxu0 0
    %3904 = vmatpush2.bf16.xpose.msra.mxu0 0
    %3905 = vmatprep.mubr.bf16.mxu0 0
    %3906 = vmatmul.mubr.bf16.gmra.mxu0 %v3850
    %v3907 = vpop.f32.mrf.mxu0
    %v3908 = vadd.f32 %v2544, %v3907
    %v3909 = vpop.f32.mrf.mxu0
    %v3910 = vpop.f32.mrf.mxu0
    %v3911 = vadd.f32 %v2545, %v3910
    %v3912 = vpop.f32.mrf.mxu0
    %3913 = vmatprep.mubr.bf16.mxu0 0
    %3914 = vmatmul.mubr.bf16.gmra.mxu0 %v3853
    %v3915 = vpop.f32.mrf.mxu0
    %v3916 = vadd.f32 %v2546, %v3915
    %v3917 = vpop.f32.mrf.mxu0
    %v3918 = vpop.f32.mrf.mxu0
    %v3919 = vadd.f32 %v2547, %v3918
    %v3920 = vpop.f32.mrf.mxu0
    %3921 = vmatprep.mubr.bf16.mxu0 0
    %3922 = vmatmul.mubr.bf16.gmra.mxu0 %v3856
    %v3923 = vpop.f32.mrf.mxu0
    %v3924 = vadd.f32 %v2548, %v3923
    %v3925 = vpop.f32.mrf.mxu0
    %v3926 = vpop.f32.mrf.mxu0
    %v3927 = vadd.f32 %v2549, %v3926
    %v3928 = vpop.f32.mrf.mxu0
    %3929 = vmatprep.mubr.bf16.mxu0 0
    %3930 = vmatmul.mubr.bf16.gmra.mxu0 %v3859
    %v3931 = vpop.f32.mrf.mxu0
    %v3932 = vadd.f32 %v2550, %v3931
    %v3933 = vpop.f32.mrf.mxu0
    %v3934 = vpop.f32.mrf.mxu0
    %v3935 = vadd.f32 %v2551, %v3934
    %v3936 = vpop.f32.mrf.mxu0
    %3937 = vdwg.mxu0
    %v3938 = vsel %vm2686, %v3908, -inf
    %3939 = vmax.xlane.f32.xlu0 %v3938
    %v3940 = vpop.xlane.xlu0 %3939
    %v3941 = vsel %vm2686, %v3911, -inf
    %3942 = vmax.xlane.f32.xlu0 %v3941
    %v3943 = vpop.xlane.xlu0 %3942
    %v3944 = vsel %vm2686, %v3916, -inf
    %3945 = vmax.xlane.f32.xlu0 %v3944
    %v3946 = vpop.xlane.xlu0 %3945
    %v3947 = vsel %vm2686, %v3919, -inf
    %3948 = vmax.xlane.f32.xlu0 %v3947
    %v3949 = vpop.xlane.xlu0 %3948
    %v3950 = vsel %vm2686, %v3924, -inf
    %3951 = vmax.xlane.f32.xlu0 %v3950
    %v3952 = vpop.xlane.xlu0 %3951
    %v3953 = vsel %vm2686, %v3927, -inf
    %3954 = vmax.xlane.f32.xlu0 %v3953
    %v3955 = vpop.xlane.xlu0 %3954
    %v3956 = vsel %vm2686, %v3932, -inf
    %3957 = vmax.xlane.f32.xlu0 %v3956
    %v3958 = vpop.xlane.xlu0 %3957
    %v3959 = vsel %vm2708, %v3935, -inf
    %3960 = vmax.xlane.f32.xlu0 %v3959
    %v3961 = vpop.xlane.xlu0 %3960
    %v3962 = vsub.f32 %v3908, %v3940
    %v3963 = vsub.f32 %v3911, %v3943
    %v3964 = vsub.f32 %v3916, %v3946
    %v3965 = vsub.f32 %v3919, %v3949
    %v3966 = vsub.f32 %v3924, %v3952
    %v3967 = vsub.f32 %v3927, %v3955
    %v3968 = vsub.f32 %v3932, %v3958
    %v3969 = vsub.f32 %v3935, %v3961
    %v3970 = vmul.f32 %v3962, 1.442695
    %v3971 = vpow.pop %v3970
    %v3972 = vmul.f32 %v3963, 1.442695
    %v3973 = vpow.pop %v3972
    %v3974 = vmul.f32 %v3964, 1.442695
    %v3975 = vpow.pop %v3974
    %v3976 = vmul.f32 %v3965, 1.442695
    %v3977 = vpow.pop %v3976
    %v3978 = vmul.f32 %v3966, 1.442695
    %v3979 = vpow.pop %v3978
    %v3980 = vmul.f32 %v3967, 1.442695
    %v3981 = vpow.pop %v3980
    %v3982 = vmul.f32 %v3968, 1.442695
    %v3983 = vpow.pop %v3982
    %v3984 = vmul.f32 %v3969, 1.442695
    %v3985 = vpow.pop %v3984
    %v3986 = vsel %vm2686, %v3971, 0.0
    %3987 = vadd.xlane.f32.xlu0 %v3986
    %v3988 = vpop.xlane.xlu0 %3987
    %v3989 = vsel %vm2686, %v3973, 0.0
    %3990 = vadd.xlane.f32.xlu0 %v3989
    %v3991 = vpop.xlane.xlu0 %3990
    %v3992 = vsel %vm2686, %v3975, 0.0
    %3993 = vadd.xlane.f32.xlu0 %v3992
    %v3994 = vpop.xlane.xlu0 %3993
    %v3995 = vsel %vm2686, %v3977, 0.0
    %3996 = vadd.xlane.f32.xlu0 %v3995
    %v3997 = vpop.xlane.xlu0 %3996
    %v3998 = vsel %vm2686, %v3979, 0.0
    %3999 = vadd.xlane.f32.xlu0 %v3998
    %v4000 = vpop.xlane.xlu0 %3999
    %v4001 = vsel %vm2686, %v3981, 0.0
    %4002 = vadd.xlane.f32.xlu0 %v4001
    %v4003 = vpop.xlane.xlu0 %4002
    %v4004 = vsel %vm2686, %v3983, 0.0
    %4005 = vadd.xlane.f32.xlu0 %v4004
    %v4006 = vpop.xlane.xlu0 %4005
    %v4007 = vsel %vm2708, %v3985, 0.0
    %4008 = vadd.xlane.f32.xlu0 %v4007
    %v4009 = vpop.xlane.xlu0 %4008
    %v4010 = vpack.c.bf16 %v3973, %v3971
    %v4011 = vpack.c.bf16 %v3977, %v3975
    %v4012 = vpack.c.bf16 %v3981, %v3979
    %v4013 = vpack.c.bf16 %v3985, %v3983
    %v4015 = vsel %vm2686, %v4010, 0
    %v4018 = vsel %vm2686, %v4011, 0
    %v4021 = vsel %vm2686, %v4012, 0
    %v4024 = vsel %vm2686, %v4013, 0
    %v4027 = vsel %vm2776, %v3828, 0
    %4029 = vmatprep.subr.bf16.mxu0 0
    %4030 = vmatpush1.bf16.msra.mxu0 0
    %4031 = vmatprep.subr.bf16.mxu0 0
    %4032 = vmatpush1.bf16.msra.mxu0 0
    %4033 = vmatprep.subr.bf16.mxu0 0
    %4034 = vmatpush1.bf16.msra.mxu0 0
    %4035 = vmatprep.subr.bf16.mxu0 0
    %4036 = vmatpush1.bf16.msra.mxu0 0
    %4037 = vmatprep.subr.bf16.mxu0 0
    %4038 = vmatpush1.bf16.msra.mxu0 %v4027
    %4039 = vmatprep.subr.bf16.mxu0 0
    %4040 = vmatpush1.bf16.msra.mxu0 %v3827
    %4041 = vmatprep.subr.bf16.mxu0 0
    %4042 = vmatpush1.bf16.msra.mxu0 %v3826
    %4043 = vmatprep.subr.bf16.mxu0 0
    %4044 = vmatpush1.bf16.msra.mxu0 %v3825
    %4045 = vmatprep.subr.bf16.mxu0 0
    %4046 = vmatpush2.bf16.msra.mxu0 0
    %4047 = vmatprep.subr.bf16.mxu0 0
    %4048 = vmatpush2.bf16.msra.mxu0 0
    %4049 = vmatprep.subr.bf16.mxu0 0
    %4050 = vmatpush2.bf16.msra.mxu0 0
    %4051 = vmatprep.subr.bf16.mxu0 0
    %4052 = vmatpush2.bf16.msra.mxu0 0
    %4053 = vmatprep.subr.bf16.mxu0 0
    %4054 = vmatpush2.bf16.msra.mxu0 0
    %4055 = vmatprep.subr.bf16.mxu0 0
    %4056 = vmatpush2.bf16.msra.mxu0 0
    %4057 = vmatprep.subr.bf16.mxu0 0
    %4058 = vmatpush2.bf16.msra.mxu0 0
    %4059 = vmatprep.subr.bf16.mxu0 0
    %4060 = vmatpush2.bf16.msra.mxu0 0
    %4061 = vmatprep.mubr.bf16.mxu0 0
    %4062 = vmatmul.mubr.bf16.gmra.mxu0 %v4015
    %v4063 = vpop.f32.mrf.mxu0
    %v4064 = vadd.f32 0.0, %v4063
    %v4065 = vpop.f32.mrf.mxu0
    %v4066 = vpop.f32.mrf.mxu0
    %v4067 = vadd.f32 0.0, %v4066
    %v4068 = vpop.f32.mrf.mxu0
    %4069 = vmatprep.mubr.bf16.mxu0 0
    %4070 = vmatmul.mubr.bf16.gmra.mxu0 %v4018
    %v4071 = vpop.f32.mrf.mxu0
    %v4072 = vadd.f32 0.0, %v4071
    %v4073 = vpop.f32.mrf.mxu0
    %v4074 = vpop.f32.mrf.mxu0
    %v4075 = vadd.f32 0.0, %v4074
    %v4076 = vpop.f32.mrf.mxu0
    %4077 = vmatprep.mubr.bf16.mxu0 0
    %4078 = vmatmul.mubr.bf16.gmra.mxu0 %v4021
    %v4079 = vpop.f32.mrf.mxu0
    %v4080 = vadd.f32 0.0, %v4079
    %v4081 = vpop.f32.mrf.mxu0
    %v4082 = vpop.f32.mrf.mxu0
    %v4083 = vadd.f32 0.0, %v4082
    %v4084 = vpop.f32.mrf.mxu0
    %4085 = vmatprep.mubr.bf16.mxu0 0
    %4086 = vmatmul.mubr.bf16.gmra.mxu0 %v4024
    %v4087 = vpop.f32.mrf.mxu0
    %v4088 = vadd.f32 0.0, %v4087
    %v4089 = vpop.f32.mrf.mxu0
    %v4090 = vpop.f32.mrf.mxu0
    %v4091 = vadd.f32 0.0, %v4090
    %v4092 = vpop.f32.mrf.mxu0
    %4093 = vdwg.mxu0
    %v4094 = vrcp.pop %v3988
    %v4095 = vrcp.pop %v3991
    %v4096 = vrcp.pop %v3994
    %v4097 = vrcp.pop %v3997
    %v4098 = vrcp.pop %v4000
    %v4099 = vrcp.pop %v4003
    %v4100 = vrcp.pop %v4006
    %v4101 = vrcp.pop %v4009
    %v4102 = vmul.f32 %v4064, %v4094
    %v4103 = vmul.f32 %v4067, %v4095
    %v4104 = vmul.f32 %v4072, %v4096
    %v4105 = vmul.f32 %v4075, %v4097
    %v4106 = vmul.f32 %v4080, %v4098
    %v4107 = vmul.f32 %v4083, %v4099
    %v4108 = vmul.f32 %v4088, %v4100
    %v4109 = vmul.f32 %v4091, %v4101
    %4114 = vrot.lane.b32.xlu0 %v3845, 64
    %v4115 = vpop.permute.xlu0 %4114
    %4116 = vrot.lane.b32.xlu0 %v3846, 64
    %v4117 = vpop.permute.xlu0 %4116
    %4118 = vrot.lane.b32.xlu0 %v3847, 64
    %v4119 = vpop.permute.xlu0 %4118
    %4120 = vrot.lane.b32.xlu0 %v3848, 64
    %v4121 = vpop.permute.xlu0 %4120
    %v4123 = vsel %vm2596, %v4115, 0
    %v4126 = vsel %vm2596, %v4117, 0
    %v4129 = vsel %vm2596, %v4119, 0
    %v4132 = vsel %vm2596, %v4121, 0
    %4134 = vmatprep.subr.bf16.mxu0 0
    %4135 = vmatpush1.bf16.xpose.msra.mxu0 0
    %4136 = vmatprep.subr.bf16.mxu0 0
    %4137 = vmatpush1.bf16.xpose.msra.mxu0 0
    %4138 = vmatprep.subr.bf16.mxu0 0
    %4139 = vmatpush1.bf16.xpose.msra.mxu0 0
    %4140 = vmatprep.subr.bf16.mxu0 0
    %4141 = vmatpush1.bf16.xpose.msra.mxu0 0
    %4142 = vmatprep.subr.bf16.mxu0 0
    %4143 = vmatpush1.bf16.xpose.msra.mxu0 %v3871
    %4144 = vmatprep.subr.bf16.mxu0 0
    %4145 = vmatpush1.bf16.xpose.msra.mxu0 %v3868
    %4146 = vmatprep.subr.bf16.mxu0 0
    %4147 = vmatpush1.bf16.xpose.msra.mxu0 %v3865
    %4148 = vmatprep.subr.bf16.mxu0 0
    %4149 = vmatpush1.bf16.xpose.msra.mxu0 %v3862
    %4150 = vmatprep.subr.bf16.mxu0 0
    %4151 = vmatpush2.bf16.xpose.msra.mxu0 0
    %4152 = vmatprep.subr.bf16.mxu0 0
    %4153 = vmatpush2.bf16.xpose.msra.mxu0 0
    %4154 = vmatprep.subr.bf16.mxu0 0
    %4155 = vmatpush2.bf16.xpose.msra.mxu0 0
    %4156 = vmatprep.subr.bf16.mxu0 0
    %4157 = vmatpush2.bf16.xpose.msra.mxu0 0
    %4158 = vmatprep.subr.bf16.mxu0 0
    %4159 = vmatpush2.bf16.xpose.msra.mxu0 0
    %4160 = vmatprep.subr.bf16.mxu0 0
    %4161 = vmatpush2.bf16.xpose.msra.mxu0 0
    %4162 = vmatprep.subr.bf16.mxu0 0
    %4163 = vmatpush2.bf16.xpose.msra.mxu0 0
    %4164 = vmatprep.subr.bf16.mxu0 0
    %4165 = vmatpush2.bf16.xpose.msra.mxu0 0
    %4166 = vmatprep.mubr.bf16.mxu0 0
    %4167 = vmatmul.mubr.bf16.gmra.mxu0 %v4123
    %v4168 = vpop.f32.mrf.mxu0
    %v4169 = vadd.f32 %v2544, %v4168
    %v4170 = vpop.f32.mrf.mxu0
    %v4171 = vpop.f32.mrf.mxu0
    %v4172 = vadd.f32 %v2545, %v4171
    %v4173 = vpop.f32.mrf.mxu0
    %4174 = vmatprep.mubr.bf16.mxu0 0
    %4175 = vmatmul.mubr.bf16.gmra.mxu0 %v4126
    %v4176 = vpop.f32.mrf.mxu0
    %v4177 = vadd.f32 %v2546, %v4176
    %v4178 = vpop.f32.mrf.mxu0
    %v4179 = vpop.f32.mrf.mxu0
    %v4180 = vadd.f32 %v2547, %v4179
    %v4181 = vpop.f32.mrf.mxu0
    %4182 = vmatprep.mubr.bf16.mxu0 0
    %4183 = vmatmul.mubr.bf16.gmra.mxu0 %v4129
    %v4184 = vpop.f32.mrf.mxu0
    %v4185 = vadd.f32 %v2548, %v4184
    %v4186 = vpop.f32.mrf.mxu0
    %v4187 = vpop.f32.mrf.mxu0
    %v4188 = vadd.f32 %v2549, %v4187
    %v4189 = vpop.f32.mrf.mxu0
    %4190 = vmatprep.mubr.bf16.mxu0 0
    %4191 = vmatmul.mubr.bf16.gmra.mxu0 %v4132
    %v4192 = vpop.f32.mrf.mxu0
    %v4193 = vadd.f32 %v2550, %v4192
    %v4194 = vpop.f32.mrf.mxu0
    %v4195 = vpop.f32.mrf.mxu0
    %v4196 = vadd.f32 %v2551, %v4195
    %v4197 = vpop.f32.mrf.mxu0
    %4198 = vdwg.mxu0
    %v4199 = vsel %vm2686, %v4169, -inf
    %4200 = vmax.xlane.f32.xlu0 %v4199
    %v4201 = vpop.xlane.xlu0 %4200
    %v4202 = vsel %vm2686, %v4172, -inf
    %4203 = vmax.xlane.f32.xlu0 %v4202
    %v4204 = vpop.xlane.xlu0 %4203
    %v4205 = vsel %vm2686, %v4177, -inf
    %4206 = vmax.xlane.f32.xlu0 %v4205
    %v4207 = vpop.xlane.xlu0 %4206
    %v4208 = vsel %vm2686, %v4180, -inf
    %4209 = vmax.xlane.f32.xlu0 %v4208
    %v4210 = vpop.xlane.xlu0 %4209
    %v4211 = vsel %vm2686, %v4185, -inf
    %4212 = vmax.xlane.f32.xlu0 %v4211
    %v4213 = vpop.xlane.xlu0 %4212
    %v4214 = vsel %vm2686, %v4188, -inf
    %4215 = vmax.xlane.f32.xlu0 %v4214
    %v4216 = vpop.xlane.xlu0 %4215
    %v4217 = vsel %vm2686, %v4193, -inf
    %4218 = vmax.xlane.f32.xlu0 %v4217
    %v4219 = vpop.xlane.xlu0 %4218
    %v4220 = vsel %vm2708, %v4196, -inf
    %4221 = vmax.xlane.f32.xlu0 %v4220
    %v4222 = vpop.xlane.xlu0 %4221
    %v4223 = vsub.f32 %v4169, %v4201
    %v4224 = vsub.f32 %v4172, %v4204
    %v4225 = vsub.f32 %v4177, %v4207
    %v4226 = vsub.f32 %v4180, %v4210
    %v4227 = vsub.f32 %v4185, %v4213
    %v4228 = vsub.f32 %v4188, %v4216
    %v4229 = vsub.f32 %v4193, %v4219
    %v4230 = vsub.f32 %v4196, %v4222
    %v4231 = vmul.f32 %v4223, 1.442695
    %v4232 = vpow.pop %v4231
    %v4233 = vmul.f32 %v4224, 1.442695
    %v4234 = vpow.pop %v4233
    %v4235 = vmul.f32 %v4225, 1.442695
    %v4236 = vpow.pop %v4235
    %v4237 = vmul.f32 %v4226, 1.442695
    %v4238 = vpow.pop %v4237
    %v4239 = vmul.f32 %v4227, 1.442695
    %v4240 = vpow.pop %v4239
    %v4241 = vmul.f32 %v4228, 1.442695
    %v4242 = vpow.pop %v4241
    %v4243 = vmul.f32 %v4229, 1.442695
    %v4244 = vpow.pop %v4243
    %v4245 = vmul.f32 %v4230, 1.442695
    %v4246 = vpow.pop %v4245
    %v4247 = vsel %vm2686, %v4232, 0.0
    %4248 = vadd.xlane.f32.xlu0 %v4247
    %v4249 = vpop.xlane.xlu0 %4248
    %v4250 = vsel %vm2686, %v4234, 0.0
    %4251 = vadd.xlane.f32.xlu0 %v4250
    %v4252 = vpop.xlane.xlu0 %4251
    %v4253 = vsel %vm2686, %v4236, 0.0
    %4254 = vadd.xlane.f32.xlu0 %v4253
    %v4255 = vpop.xlane.xlu0 %4254
    %v4256 = vsel %vm2686, %v4238, 0.0
    %4257 = vadd.xlane.f32.xlu0 %v4256
    %v4258 = vpop.xlane.xlu0 %4257
    %v4259 = vsel %vm2686, %v4240, 0.0
    %4260 = vadd.xlane.f32.xlu0 %v4259
    %v4261 = vpop.xlane.xlu0 %4260
    %v4262 = vsel %vm2686, %v4242, 0.0
    %4263 = vadd.xlane.f32.xlu0 %v4262
    %v4264 = vpop.xlane.xlu0 %4263
    %v4265 = vsel %vm2686, %v4244, 0.0
    %4266 = vadd.xlane.f32.xlu0 %v4265
    %v4267 = vpop.xlane.xlu0 %4266
    %v4268 = vsel %vm2708, %v4246, 0.0
    %4269 = vadd.xlane.f32.xlu0 %v4268
    %v4270 = vpop.xlane.xlu0 %4269
    %v4271 = vpack.c.bf16 %v4234, %v4232
    %v4272 = vpack.c.bf16 %v4238, %v4236
    %v4273 = vpack.c.bf16 %v4242, %v4240
    %v4274 = vpack.c.bf16 %v4246, %v4244
    %v4276 = vsel %vm2686, %v4271, 0
    %v4279 = vsel %vm2686, %v4272, 0
    %v4282 = vsel %vm2686, %v4273, 0
    %v4285 = vsel %vm2686, %v4274, 0
    %4287 = vmatprep.subr.bf16.mxu0 0
    %4288 = vmatpush1.bf16.msra.mxu0 0
    %4289 = vmatprep.subr.bf16.mxu0 0
    %4290 = vmatpush1.bf16.msra.mxu0 0
    %4291 = vmatprep.subr.bf16.mxu0 0
    %4292 = vmatpush1.bf16.msra.mxu0 0
    %4293 = vmatprep.subr.bf16.mxu0 0
    %4294 = vmatpush1.bf16.msra.mxu0 0
    %4295 = vmatprep.subr.bf16.mxu0 0
    %4296 = vmatpush1.bf16.msra.mxu0 %v4027
    %4297 = vmatprep.subr.bf16.mxu0 0
    %4298 = vmatpush1.bf16.msra.mxu0 %v3827
    %4299 = vmatprep.subr.bf16.mxu0 0
    %4300 = vmatpush1.bf16.msra.mxu0 %v3826
    %4301 = vmatprep.subr.bf16.mxu0 0
    %4302 = vmatpush1.bf16.msra.mxu0 %v3825
    %4303 = vmatprep.subr.bf16.mxu0 0
    %4304 = vmatpush2.bf16.msra.mxu0 0
    %4305 = vmatprep.subr.bf16.mxu0 0
    %4306 = vmatpush2.bf16.msra.mxu0 0
    %4307 = vmatprep.subr.bf16.mxu0 0
    %4308 = vmatpush2.bf16.msra.mxu0 0
    %4309 = vmatprep.subr.bf16.mxu0 0
    %4310 = vmatpush2.bf16.msra.mxu0 0
    %4311 = vmatprep.subr.bf16.mxu0 0
    %4312 = vmatpush2.bf16.msra.mxu0 0
    %4313 = vmatprep.subr.bf16.mxu0 0
    %4314 = vmatpush2.bf16.msra.mxu0 0
    %4315 = vmatprep.subr.bf16.mxu0 0
    %4316 = vmatpush2.bf16.msra.mxu0 0
    %4317 = vmatprep.subr.bf16.mxu0 0
    %4318 = vmatpush2.bf16.msra.mxu0 0
    %4319 = vmatprep.mubr.bf16.mxu0 0
    %4320 = vmatmul.mubr.bf16.gmra.mxu0 %v4276
    %v4321 = vpop.f32.mrf.mxu0
    %v4322 = vadd.f32 0.0, %v4321
    %v4323 = vpop.f32.mrf.mxu0
    %v4324 = vpop.f32.mrf.mxu0
    %v4325 = vadd.f32 0.0, %v4324
    %v4326 = vpop.f32.mrf.mxu0
    %4327 = vmatprep.mubr.bf16.mxu0 0
    %4328 = vmatmul.mubr.bf16.gmra.mxu0 %v4279
    %v4329 = vpop.f32.mrf.mxu0
    %v4330 = vadd.f32 0.0, %v4329
    %v4331 = vpop.f32.mrf.mxu0
    %v4332 = vpop.f32.mrf.mxu0
    %v4333 = vadd.f32 0.0, %v4332
    %v4334 = vpop.f32.mrf.mxu0
    %4335 = vmatprep.mubr.bf16.mxu0 0
    %4336 = vmatmul.mubr.bf16.gmra.mxu0 %v4282
    %v4337 = vpop.f32.mrf.mxu0
    %v4338 = vadd.f32 0.0, %v4337
    %v4339 = vpop.f32.mrf.mxu0
    %v4340 = vpop.f32.mrf.mxu0
    %v4341 = vadd.f32 0.0, %v4340
    %v4342 = vpop.f32.mrf.mxu0
    %4343 = vmatprep.mubr.bf16.mxu0 0
    %4344 = vmatmul.mubr.bf16.gmra.mxu0 %v4285
    %v4345 = vpop.f32.mrf.mxu0
    %v4346 = vadd.f32 0.0, %v4345
    %v4347 = vpop.f32.mrf.mxu0
    %v4348 = vpop.f32.mrf.mxu0
    %v4349 = vadd.f32 0.0, %v4348
    %v4350 = vpop.f32.mrf.mxu0
    %4351 = vdwg.mxu0
    %v4352 = vrcp.pop %v4249
    %v4353 = vrcp.pop %v4252
    %v4354 = vrcp.pop %v4255
    %v4355 = vrcp.pop %v4258
    %v4356 = vrcp.pop %v4261
    %v4357 = vrcp.pop %v4264
    %v4358 = vrcp.pop %v4267
    %v4359 = vrcp.pop %v4270
    %v4360 = vmul.f32 %v4322, %v4352
    %v4361 = vmul.f32 %v4325, %v4353
    %v4362 = vmul.f32 %v4330, %v4354
    %v4363 = vmul.f32 %v4333, %v4355
    %v4364 = vmul.f32 %v4338, %v4356
    %v4365 = vmul.f32 %v4341, %v4357
    %v4366 = vmul.f32 %v4346, %v4358
    %v4367 = vmul.f32 %v4349, %v4359
    %4376 = vrot.lane.b32.xlu0 %v4360, 64
    %v4377 = vpop.permute.xlu0 %4376
    %4378 = vrot.lane.b32.xlu0 %v4361, 64
    %v4379 = vpop.permute.xlu0 %4378
    %4380 = vrot.lane.b32.xlu0 %v4362, 64
    %v4381 = vpop.permute.xlu0 %4380
    %4382 = vrot.lane.b32.xlu0 %v4363, 64
    %v4383 = vpop.permute.xlu0 %4382
    %4384 = vrot.lane.b32.xlu0 %v4364, 64
    %v4385 = vpop.permute.xlu0 %4384
    %4386 = vrot.lane.b32.xlu0 %v4365, 64
    %v4387 = vpop.permute.xlu0 %4386
    %4388 = vrot.lane.b32.xlu0 %v4366, 64
    %v4389 = vpop.permute.xlu0 %4388
    %4390 = vrot.lane.b32.xlu0 %v4367, 64
    %v4391 = vpop.permute.xlu0 %4390
    %v4400 = vsel %vm2596, %v4102, %v4377
    %v4401 = vsel %vm2596, %v4103, %v4379
    %v4402 = vsel %vm2596, %v4104, %v4381
    %v4403 = vsel %vm2596, %v4105, %v4383
    %v4404 = vsel %vm2596, %v4106, %v4385
    %v4405 = vsel %vm2596, %v4107, %v4387
    %v4406 = vsel %vm2596, %v4108, %v4389
    %v4407 = vsel %vm2596, %v4109, %v4391
    %4408 = vst [vmem:[#allocation4 + $0x10] sm:$0xff] %v4400
    %4409 = vst [vmem:[#allocation4 + $0x30] sm:$0xff] %v4401
    %4410 = vst [vmem:[#allocation4 + $0x50] sm:$0xff] %v4402
    %4411 = vst [vmem:[#allocation4 + $0x70] sm:$0xff] %v4403
    %4412 = vst [vmem:[#allocation4 + $0x90] sm:$0xff] %v4404
    %4413 = vst [vmem:[#allocation4 + $0xb0] sm:$0xff] %v4405
    %4414 = vst [vmem:[#allocation4 + $0xd0] sm:$0xff] %v4406
    %4415 = vst [vmem:[#allocation4 + $0xf0] sm:$0xf] %v4407
    %v4416 = vld [vmem:[#allocation3 + $0x28] sm:$0xff]
    %v4417 = vld [vmem:[#allocation3 + $0x68] sm:$0xff]
    %v4418 = vld [vmem:[#allocation3 + $0xa8] sm:$0xff]
    %v4419 = vld [vmem:[#allocation3 + $0xe8] sm:$0xff]
    %v4420 = vld [vmem:[#allocation3 + $0x128] sm:$0xff]
    %v4421 = vld [vmem:[#allocation3 + $0x168] sm:$0xff]
    %v4422 = vld [vmem:[#allocation3 + $0x1a8] sm:$0xff]
    %v4423 = vld [vmem:[#allocation3 + $0x1e8] sm:$0xf]
    %v4424 = vpack.c.bf16 %v4417, %v4416
    %v4425 = vpack.c.bf16 %v4419, %v4418
    %v4426 = vpack.c.bf16 %v4421, %v4420
    %v4427 = vpack.c.bf16 %v4423, %v4422
    %v4428 = vld [vmem:[#allocation3 + $0x38] sm:$0xff]
    %v4429 = vld [vmem:[#allocation3 + $0x78] sm:$0xff]
    %v4430 = vld [vmem:[#allocation3 + $0xb8] sm:$0xff]
    %v4431 = vld [vmem:[#allocation3 + $0xf8] sm:$0xff]
    %v4432 = vld [vmem:[#allocation3 + $0x138] sm:$0xff]
    %v4433 = vld [vmem:[#allocation3 + $0x178] sm:$0xff]
    %v4434 = vld [vmem:[#allocation3 + $0x1b8] sm:$0xff]
    %v4435 = vld [vmem:[#allocation3 + $0x1f8] sm:$0xf]
    %v4436 = vpack.c.bf16 %v4429, %v4428
    %v4437 = vpack.c.bf16 %v4431, %v4430
    %v4438 = vpack.c.bf16 %v4433, %v4432
    %v4439 = vpack.c.bf16 %v4435, %v4434
    %v4440 = vld [vmem:[#allocation3 + $0x18] sm:$0xff]
    %v4441 = vld [vmem:[#allocation3 + $0x58] sm:$0xff]
    %v4442 = vld [vmem:[#allocation3 + $0x98] sm:$0xff]
    %v4443 = vld [vmem:[#allocation3 + $0xd8] sm:$0xff]
    %v4444 = vld [vmem:[#allocation3 + $0x118] sm:$0xff]
    %v4445 = vld [vmem:[#allocation3 + $0x158] sm:$0xff]
    %v4446 = vld [vmem:[#allocation3 + $0x198] sm:$0xff]
    %v4447 = vld [vmem:[#allocation3 + $0x1d8] sm:$0xf]
    %v4448 = vmul.f32 %v4440, 0.125
    %v4449 = vmul.f32 %v4441, 0.125
    %v4450 = vmul.f32 %v4442, 0.125
    %v4451 = vmul.f32 %v4443, 0.125
    %v4452 = vmul.f32 %v4444, 0.125
    %v4453 = vmul.f32 %v4445, 0.125
    %v4454 = vmul.f32 %v4446, 0.125
    %v4455 = vmul.f32 %v4447, 0.125
    %v4456 = vpack.c.bf16 %v4449, %v4448
    %v4457 = vpack.c.bf16 %v4451, %v4450
    %v4458 = vpack.c.bf16 %v4453, %v4452
    %v4459 = vpack.c.bf16 %v4455, %v4454
    %4464 = vrot.lane.b32.xlu0 %v4424, 64
    %v4465 = vpop.permute.xlu0 %4464
    %4466 = vrot.lane.b32.xlu0 %v4425, 64
    %v4467 = vpop.permute.xlu0 %4466
    %4468 = vrot.lane.b32.xlu0 %v4426, 64
    %v4469 = vpop.permute.xlu0 %4468
    %4470 = vrot.lane.b32.xlu0 %v4427, 64
    %v4471 = vpop.permute.xlu0 %4470
    %v4473 = vsel %vm2596, %v4456, 0
    %v4476 = vsel %vm2596, %v4457, 0
    %v4479 = vsel %vm2596, %v4458, 0
    %v4482 = vsel %vm2596, %v4459, 0
    %v4485 = vsel %vm2596, %v4465, 0
    %v4488 = vsel %vm2596, %v4467, 0
    %v4491 = vsel %vm2596, %v4469, 0
    %v4494 = vsel %vm2596, %v4471, 0
    %4496 = vmatprep.subr.bf16.mxu0 0
    %4497 = vmatpush1.bf16.xpose.msra.mxu0 0
    %4498 = vmatprep.subr.bf16.mxu0 0
    %4499 = vmatpush1.bf16.xpose.msra.mxu0 0
    %4500 = vmatprep.subr.bf16.mxu0 0
    %4501 = vmatpush1.bf16.xpose.msra.mxu0 0
    %4502 = vmatprep.subr.bf16.mxu0 0
    %4503 = vmatpush1.bf16.xpose.msra.mxu0 0
    %4504 = vmatprep.subr.bf16.mxu0 0
    %4505 = vmatpush1.bf16.xpose.msra.mxu0 %v4494
    %4506 = vmatprep.subr.bf16.mxu0 0
    %4507 = vmatpush1.bf16.xpose.msra.mxu0 %v4491
    %4508 = vmatprep.subr.bf16.mxu0 0
    %4509 = vmatpush1.bf16.xpose.msra.mxu0 %v4488
    %4510 = vmatprep.subr.bf16.mxu0 0
    %4511 = vmatpush1.bf16.xpose.msra.mxu0 %v4485
    %4512 = vmatprep.subr.bf16.mxu0 0
    %4513 = vmatpush2.bf16.xpose.msra.mxu0 0
    %4514 = vmatprep.subr.bf16.mxu0 0
    %4515 = vmatpush2.bf16.xpose.msra.mxu0 0
    %4516 = vmatprep.subr.bf16.mxu0 0
    %4517 = vmatpush2.bf16.xpose.msra.mxu0 0
    %4518 = vmatprep.subr.bf16.mxu0 0
    %4519 = vmatpush2.bf16.xpose.msra.mxu0 0
    %4520 = vmatprep.subr.bf16.mxu0 0
    %4521 = vmatpush2.bf16.xpose.msra.mxu0 0
    %4522 = vmatprep.subr.bf16.mxu0 0
    %4523 = vmatpush2.bf16.xpose.msra.mxu0 0
    %4524 = vmatprep.subr.bf16.mxu0 0
    %4525 = vmatpush2.bf16.xpose.msra.mxu0 0
    %4526 = vmatprep.subr.bf16.mxu0 0
    %4527 = vmatpush2.bf16.xpose.msra.mxu0 0
    %4528 = vmatprep.mubr.bf16.mxu0 0
    %4529 = vmatmul.mubr.bf16.gmra.mxu0 %v4473
    %v4530 = vpop.f32.mrf.mxu0
    %v4531 = vadd.f32 %v2544, %v4530
    %v4532 = vpop.f32.mrf.mxu0
    %v4533 = vpop.f32.mrf.mxu0
    %v4534 = vadd.f32 %v2545, %v4533
    %v4535 = vpop.f32.mrf.mxu0
    %4536 = vmatprep.mubr.bf16.mxu0 0
    %4537 = vmatmul.mubr.bf16.gmra.mxu0 %v4476
    %v4538 = vpop.f32.mrf.mxu0
    %v4539 = vadd.f32 %v2546, %v4538
    %v4540 = vpop.f32.mrf.mxu0
    %v4541 = vpop.f32.mrf.mxu0
    %v4542 = vadd.f32 %v2547, %v4541
    %v4543 = vpop.f32.mrf.mxu0
    %4544 = vmatprep.mubr.bf16.mxu0 0
    %4545 = vmatmul.mubr.bf16.gmra.mxu0 %v4479
    %v4546 = vpop.f32.mrf.mxu0
    %v4547 = vadd.f32 %v2548, %v4546
    %v4548 = vpop.f32.mrf.mxu0
    %v4549 = vpop.f32.mrf.mxu0
    %v4550 = vadd.f32 %v2549, %v4549
    %v4551 = vpop.f32.mrf.mxu0
    %4552 = vmatprep.mubr.bf16.mxu0 0
    %4553 = vmatmul.mubr.bf16.gmra.mxu0 %v4482
    %v4554 = vpop.f32.mrf.mxu0
    %v4555 = vadd.f32 %v2550, %v4554
    %v4556 = vpop.f32.mrf.mxu0
    %v4557 = vpop.f32.mrf.mxu0
    %v4558 = vadd.f32 %v2551, %v4557
    %v4559 = vpop.f32.mrf.mxu0
    %4560 = vdwg.mxu0
    %v4561 = vsel %vm2686, %v4531, -inf
    %4562 = vmax.xlane.f32.xlu0 %v4561
    %v4563 = vpop.xlane.xlu0 %4562
    %v4564 = vsel %vm2686, %v4534, -inf
    %4565 = vmax.xlane.f32.xlu0 %v4564
    %v4566 = vpop.xlane.xlu0 %4565
    %v4567 = vsel %vm2686, %v4539, -inf
    %4568 = vmax.xlane.f32.xlu0 %v4567
    %v4569 = vpop.xlane.xlu0 %4568
    %v4570 = vsel %vm2686, %v4542, -inf
    %4571 = vmax.xlane.f32.xlu0 %v4570
    %v4572 = vpop.xlane.xlu0 %4571
    %v4573 = vsel %vm2686, %v4547, -inf
    %4574 = vmax.xlane.f32.xlu0 %v4573
    %v4575 = vpop.xlane.xlu0 %4574
    %v4576 = vsel %vm2686, %v4550, -inf
    %4577 = vmax.xlane.f32.xlu0 %v4576
    %v4578 = vpop.xlane.xlu0 %4577
    %v4579 = vsel %vm2686, %v4555, -inf
    %4580 = vmax.xlane.f32.xlu0 %v4579
    %v4581 = vpop.xlane.xlu0 %4580
    %v4582 = vsel %vm2708, %v4558, -inf
    %4583 = vmax.xlane.f32.xlu0 %v4582
    %v4584 = vpop.xlane.xlu0 %4583
    %v4585 = vsub.f32 %v4531, %v4563
    %v4586 = vsub.f32 %v4534, %v4566
    %v4587 = vsub.f32 %v4539, %v4569
    %v4588 = vsub.f32 %v4542, %v4572
    %v4589 = vsub.f32 %v4547, %v4575
    %v4590 = vsub.f32 %v4550, %v4578
    %v4591 = vsub.f32 %v4555, %v4581
    %v4592 = vsub.f32 %v4558, %v4584
    %v4593 = vmul.f32 %v4585, 1.442695
    %v4594 = vpow.pop %v4593
    %v4595 = vmul.f32 %v4586, 1.442695
    %v4596 = vpow.pop %v4595
    %v4597 = vmul.f32 %v4587, 1.442695
    %v4598 = vpow.pop %v4597
    %v4599 = vmul.f32 %v4588, 1.442695
    %v4600 = vpow.pop %v4599
    %v4601 = vmul.f32 %v4589, 1.442695
    %v4602 = vpow.pop %v4601
    %v4603 = vmul.f32 %v4590, 1.442695
    %v4604 = vpow.pop %v4603
    %v4605 = vmul.f32 %v4591, 1.442695
    %v4606 = vpow.pop %v4605
    %v4607 = vmul.f32 %v4592, 1.442695
    %v4608 = vpow.pop %v4607
    %v4609 = vsel %vm2686, %v4594, 0.0
    %4610 = vadd.xlane.f32.xlu0 %v4609
    %v4611 = vpop.xlane.xlu0 %4610
    %v4612 = vsel %vm2686, %v4596, 0.0
    %4613 = vadd.xlane.f32.xlu0 %v4612
    %v4614 = vpop.xlane.xlu0 %4613
    %v4615 = vsel %vm2686, %v4598, 0.0
    %4616 = vadd.xlane.f32.xlu0 %v4615
    %v4617 = vpop.xlane.xlu0 %4616
    %v4618 = vsel %vm2686, %v4600, 0.0
    %4619 = vadd.xlane.f32.xlu0 %v4618
    %v4620 = vpop.xlane.xlu0 %4619
    %v4621 = vsel %vm2686, %v4602, 0.0
    %4622 = vadd.xlane.f32.xlu0 %v4621
    %v4623 = vpop.xlane.xlu0 %4622
    %v4624 = vsel %vm2686, %v4604, 0.0
    %4625 = vadd.xlane.f32.xlu0 %v4624
    %v4626 = vpop.xlane.xlu0 %4625
    %v4627 = vsel %vm2686, %v4606, 0.0
    %4628 = vadd.xlane.f32.xlu0 %v4627
    %v4629 = vpop.xlane.xlu0 %4628
    %v4630 = vsel %vm2708, %v4608, 0.0
    %4631 = vadd.xlane.f32.xlu0 %v4630
    %v4632 = vpop.xlane.xlu0 %4631
    %v4633 = vpack.c.bf16 %v4596, %v4594
    %v4634 = vpack.c.bf16 %v4600, %v4598
    %v4635 = vpack.c.bf16 %v4604, %v4602
    %v4636 = vpack.c.bf16 %v4608, %v4606
    %4641 = vrot.lane.b32.xlu0 %v4436, 64
    %v4642 = vpop.permute.xlu0 %4641
    %4643 = vrot.lane.b32.xlu0 %v4437, 64
    %v4644 = vpop.permute.xlu0 %4643
    %4645 = vrot.lane.b32.xlu0 %v4438, 64
    %v4646 = vpop.permute.xlu0 %4645
    %4647 = vrot.lane.b32.xlu0 %v4439, 64
    %v4648 = vpop.permute.xlu0 %4647
    %v4653 = vsel %vm2686, %v4633, 0
    %v4656 = vsel %vm2686, %v4634, 0
    %v4659 = vsel %vm2686, %v4635, 0
    %v4662 = vsel %vm2686, %v4636, 0
    %v4665 = vsel %vm2776, %v4648, 0
    %4667 = vmatprep.subr.bf16.mxu0 0
    %4668 = vmatpush1.bf16.msra.mxu0 0
    %4669 = vmatprep.subr.bf16.mxu0 0
    %4670 = vmatpush1.bf16.msra.mxu0 0
    %4671 = vmatprep.subr.bf16.mxu0 0
    %4672 = vmatpush1.bf16.msra.mxu0 0
    %4673 = vmatprep.subr.bf16.mxu0 0
    %4674 = vmatpush1.bf16.msra.mxu0 0
    %4675 = vmatprep.subr.bf16.mxu0 0
    %4676 = vmatpush1.bf16.msra.mxu0 %v4665
    %4677 = vmatprep.subr.bf16.mxu0 0
    %4678 = vmatpush1.bf16.msra.mxu0 %v4646
    %4679 = vmatprep.subr.bf16.mxu0 0
    %4680 = vmatpush1.bf16.msra.mxu0 %v4644
    %4681 = vmatprep.subr.bf16.mxu0 0
    %4682 = vmatpush1.bf16.msra.mxu0 %v4642
    %4683 = vmatprep.subr.bf16.mxu0 0
    %4684 = vmatpush2.bf16.msra.mxu0 0
    %4685 = vmatprep.subr.bf16.mxu0 0
    %4686 = vmatpush2.bf16.msra.mxu0 0
    %4687 = vmatprep.subr.bf16.mxu0 0
    %4688 = vmatpush2.bf16.msra.mxu0 0
    %4689 = vmatprep.subr.bf16.mxu0 0
    %4690 = vmatpush2.bf16.msra.mxu0 0
    %4691 = vmatprep.subr.bf16.mxu0 0
    %4692 = vmatpush2.bf16.msra.mxu0 0
    %4693 = vmatprep.subr.bf16.mxu0 0
    %4694 = vmatpush2.bf16.msra.mxu0 0
    %4695 = vmatprep.subr.bf16.mxu0 0
    %4696 = vmatpush2.bf16.msra.mxu0 0
    %4697 = vmatprep.subr.bf16.mxu0 0
    %4698 = vmatpush2.bf16.msra.mxu0 0
    %4699 = vmatprep.mubr.bf16.mxu0 0
    %4700 = vmatmul.mubr.bf16.gmra.mxu0 %v4653
    %v4701 = vpop.f32.mrf.mxu0
    %v4702 = vadd.f32 0.0, %v4701
    %v4703 = vpop.f32.mrf.mxu0
    %v4704 = vpop.f32.mrf.mxu0
    %v4705 = vadd.f32 0.0, %v4704
    %v4706 = vpop.f32.mrf.mxu0
    %4707 = vmatprep.mubr.bf16.mxu0 0
    %4708 = vmatmul.mubr.bf16.gmra.mxu0 %v4656
    %v4709 = vpop.f32.mrf.mxu0
    %v4710 = vadd.f32 0.0, %v4709
    %v4711 = vpop.f32.mrf.mxu0
    %v4712 = vpop.f32.mrf.mxu0
    %v4713 = vadd.f32 0.0, %v4712
    %v4714 = vpop.f32.mrf.mxu0
    %4715 = vmatprep.mubr.bf16.mxu0 0
    %4716 = vmatmul.mubr.bf16.gmra.mxu0 %v4659
    %v4717 = vpop.f32.mrf.mxu0
    %v4718 = vadd.f32 0.0, %v4717
    %v4719 = vpop.f32.mrf.mxu0
    %v4720 = vpop.f32.mrf.mxu0
    %v4721 = vadd.f32 0.0, %v4720
    %v4722 = vpop.f32.mrf.mxu0
    %4723 = vmatprep.mubr.bf16.mxu0 0
    %4724 = vmatmul.mubr.bf16.gmra.mxu0 %v4662
    %v4725 = vpop.f32.mrf.mxu0
    %v4726 = vadd.f32 0.0, %v4725
    %v4727 = vpop.f32.mrf.mxu0
    %v4728 = vpop.f32.mrf.mxu0
    %v4729 = vadd.f32 0.0, %v4728
    %v4730 = vpop.f32.mrf.mxu0
    %4731 = vdwg.mxu0
    %v4732 = vrcp.pop %v4611
    %v4733 = vrcp.pop %v4614
    %v4734 = vrcp.pop %v4617
    %v4735 = vrcp.pop %v4620
    %v4736 = vrcp.pop %v4623
    %v4737 = vrcp.pop %v4626
    %v4738 = vrcp.pop %v4629
    %v4739 = vrcp.pop %v4632
    %v4740 = vmul.f32 %v4702, %v4732
    %v4741 = vmul.f32 %v4705, %v4733
    %v4742 = vmul.f32 %v4710, %v4734
    %v4743 = vmul.f32 %v4713, %v4735
    %v4744 = vmul.f32 %v4718, %v4736
    %v4745 = vmul.f32 %v4721, %v4737
    %v4746 = vmul.f32 %v4726, %v4738
    %v4747 = vmul.f32 %v4729, %v4739
    %4752 = vrot.lane.b32.xlu0 %v4456, 64
    %v4753 = vpop.permute.xlu0 %4752
    %4754 = vrot.lane.b32.xlu0 %v4457, 64
    %v4755 = vpop.permute.xlu0 %4754
    %4756 = vrot.lane.b32.xlu0 %v4458, 64
    %v4757 = vpop.permute.xlu0 %4756
    %4758 = vrot.lane.b32.xlu0 %v4459, 64
    %v4759 = vpop.permute.xlu0 %4758
    %v4761 = vsel %vm2596, %v4753, 0
    %v4764 = vsel %vm2596, %v4755, 0
    %v4767 = vsel %vm2596, %v4757, 0
    %v4770 = vsel %vm2596, %v4759, 0
    %4772 = vmatprep.subr.bf16.mxu0 0
    %4773 = vmatpush1.bf16.xpose.msra.mxu0 0
    %4774 = vmatprep.subr.bf16.mxu0 0
    %4775 = vmatpush1.bf16.xpose.msra.mxu0 0
    %4776 = vmatprep.subr.bf16.mxu0 0
    %4777 = vmatpush1.bf16.xpose.msra.mxu0 0
    %4778 = vmatprep.subr.bf16.mxu0 0
    %4779 = vmatpush1.bf16.xpose.msra.mxu0 0
    %4780 = vmatprep.subr.bf16.mxu0 0
    %4781 = vmatpush1.bf16.xpose.msra.mxu0 %v4494
    %4782 = vmatprep.subr.bf16.mxu0 0
    %4783 = vmatpush1.bf16.xpose.msra.mxu0 %v4491
    %4784 = vmatprep.subr.bf16.mxu0 0
    %4785 = vmatpush1.bf16.xpose.msra.mxu0 %v4488
    %4786 = vmatprep.subr.bf16.mxu0 0
    %4787 = vmatpush1.bf16.xpose.msra.mxu0 %v4485
    %4788 = vmatprep.subr.bf16.mxu0 0
    %4789 = vmatpush2.bf16.xpose.msra.mxu0 0
    %4790 = vmatprep.subr.bf16.mxu0 0
    %4791 = vmatpush2.bf16.xpose.msra.mxu0 0
    %4792 = vmatprep.subr.bf16.mxu0 0
    %4793 = vmatpush2.bf16.xpose.msra.mxu0 0
    %4794 = vmatprep.subr.bf16.mxu0 0
    %4795 = vmatpush2.bf16.xpose.msra.mxu0 0
    %4796 = vmatprep.subr.bf16.mxu0 0
    %4797 = vmatpush2.bf16.xpose.msra.mxu0 0
    %4798 = vmatprep.subr.bf16.mxu0 0
    %4799 = vmatpush2.bf16.xpose.msra.mxu0 0
    %4800 = vmatprep.subr.bf16.mxu0 0
    %4801 = vmatpush2.bf16.xpose.msra.mxu0 0
    %4802 = vmatprep.subr.bf16.mxu0 0
    %4803 = vmatpush2.bf16.xpose.msra.mxu0 0
    %4804 = vmatprep.mubr.bf16.mxu0 0
    %4805 = vmatmul.mubr.bf16.gmra.mxu0 %v4761
    %v4806 = vpop.f32.mrf.mxu0
    %v4807 = vadd.f32 %v2544, %v4806
    %v4808 = vpop.f32.mrf.mxu0
    %v4809 = vpop.f32.mrf.mxu0
    %v4810 = vadd.f32 %v2545, %v4809
    %v4811 = vpop.f32.mrf.mxu0
    %4812 = vmatprep.mubr.bf16.mxu0 0
    %4813 = vmatmul.mubr.bf16.gmra.mxu0 %v4764
    %v4814 = vpop.f32.mrf.mxu0
    %v4815 = vadd.f32 %v2546, %v4814
    %v4816 = vpop.f32.mrf.mxu0
    %v4817 = vpop.f32.mrf.mxu0
    %v4818 = vadd.f32 %v2547, %v4817
    %v4819 = vpop.f32.mrf.mxu0
    %4820 = vmatprep.mubr.bf16.mxu0 0
    %4821 = vmatmul.mubr.bf16.gmra.mxu0 %v4767
    %v4822 = vpop.f32.mrf.mxu0
    %v4823 = vadd.f32 %v2548, %v4822
    %v4824 = vpop.f32.mrf.mxu0
    %v4825 = vpop.f32.mrf.mxu0
    %v4826 = vadd.f32 %v2549, %v4825
    %v4827 = vpop.f32.mrf.mxu0
    %4828 = vmatprep.mubr.bf16.mxu0 0
    %4829 = vmatmul.mubr.bf16.gmra.mxu0 %v4770
    %v4830 = vpop.f32.mrf.mxu0
    %v4831 = vadd.f32 %v2550, %v4830
    %v4832 = vpop.f32.mrf.mxu0
    %v4833 = vpop.f32.mrf.mxu0
    %v4834 = vadd.f32 %v2551, %v4833
    %v4835 = vpop.f32.mrf.mxu0
    %4836 = vdwg.mxu0
    %v4837 = vsel %vm2686, %v4807, -inf
    %4838 = vmax.xlane.f32.xlu0 %v4837
    %v4839 = vpop.xlane.xlu0 %4838
    %v4840 = vsel %vm2686, %v4810, -inf
    %4841 = vmax.xlane.f32.xlu0 %v4840
    %v4842 = vpop.xlane.xlu0 %4841
    %v4843 = vsel %vm2686, %v4815, -inf
    %4844 = vmax.xlane.f32.xlu0 %v4843
    %v4845 = vpop.xlane.xlu0 %4844
    %v4846 = vsel %vm2686, %v4818, -inf
    %4847 = vmax.xlane.f32.xlu0 %v4846
    %v4848 = vpop.xlane.xlu0 %4847
    %v4849 = vsel %vm2686, %v4823, -inf
    %4850 = vmax.xlane.f32.xlu0 %v4849
    %v4851 = vpop.xlane.xlu0 %4850
    %v4852 = vsel %vm2686, %v4826, -inf
    %4853 = vmax.xlane.f32.xlu0 %v4852
    %v4854 = vpop.xlane.xlu0 %4853
    %v4855 = vsel %vm2686, %v4831, -inf
    %4856 = vmax.xlane.f32.xlu0 %v4855
    %v4857 = vpop.xlane.xlu0 %4856
    %v4858 = vsel %vm2708, %v4834, -inf
    %4859 = vmax.xlane.f32.xlu0 %v4858
    %v4860 = vpop.xlane.xlu0 %4859
    %v4861 = vsub.f32 %v4807, %v4839
    %v4862 = vsub.f32 %v4810, %v4842
    %v4863 = vsub.f32 %v4815, %v4845
    %v4864 = vsub.f32 %v4818, %v4848
    %v4865 = vsub.f32 %v4823, %v4851
    %v4866 = vsub.f32 %v4826, %v4854
    %v4867 = vsub.f32 %v4831, %v4857
    %v4868 = vsub.f32 %v4834, %v4860
    %v4869 = vmul.f32 %v4861, 1.442695
    %v4870 = vpow.pop %v4869
    %v4871 = vmul.f32 %v4862, 1.442695
    %v4872 = vpow.pop %v4871
    %v4873 = vmul.f32 %v4863, 1.442695
    %v4874 = vpow.pop %v4873
    %v4875 = vmul.f32 %v4864, 1.442695
    %v4876 = vpow.pop %v4875
    %v4877 = vmul.f32 %v4865, 1.442695
    %v4878 = vpow.pop %v4877
    %v4879 = vmul.f32 %v4866, 1.442695
    %v4880 = vpow.pop %v4879
    %v4881 = vmul.f32 %v4867, 1.442695
    %v4882 = vpow.pop %v4881
    %v4883 = vmul.f32 %v4868, 1.442695
    %v4884 = vpow.pop %v4883
    %v4885 = vsel %vm2686, %v4870, 0.0
    %4886 = vadd.xlane.f32.xlu0 %v4885
    %v4887 = vpop.xlane.xlu0 %4886
    %v4888 = vsel %vm2686, %v4872, 0.0
    %4889 = vadd.xlane.f32.xlu0 %v4888
    %v4890 = vpop.xlane.xlu0 %4889
    %v4891 = vsel %vm2686, %v4874, 0.0
    %4892 = vadd.xlane.f32.xlu0 %v4891
    %v4893 = vpop.xlane.xlu0 %4892
    %v4894 = vsel %vm2686, %v4876, 0.0
    %4895 = vadd.xlane.f32.xlu0 %v4894
    %v4896 = vpop.xlane.xlu0 %4895
    %v4897 = vsel %vm2686, %v4878, 0.0
    %4898 = vadd.xlane.f32.xlu0 %v4897
    %v4899 = vpop.xlane.xlu0 %4898
    %v4900 = vsel %vm2686, %v4880, 0.0
    %4901 = vadd.xlane.f32.xlu0 %v4900
    %v4902 = vpop.xlane.xlu0 %4901
    %v4903 = vsel %vm2686, %v4882, 0.0
    %4904 = vadd.xlane.f32.xlu0 %v4903
    %v4905 = vpop.xlane.xlu0 %4904
    %v4906 = vsel %vm2708, %v4884, 0.0
    %4907 = vadd.xlane.f32.xlu0 %v4906
    %v4908 = vpop.xlane.xlu0 %4907
    %v4909 = vpack.c.bf16 %v4872, %v4870
    %v4910 = vpack.c.bf16 %v4876, %v4874
    %v4911 = vpack.c.bf16 %v4880, %v4878
    %v4912 = vpack.c.bf16 %v4884, %v4882
    %v4914 = vsel %vm2686, %v4909, 0
    %v4917 = vsel %vm2686, %v4910, 0
    %v4920 = vsel %vm2686, %v4911, 0
    %v4923 = vsel %vm2686, %v4912, 0
    %4925 = vmatprep.subr.bf16.mxu0 0
    %4926 = vmatpush1.bf16.msra.mxu0 0
    %4927 = vmatprep.subr.bf16.mxu0 0
    %4928 = vmatpush1.bf16.msra.mxu0 0
    %4929 = vmatprep.subr.bf16.mxu0 0
    %4930 = vmatpush1.bf16.msra.mxu0 0
    %4931 = vmatprep.subr.bf16.mxu0 0
    %4932 = vmatpush1.bf16.msra.mxu0 0
    %4933 = vmatprep.subr.bf16.mxu0 0
    %4934 = vmatpush1.bf16.msra.mxu0 %v4665
    %4935 = vmatprep.subr.bf16.mxu0 0
    %4936 = vmatpush1.bf16.msra.mxu0 %v4646
    %4937 = vmatprep.subr.bf16.mxu0 0
    %4938 = vmatpush1.bf16.msra.mxu0 %v4644
    %4939 = vmatprep.subr.bf16.mxu0 0
    %4940 = vmatpush1.bf16.msra.mxu0 %v4642
    %4941 = vmatprep.subr.bf16.mxu0 0
    %4942 = vmatpush2.bf16.msra.mxu0 0
    %4943 = vmatprep.subr.bf16.mxu0 0
    %4944 = vmatpush2.bf16.msra.mxu0 0
    %4945 = vmatprep.subr.bf16.mxu0 0
    %4946 = vmatpush2.bf16.msra.mxu0 0
    %4947 = vmatprep.subr.bf16.mxu0 0
    %4948 = vmatpush2.bf16.msra.mxu0 0
    %4949 = vmatprep.subr.bf16.mxu0 0
    %4950 = vmatpush2.bf16.msra.mxu0 0
    %4951 = vmatprep.subr.bf16.mxu0 0
    %4952 = vmatpush2.bf16.msra.mxu0 0
    %4953 = vmatprep.subr.bf16.mxu0 0
    %4954 = vmatpush2.bf16.msra.mxu0 0
    %4955 = vmatprep.subr.bf16.mxu0 0
    %4956 = vmatpush2.bf16.msra.mxu0 0
    %4957 = vmatprep.mubr.bf16.mxu0 0
    %4958 = vmatmul.mubr.bf16.gmra.mxu0 %v4914
    %v4959 = vpop.f32.mrf.mxu0
    %v4960 = vadd.f32 0.0, %v4959
    %v4961 = vpop.f32.mrf.mxu0
    %v4962 = vpop.f32.mrf.mxu0
    %v4963 = vadd.f32 0.0, %v4962
    %v4964 = vpop.f32.mrf.mxu0
    %4965 = vmatprep.mubr.bf16.mxu0 0
    %4966 = vmatmul.mubr.bf16.gmra.mxu0 %v4917
    %v4967 = vpop.f32.mrf.mxu0
    %v4968 = vadd.f32 0.0, %v4967
    %v4969 = vpop.f32.mrf.mxu0
    %v4970 = vpop.f32.mrf.mxu0
    %v4971 = vadd.f32 0.0, %v4970
    %v4972 = vpop.f32.mrf.mxu0
    %4973 = vmatprep.mubr.bf16.mxu0 0
    %4974 = vmatmul.mubr.bf16.gmra.mxu0 %v4920
    %v4975 = vpop.f32.mrf.mxu0
    %v4976 = vadd.f32 0.0, %v4975
    %v4977 = vpop.f32.mrf.mxu0
    %v4978 = vpop.f32.mrf.mxu0
    %v4979 = vadd.f32 0.0, %v4978
    %v4980 = vpop.f32.mrf.mxu0
    %4981 = vmatprep.mubr.bf16.mxu0 0
    %4982 = vmatmul.mubr.bf16.gmra.mxu0 %v4923
    %v4983 = vpop.f32.mrf.mxu0
    %v4984 = vadd.f32 0.0, %v4983
    %v4985 = vpop.f32.mrf.mxu0
    %v4986 = vpop.f32.mrf.mxu0
    %v4987 = vadd.f32 0.0, %v4986
    %v4988 = vpop.f32.mrf.mxu0
    %4989 = vdwg.mxu0
    %v4990 = vrcp.pop %v4887
    %v4991 = vrcp.pop %v4890
    %v4992 = vrcp.pop %v4893
    %v4993 = vrcp.pop %v4896
    %v4994 = vrcp.pop %v4899
    %v4995 = vrcp.pop %v4902
    %v4996 = vrcp.pop %v4905
    %v4997 = vrcp.pop %v4908
    %v4998 = vmul.f32 %v4960, %v4990
    %v4999 = vmul.f32 %v4963, %v4991
    %v5000 = vmul.f32 %v4968, %v4992
    %v5001 = vmul.f32 %v4971, %v4993
    %v5002 = vmul.f32 %v4976, %v4994
    %v5003 = vmul.f32 %v4979, %v4995
    %v5004 = vmul.f32 %v4984, %v4996
    %v5005 = vmul.f32 %v4987, %v4997
    %5014 = vrot.lane.b32.xlu0 %v4998, 64
    %v5015 = vpop.permute.xlu0 %5014
    %5016 = vrot.lane.b32.xlu0 %v4999, 64
    %v5017 = vpop.permute.xlu0 %5016
    %5018 = vrot.lane.b32.xlu0 %v5000, 64
    %v5019 = vpop.permute.xlu0 %5018
    %5020 = vrot.lane.b32.xlu0 %v5001, 64
    %v5021 = vpop.permute.xlu0 %5020
    %5022 = vrot.lane.b32.xlu0 %v5002, 64
    %v5023 = vpop.permute.xlu0 %5022
    %5024 = vrot.lane.b32.xlu0 %v5003, 64
    %v5025 = vpop.permute.xlu0 %5024
    %5026 = vrot.lane.b32.xlu0 %v5004, 64
    %v5027 = vpop.permute.xlu0 %5026
    %5028 = vrot.lane.b32.xlu0 %v5005, 64
    %v5029 = vpop.permute.xlu0 %5028
    %v5038 = vsel %vm2596, %v4740, %v5015
    %v5039 = vsel %vm2596, %v4741, %v5017
    %v5040 = vsel %vm2596, %v4742, %v5019
    %v5041 = vsel %vm2596, %v4743, %v5021
    %v5042 = vsel %vm2596, %v4744, %v5023
    %v5043 = vsel %vm2596, %v4745, %v5025
    %v5044 = vsel %vm2596, %v4746, %v5027
    %v5045 = vsel %vm2596, %v4747, %v5029
    %5046 = vst [vmem:[#allocation4 + $0x18] sm:$0xff] %v5038
    %5047 = vst [vmem:[#allocation4 + $0x38] sm:$0xff] %v5039
    %5048 = vst [vmem:[#allocation4 + $0x58] sm:$0xff] %v5040
    %5049 = vst [vmem:[#allocation4 + $0x78] sm:$0xff] %v5041
    %5050 = vst [vmem:[#allocation4 + $0x98] sm:$0xff] %v5042
    %5051 = vst [vmem:[#allocation4 + $0xb8] sm:$0xff] %v5043
    %5052 = vst [vmem:[#allocation4 + $0xd8] sm:$0xff] %v5044
    %5053 = vst [vmem:[#allocation4 + $0xf8] sm:$0xf] %v5045
    %s5054 = smul.u32 4, 64
    %s5055 = smul.u32 %s5054, 4
    %s5056 = sshll.u32 %s5055, 4
    %5057 = dma.done [#allocation7], %s5056
    %v5058 = vld [vmem:[#allocation4] sm:$0xff]
    %v5059 = vld [vmem:[#allocation4 + $0x8] sm:$0xff]
    %v5060 = vld [vmem:[#allocation4 + $0x10] sm:$0xff]
    %v5061 = vld [vmem:[#allocation4 + $0x18] sm:$0xff]
    %v5062 = vld [vmem:[#allocation4 + $0x20] sm:$0xff]
    %v5063 = vld [vmem:[#allocation4 + $0x28] sm:$0xff]
    %v5064 = vld [vmem:[#allocation4 + $0x30] sm:$0xff]
    %v5065 = vld [vmem:[#allocation4 + $0x38] sm:$0xff]
    %v5066 = vld [vmem:[#allocation4 + $0x40] sm:$0xff]
    %v5067 = vld [vmem:[#allocation4 + $0x48] sm:$0xff]
    %v5068 = vld [vmem:[#allocation4 + $0x50] sm:$0xff]
    %v5069 = vld [vmem:[#allocation4 + $0x58] sm:$0xff]
    %v5070 = vld [vmem:[#allocation4 + $0x60] sm:$0xff]
    %v5071 = vld [vmem:[#allocation4 + $0x68] sm:$0xff]
    %v5072 = vld [vmem:[#allocation4 + $0x70] sm:$0xff]
    %v5073 = vld [vmem:[#allocation4 + $0x78] sm:$0xff]
    %v5074 = vld [vmem:[#allocation4 + $0x80] sm:$0xff]
    %v5075 = vld [vmem:[#allocation4 + $0x88] sm:$0xff]
    %v5076 = vld [vmem:[#allocation4 + $0x90] sm:$0xff]
    %v5077 = vld [vmem:[#allocation4 + $0x98] sm:$0xff]
    %v5078 = vld [vmem:[#allocation4 + $0xa0] sm:$0xff]
    %v5079 = vld [vmem:[#allocation4 + $0xa8] sm:$0xff]
    %v5080 = vld [vmem:[#allocation4 + $0xb0] sm:$0xff]
    %v5081 = vld [vmem:[#allocation4 + $0xb8] sm:$0xff]
    %v5082 = vld [vmem:[#allocation4 + $0xc0] sm:$0xff]
    %v5083 = vld [vmem:[#allocation4 + $0xc8] sm:$0xff]
    %v5084 = vld [vmem:[#allocation4 + $0xd0] sm:$0xff]
    %v5085 = vld [vmem:[#allocation4 + $0xd8] sm:$0xff]
    %v5086 = vld [vmem:[#allocation4 + $0xe0] sm:$0xf]
    %v5087 = vld [vmem:[#allocation4 + $0xe8] sm:$0xf]
    %v5088 = vld [vmem:[#allocation4 + $0xf0] sm:$0xf]
    %v5089 = vld [vmem:[#allocation4 + $0xf8] sm:$0xf]
    %v5090 = vpack.c.bf16 %v5062, %v5058
    %v5091 = vpack.c.bf16 %v5063, %v5059
    %v5092 = vpack.c.bf16 %v5064, %v5060
    %v5093 = vpack.c.bf16 %v5065, %v5061
    %v5094 = vpack.c.bf16 %v5070, %v5066
    %v5095 = vpack.c.bf16 %v5071, %v5067
    %v5096 = vpack.c.bf16 %v5072, %v5068
    %v5097 = vpack.c.bf16 %v5073, %v5069
    %v5098 = vpack.c.bf16 %v5078, %v5074
    %v5099 = vpack.c.bf16 %v5079, %v5075
    %v5100 = vpack.c.bf16 %v5080, %v5076
    %v5101 = vpack.c.bf16 %v5081, %v5077
    %v5102 = vpack.c.bf16 %v5086, %v5082
    %v5103 = vpack.c.bf16 %v5087, %v5083
    %v5104 = vpack.c.bf16 %v5088, %v5084
    %v5105 = vpack.c.bf16 %v5089, %v5085
    %v5106 = vld [vmem:[#allocation2] sm:$0xff]
    %v5107 = vld [vmem:[#allocation2 + $0x8] sm:$0xff]
    %v5108 = vld [vmem:[#allocation2 + $0x10] sm:$0xff]
    %v5109 = vld [vmem:[#allocation2 + $0x18] sm:$0xff]
    %v5110 = vld [vmem:[#allocation2 + $0x20] sm:$0xff]
    %v5111 = vld [vmem:[#allocation2 + $0x28] sm:$0xff]
    %v5112 = vld [vmem:[#allocation2 + $0x30] sm:$0xff]
    %v5113 = vld [vmem:[#allocation2 + $0x38] sm:$0xff]
    %v5114 = vld [vmem:[#allocation2 + $0x40] sm:$0xff]
    %v5115 = vld [vmem:[#allocation2 + $0x48] sm:$0xff]
    %v5116 = vld [vmem:[#allocation2 + $0x50] sm:$0xff]
    %v5117 = vld [vmem:[#allocation2 + $0x58] sm:$0xff]
    %v5118 = vld [vmem:[#allocation2 + $0x60] sm:$0xff]
    %v5119 = vld [vmem:[#allocation2 + $0x68] sm:$0xff]
    %v5120 = vld [vmem:[#allocation2 + $0x70] sm:$0xff]
    %v5121 = vld [vmem:[#allocation2 + $0x78] sm:$0xff]
    %v5122 = vld [vmem:[#allocation2 + $0x80] sm:$0xff]
    %v5123 = vld [vmem:[#allocation2 + $0x88] sm:$0xff]
    %v5124 = vld [vmem:[#allocation2 + $0x90] sm:$0xff]
    %v5125 = vld [vmem:[#allocation2 + $0x98] sm:$0xff]
    %v5126 = vld [vmem:[#allocation2 + $0xa0] sm:$0xff]
    %v5127 = vld [vmem:[#allocation2 + $0xa8] sm:$0xff]
    %v5128 = vld [vmem:[#allocation2 + $0xb0] sm:$0xff]
    %v5129 = vld [vmem:[#allocation2 + $0xb8] sm:$0xff]
    %v5130 = vld [vmem:[#allocation2 + $0xc0] sm:$0xff]
    %v5131 = vld [vmem:[#allocation2 + $0xc8] sm:$0xff]
    %v5132 = vld [vmem:[#allocation2 + $0xd0] sm:$0xff]
    %v5133 = vld [vmem:[#allocation2 + $0xd8] sm:$0xff]
    %v5134 = vld [vmem:[#allocation2 + $0xe0] sm:$0xff]
    %v5135 = vld [vmem:[#allocation2 + $0xe8] sm:$0xff]
    %v5136 = vld [vmem:[#allocation2 + $0xf0] sm:$0xff]
    %v5137 = vld [vmem:[#allocation2 + $0xf8] sm:$0xff]
    %v5138 = vld [vmem:[#allocation2 + $0x100] sm:$0xff]
    %v5139 = vld [vmem:[#allocation2 + $0x108] sm:$0xff]
    %v5140 = vld [vmem:[#allocation2 + $0x110] sm:$0xff]
    %v5141 = vld [vmem:[#allocation2 + $0x118] sm:$0xff]
    %v5142 = vld [vmem:[#allocation2 + $0x120] sm:$0xff]
    %v5143 = vld [vmem:[#allocation2 + $0x128] sm:$0xff]
    %v5144 = vld [vmem:[#allocation2 + $0x130] sm:$0xff]
    %v5145 = vld [vmem:[#allocation2 + $0x138] sm:$0xff]
    %v5146 = vld [vmem:[#allocation2 + $0x140] sm:$0xff]
    %v5147 = vld [vmem:[#allocation2 + $0x148] sm:$0xff]
    %v5148 = vld [vmem:[#allocation2 + $0x150] sm:$0xff]
    %v5149 = vld [vmem:[#allocation2 + $0x158] sm:$0xff]
    %v5150 = vld [vmem:[#allocation2 + $0x160] sm:$0xff]
    %v5151 = vld [vmem:[#allocation2 + $0x168] sm:$0xff]
    %v5152 = vld [vmem:[#allocation2 + $0x170] sm:$0xff]
    %v5153 = vld [vmem:[#allocation2 + $0x178] sm:$0xff]
    %v5154 = vld [vmem:[#allocation2 + $0x180] sm:$0xff]
    %v5155 = vld [vmem:[#allocation2 + $0x188] sm:$0xff]
    %v5156 = vld [vmem:[#allocation2 + $0x190] sm:$0xff]
    %v5157 = vld [vmem:[#allocation2 + $0x198] sm:$0xff]
    %v5158 = vld [vmem:[#allocation2 + $0x1a0] sm:$0xff]
    %v5159 = vld [vmem:[#allocation2 + $0x1a8] sm:$0xff]
    %v5160 = vld [vmem:[#allocation2 + $0x1b0] sm:$0xff]
    %v5161 = vld [vmem:[#allocation2 + $0x1b8] sm:$0xff]
    %v5162 = vld [vmem:[#allocation2 + $0x1c0] sm:$0xff]
    %v5163 = vld [vmem:[#allocation2 + $0x1c8] sm:$0xff]
    %v5164 = vld [vmem:[#allocation2 + $0x1d0] sm:$0xff]
    %v5165 = vld [vmem:[#allocation2 + $0x1d8] sm:$0xff]
    %v5166 = vld [vmem:[#allocation2 + $0x1e0] sm:$0xff]
    %v5167 = vld [vmem:[#allocation2 + $0x1e8] sm:$0xff]
    %v5168 = vld [vmem:[#allocation2 + $0x1f0] sm:$0xff]
    %v5169 = vld [vmem:[#allocation2 + $0x1f8] sm:$0xff]
    %v5170 = vld [vmem:[#allocation2 + $0x200] sm:$0xff]
    %v5171 = vld [vmem:[#allocation2 + $0x208] sm:$0xff]
    %v5172 = vld [vmem:[#allocation2 + $0x210] sm:$0xff]
    %v5173 = vld [vmem:[#allocation2 + $0x218] sm:$0xff]
    %v5174 = vld [vmem:[#allocation2 + $0x220] sm:$0xff]
    %v5175 = vld [vmem:[#allocation2 + $0x228] sm:$0xff]
    %v5176 = vld [vmem:[#allocation2 + $0x230] sm:$0xff]
    %v5177 = vld [vmem:[#allocation2 + $0x238] sm:$0xff]
    %v5178 = vld [vmem:[#allocation2 + $0x240] sm:$0xff]
    %v5179 = vld [vmem:[#allocation2 + $0x248] sm:$0xff]
    %v5180 = vld [vmem:[#allocation2 + $0x250] sm:$0xff]
    %v5181 = vld [vmem:[#allocation2 + $0x258] sm:$0xff]
    %v5182 = vld [vmem:[#allocation2 + $0x260] sm:$0xff]
    %v5183 = vld [vmem:[#allocation2 + $0x268] sm:$0xff]
    %v5184 = vld [vmem:[#allocation2 + $0x270] sm:$0xff]
    %v5185 = vld [vmem:[#allocation2 + $0x278] sm:$0xff]
    %v5186 = vld [vmem:[#allocation2 + $0x280] sm:$0xff]
    %v5187 = vld [vmem:[#allocation2 + $0x288] sm:$0xff]
    %v5188 = vld [vmem:[#allocation2 + $0x290] sm:$0xff]
    %v5189 = vld [vmem:[#allocation2 + $0x298] sm:$0xff]
    %v5190 = vld [vmem:[#allocation2 + $0x2a0] sm:$0xff]
    %v5191 = vld [vmem:[#allocation2 + $0x2a8] sm:$0xff]
    %v5192 = vld [vmem:[#allocation2 + $0x2b0] sm:$0xff]
    %v5193 = vld [vmem:[#allocation2 + $0x2b8] sm:$0xff]
    %v5194 = vld [vmem:[#allocation2 + $0x2c0] sm:$0xff]
    %v5195 = vld [vmem:[#allocation2 + $0x2c8] sm:$0xff]
    %v5196 = vld [vmem:[#allocation2 + $0x2d0] sm:$0xff]
    %v5197 = vld [vmem:[#allocation2 + $0x2d8] sm:$0xff]
    %v5198 = vld [vmem:[#allocation2 + $0x2e0] sm:$0xff]
    %v5199 = vld [vmem:[#allocation2 + $0x2e8] sm:$0xff]
    %v5200 = vld [vmem:[#allocation2 + $0x2f0] sm:$0xff]
    %v5201 = vld [vmem:[#allocation2 + $0x2f8] sm:$0xff]
    %v5202 = vld [vmem:[#allocation2 + $0x300] sm:$0xff]
    %v5203 = vld [vmem:[#allocation2 + $0x308] sm:$0xff]
    %v5204 = vld [vmem:[#allocation2 + $0x310] sm:$0xff]
    %v5205 = vld [vmem:[#allocation2 + $0x318] sm:$0xff]
    %v5206 = vld [vmem:[#allocation2 + $0x320] sm:$0xff]
    %v5207 = vld [vmem:[#allocation2 + $0x328] sm:$0xff]
    %v5208 = vld [vmem:[#allocation2 + $0x330] sm:$0xff]
    %v5209 = vld [vmem:[#allocation2 + $0x338] sm:$0xff]
    %v5210 = vld [vmem:[#allocation2 + $0x340] sm:$0xff]
    %v5211 = vld [vmem:[#allocation2 + $0x348] sm:$0xff]
    %v5212 = vld [vmem:[#allocation2 + $0x350] sm:$0xff]
    %v5213 = vld [vmem:[#allocation2 + $0x358] sm:$0xff]
    %v5214 = vld [vmem:[#allocation2 + $0x360] sm:$0xff]
    %v5215 = vld [vmem:[#allocation2 + $0x368] sm:$0xff]
    %v5216 = vld [vmem:[#allocation2 + $0x370] sm:$0xff]
    %v5217 = vld [vmem:[#allocation2 + $0x378] sm:$0xff]
    %v5218 = vld [vmem:[#allocation2 + $0x380] sm:$0xff]
    %v5219 = vld [vmem:[#allocation2 + $0x388] sm:$0xff]
    %v5220 = vld [vmem:[#allocation2 + $0x390] sm:$0xff]
    %v5221 = vld [vmem:[#allocation2 + $0x398] sm:$0xff]
    %v5222 = vld [vmem:[#allocation2 + $0x3a0] sm:$0xff]
    %v5223 = vld [vmem:[#allocation2 + $0x3a8] sm:$0xff]
    %v5224 = vld [vmem:[#allocation2 + $0x3b0] sm:$0xff]
    %v5225 = vld [vmem:[#allocation2 + $0x3b8] sm:$0xff]
    %v5226 = vld [vmem:[#allocation2 + $0x3c0] sm:$0xff]
    %v5227 = vld [vmem:[#allocation2 + $0x3c8] sm:$0xff]
    %v5228 = vld [vmem:[#allocation2 + $0x3d0] sm:$0xff]
    %v5229 = vld [vmem:[#allocation2 + $0x3d8] sm:$0xff]
    %v5230 = vld [vmem:[#allocation2 + $0x3e0] sm:$0xff]
    %v5231 = vld [vmem:[#allocation2 + $0x3e8] sm:$0xff]
    %v5232 = vld [vmem:[#allocation2 + $0x3f0] sm:$0xff]
    %v5233 = vld [vmem:[#allocation2 + $0x3f8] sm:$0xff]
    %v5234 = vld [vmem:[%s4] sm:$0xf]
    %v5236 = vlaneseq
    %v5237 = vshrl.u32 %v5236, 7
    %v5238 = vsub.s32 0, %v5237
    %v5239 = vrot.slane %v5234, %v5238
    %v5240 = vlaneseq
    %v5241 = vshrl.u32 %v5240, 7
    %v5242 = vsub.s32 1, %v5241
    %v5243 = vrot.slane %v5234, %v5242
    %v5244 = vlaneseq
    %v5245 = vshrl.u32 %v5244, 7
    %v5246 = vsub.s32 2, %v5245
    %v5247 = vrot.slane %v5234, %v5246
    %v5248 = vlaneseq
    %v5249 = vshrl.u32 %v5248, 7
    %v5250 = vsub.s32 3, %v5249
    %v5251 = vrot.slane %v5234, %v5250
    %v5384 = vunpack.c.l.b16 %v5106
    %v5385 = vunpack.c.h.b16 %v5106
    %v5386 = vunpack.c.l.b16 %v5107
    %v5387 = vunpack.c.h.b16 %v5107
    %v5388 = vunpack.c.l.b16 %v5108
    %v5389 = vunpack.c.h.b16 %v5108
    %v5390 = vunpack.c.l.b16 %v5109
    %v5391 = vunpack.c.h.b16 %v5109
    %v5392 = vunpack.c.l.b16 %v5110
    %v5393 = vunpack.c.h.b16 %v5110
    %v5394 = vunpack.c.l.b16 %v5111
    %v5395 = vunpack.c.h.b16 %v5111
    %v5396 = vunpack.c.l.b16 %v5112
    %v5397 = vunpack.c.h.b16 %v5112
    %v5398 = vunpack.c.l.b16 %v5113
    %v5399 = vunpack.c.h.b16 %v5113
    %v5400 = vunpack.c.l.b16 %v5114
    %v5401 = vunpack.c.h.b16 %v5114
    %v5402 = vunpack.c.l.b16 %v5115
    %v5403 = vunpack.c.h.b16 %v5115
    %v5404 = vunpack.c.l.b16 %v5116
    %v5405 = vunpack.c.h.b16 %v5116
    %v5406 = vunpack.c.l.b16 %v5117
    %v5407 = vunpack.c.h.b16 %v5117
    %v5408 = vunpack.c.l.b16 %v5118
    %v5409 = vunpack.c.h.b16 %v5118
    %v5410 = vunpack.c.l.b16 %v5119
    %v5411 = vunpack.c.h.b16 %v5119
    %v5412 = vunpack.c.l.b16 %v5120
    %v5413 = vunpack.c.h.b16 %v5120
    %v5414 = vunpack.c.l.b16 %v5121
    %v5415 = vunpack.c.h.b16 %v5121
    %v5416 = vunpack.c.l.b16 %v5122
    %v5417 = vunpack.c.h.b16 %v5122
    %v5418 = vunpack.c.l.b16 %v5123
    %v5419 = vunpack.c.h.b16 %v5123
    %v5420 = vunpack.c.l.b16 %v5124
    %v5421 = vunpack.c.h.b16 %v5124
    %v5422 = vunpack.c.l.b16 %v5125
    %v5423 = vunpack.c.h.b16 %v5125
    %v5424 = vunpack.c.l.b16 %v5126
    %v5425 = vunpack.c.h.b16 %v5126
    %v5426 = vunpack.c.l.b16 %v5127
    %v5427 = vunpack.c.h.b16 %v5127
    %v5428 = vunpack.c.l.b16 %v5128
    %v5429 = vunpack.c.h.b16 %v5128
    %v5430 = vunpack.c.l.b16 %v5129
    %v5431 = vunpack.c.h.b16 %v5129
    %v5432 = vunpack.c.l.b16 %v5130
    %v5433 = vunpack.c.h.b16 %v5130
    %v5434 = vunpack.c.l.b16 %v5131
    %v5435 = vunpack.c.h.b16 %v5131
    %v5436 = vunpack.c.l.b16 %v5132
    %v5437 = vunpack.c.h.b16 %v5132
    %v5438 = vunpack.c.l.b16 %v5133
    %v5439 = vunpack.c.h.b16 %v5133
    %v5440 = vunpack.c.l.b16 %v5134
    %v5441 = vunpack.c.h.b16 %v5134
    %v5442 = vunpack.c.l.b16 %v5135
    %v5443 = vunpack.c.h.b16 %v5135
    %v5444 = vunpack.c.l.b16 %v5136
    %v5445 = vunpack.c.h.b16 %v5136
    %v5446 = vunpack.c.l.b16 %v5137
    %v5447 = vunpack.c.h.b16 %v5137
    %v5448 = vunpack.c.l.b16 %v5138
    %v5449 = vunpack.c.h.b16 %v5138
    %v5450 = vunpack.c.l.b16 %v5139
    %v5451 = vunpack.c.h.b16 %v5139
    %v5452 = vunpack.c.l.b16 %v5140
    %v5453 = vunpack.c.h.b16 %v5140
    %v5454 = vunpack.c.l.b16 %v5141
    %v5455 = vunpack.c.h.b16 %v5141
    %v5456 = vunpack.c.l.b16 %v5142
    %v5457 = vunpack.c.h.b16 %v5142
    %v5458 = vunpack.c.l.b16 %v5143
    %v5459 = vunpack.c.h.b16 %v5143
    %v5460 = vunpack.c.l.b16 %v5144
    %v5461 = vunpack.c.h.b16 %v5144
    %v5462 = vunpack.c.l.b16 %v5145
    %v5463 = vunpack.c.h.b16 %v5145
    %v5464 = vunpack.c.l.b16 %v5146
    %v5465 = vunpack.c.h.b16 %v5146
    %v5466 = vunpack.c.l.b16 %v5147
    %v5467 = vunpack.c.h.b16 %v5147
    %v5468 = vunpack.c.l.b16 %v5148
    %v5469 = vunpack.c.h.b16 %v5148
    %v5470 = vunpack.c.l.b16 %v5149
    %v5471 = vunpack.c.h.b16 %v5149
    %v5472 = vunpack.c.l.b16 %v5150
    %v5473 = vunpack.c.h.b16 %v5150
    %v5474 = vunpack.c.l.b16 %v5151
    %v5475 = vunpack.c.h.b16 %v5151
    %v5476 = vunpack.c.l.b16 %v5152
    %v5477 = vunpack.c.h.b16 %v5152
    %v5478 = vunpack.c.l.b16 %v5153
    %v5479 = vunpack.c.h.b16 %v5153
    %v5480 = vunpack.c.l.b16 %v5154
    %v5481 = vunpack.c.h.b16 %v5154
    %v5482 = vunpack.c.l.b16 %v5155
    %v5483 = vunpack.c.h.b16 %v5155
    %v5484 = vunpack.c.l.b16 %v5156
    %v5485 = vunpack.c.h.b16 %v5156
    %v5486 = vunpack.c.l.b16 %v5157
    %v5487 = vunpack.c.h.b16 %v5157
    %v5488 = vunpack.c.l.b16 %v5158
    %v5489 = vunpack.c.h.b16 %v5158
    %v5490 = vunpack.c.l.b16 %v5159
    %v5491 = vunpack.c.h.b16 %v5159
    %v5492 = vunpack.c.l.b16 %v5160
    %v5493 = vunpack.c.h.b16 %v5160
    %v5494 = vunpack.c.l.b16 %v5161
    %v5495 = vunpack.c.h.b16 %v5161
    %v5496 = vunpack.c.l.b16 %v5162
    %v5497 = vunpack.c.h.b16 %v5162
    %v5498 = vunpack.c.l.b16 %v5163
    %v5499 = vunpack.c.h.b16 %v5163
    %v5500 = vunpack.c.l.b16 %v5164
    %v5501 = vunpack.c.h.b16 %v5164
    %v5502 = vunpack.c.l.b16 %v5165
    %v5503 = vunpack.c.h.b16 %v5165
    %v5504 = vunpack.c.l.b16 %v5166
    %v5505 = vunpack.c.h.b16 %v5166
    %v5506 = vunpack.c.l.b16 %v5167
    %v5507 = vunpack.c.h.b16 %v5167
    %v5508 = vunpack.c.l.b16 %v5168
    %v5509 = vunpack.c.h.b16 %v5168
    %v5510 = vunpack.c.l.b16 %v5169
    %v5511 = vunpack.c.h.b16 %v5169
    %v5512 = vunpack.c.l.b16 %v5170
    %v5513 = vunpack.c.h.b16 %v5170
    %v5514 = vunpack.c.l.b16 %v5171
    %v5515 = vunpack.c.h.b16 %v5171
    %v5516 = vunpack.c.l.b16 %v5172
    %v5517 = vunpack.c.h.b16 %v5172
    %v5518 = vunpack.c.l.b16 %v5173
    %v5519 = vunpack.c.h.b16 %v5173
    %v5520 = vunpack.c.l.b16 %v5174
    %v5521 = vunpack.c.h.b16 %v5174
    %v5522 = vunpack.c.l.b16 %v5175
    %v5523 = vunpack.c.h.b16 %v5175
    %v5524 = vunpack.c.l.b16 %v5176
    %v5525 = vunpack.c.h.b16 %v5176
    %v5526 = vunpack.c.l.b16 %v5177
    %v5527 = vunpack.c.h.b16 %v5177
    %v5528 = vunpack.c.l.b16 %v5178
    %v5529 = vunpack.c.h.b16 %v5178
    %v5530 = vunpack.c.l.b16 %v5179
    %v5531 = vunpack.c.h.b16 %v5179
    %v5532 = vunpack.c.l.b16 %v5180
    %v5533 = vunpack.c.h.b16 %v5180
    %v5534 = vunpack.c.l.b16 %v5181
    %v5535 = vunpack.c.h.b16 %v5181
    %v5536 = vunpack.c.l.b16 %v5182
    %v5537 = vunpack.c.h.b16 %v5182
    %v5538 = vunpack.c.l.b16 %v5183
    %v5539 = vunpack.c.h.b16 %v5183
    %v5540 = vunpack.c.l.b16 %v5184
    %v5541 = vunpack.c.h.b16 %v5184
    %v5542 = vunpack.c.l.b16 %v5185
    %v5543 = vunpack.c.h.b16 %v5185
    %v5544 = vunpack.c.l.b16 %v5186
    %v5545 = vunpack.c.h.b16 %v5186
    %v5546 = vunpack.c.l.b16 %v5187
    %v5547 = vunpack.c.h.b16 %v5187
    %v5548 = vunpack.c.l.b16 %v5188
    %v5549 = vunpack.c.h.b16 %v5188
    %v5550 = vunpack.c.l.b16 %v5189
    %v5551 = vunpack.c.h.b16 %v5189
    %v5552 = vunpack.c.l.b16 %v5190
    %v5553 = vunpack.c.h.b16 %v5190
    %v5554 = vunpack.c.l.b16 %v5191
    %v5555 = vunpack.c.h.b16 %v5191
    %v5556 = vunpack.c.l.b16 %v5192
    %v5557 = vunpack.c.h.b16 %v5192
    %v5558 = vunpack.c.l.b16 %v5193
    %v5559 = vunpack.c.h.b16 %v5193
    %v5560 = vunpack.c.l.b16 %v5194
    %v5561 = vunpack.c.h.b16 %v5194
    %v5562 = vunpack.c.l.b16 %v5195
    %v5563 = vunpack.c.h.b16 %v5195
    %v5564 = vunpack.c.l.b16 %v5196
    %v5565 = vunpack.c.h.b16 %v5196
    %v5566 = vunpack.c.l.b16 %v5197
    %v5567 = vunpack.c.h.b16 %v5197
    %v5568 = vunpack.c.l.b16 %v5198
    %v5569 = vunpack.c.h.b16 %v5198
    %v5570 = vunpack.c.l.b16 %v5199
    %v5571 = vunpack.c.h.b16 %v5199
    %v5572 = vunpack.c.l.b16 %v5200
    %v5573 = vunpack.c.h.b16 %v5200
    %v5574 = vunpack.c.l.b16 %v5201
    %v5575 = vunpack.c.h.b16 %v5201
    %v5576 = vunpack.c.l.b16 %v5202
    %v5577 = vunpack.c.h.b16 %v5202
    %v5578 = vunpack.c.l.b16 %v5203
    %v5579 = vunpack.c.h.b16 %v5203
    %v5580 = vunpack.c.l.b16 %v5204
    %v5581 = vunpack.c.h.b16 %v5204
    %v5582 = vunpack.c.l.b16 %v5205
    %v5583 = vunpack.c.h.b16 %v5205
    %v5584 = vunpack.c.l.b16 %v5206
    %v5585 = vunpack.c.h.b16 %v5206
    %v5586 = vunpack.c.l.b16 %v5207
    %v5587 = vunpack.c.h.b16 %v5207
    %v5588 = vunpack.c.l.b16 %v5208
    %v5589 = vunpack.c.h.b16 %v5208
    %v5590 = vunpack.c.l.b16 %v5209
    %v5591 = vunpack.c.h.b16 %v5209
    %v5592 = vunpack.c.l.b16 %v5210
    %v5593 = vunpack.c.h.b16 %v5210
    %v5594 = vunpack.c.l.b16 %v5211
    %v5595 = vunpack.c.h.b16 %v5211
    %v5596 = vunpack.c.l.b16 %v5212
    %v5597 = vunpack.c.h.b16 %v5212
    %v5598 = vunpack.c.l.b16 %v5213
    %v5599 = vunpack.c.h.b16 %v5213
    %v5600 = vunpack.c.l.b16 %v5214
    %v5601 = vunpack.c.h.b16 %v5214
    %v5602 = vunpack.c.l.b16 %v5215
    %v5603 = vunpack.c.h.b16 %v5215
    %v5604 = vunpack.c.l.b16 %v5216
    %v5605 = vunpack.c.h.b16 %v5216
    %v5606 = vunpack.c.l.b16 %v5217
    %v5607 = vunpack.c.h.b16 %v5217
    %v5608 = vunpack.c.l.b16 %v5218
    %v5609 = vunpack.c.h.b16 %v5218
    %v5610 = vunpack.c.l.b16 %v5219
    %v5611 = vunpack.c.h.b16 %v5219
    %v5612 = vunpack.c.l.b16 %v5220
    %v5613 = vunpack.c.h.b16 %v5220
    %v5614 = vunpack.c.l.b16 %v5221
    %v5615 = vunpack.c.h.b16 %v5221
    %v5616 = vunpack.c.l.b16 %v5222
    %v5617 = vunpack.c.h.b16 %v5222
    %v5618 = vunpack.c.l.b16 %v5223
    %v5619 = vunpack.c.h.b16 %v5223
    %v5620 = vunpack.c.l.b16 %v5224
    %v5621 = vunpack.c.h.b16 %v5224
    %v5622 = vunpack.c.l.b16 %v5225
    %v5623 = vunpack.c.h.b16 %v5225
    %v5624 = vunpack.c.l.b16 %v5226
    %v5625 = vunpack.c.h.b16 %v5226
    %v5626 = vunpack.c.l.b16 %v5227
    %v5627 = vunpack.c.h.b16 %v5227
    %v5628 = vunpack.c.l.b16 %v5228
    %v5629 = vunpack.c.h.b16 %v5228
    %v5630 = vunpack.c.l.b16 %v5229
    %v5631 = vunpack.c.h.b16 %v5229
    %v5632 = vunpack.c.l.b16 %v5230
    %v5633 = vunpack.c.h.b16 %v5230
    %v5634 = vunpack.c.l.b16 %v5231
    %v5635 = vunpack.c.h.b16 %v5231
    %v5636 = vunpack.c.l.b16 %v5232
    %v5637 = vunpack.c.h.b16 %v5232
    %v5638 = vunpack.c.l.b16 %v5233
    %v5639 = vunpack.c.h.b16 %v5233
    %v5640 = vpack.c.b16 %v5388, %v5384
    %v5641 = vpack.c.b16 %v5389, %v5385
    %v5642 = vpack.c.b16 %v5390, %v5386
    %v5643 = vpack.c.b16 %v5391, %v5387
    %v5644 = vpack.c.b16 %v5396, %v5392
    %v5645 = vpack.c.b16 %v5397, %v5393
    %v5646 = vpack.c.b16 %v5398, %v5394
    %v5647 = vpack.c.b16 %v5399, %v5395
    %v5648 = vpack.c.b16 %v5404, %v5400
    %v5649 = vpack.c.b16 %v5405, %v5401
    %v5650 = vpack.c.b16 %v5406, %v5402
    %v5651 = vpack.c.b16 %v5407, %v5403
    %v5652 = vpack.c.b16 %v5412, %v5408
    %v5653 = vpack.c.b16 %v5413, %v5409
    %v5654 = vpack.c.b16 %v5414, %v5410
    %v5655 = vpack.c.b16 %v5415, %v5411
    %v5656 = vpack.c.b16 %v5420, %v5416
    %v5657 = vpack.c.b16 %v5421, %v5417
    %v5658 = vpack.c.b16 %v5422, %v5418
    %v5659 = vpack.c.b16 %v5423, %v5419
    %v5660 = vpack.c.b16 %v5428, %v5424
    %v5661 = vpack.c.b16 %v5429, %v5425
    %v5662 = vpack.c.b16 %v5430, %v5426
    %v5663 = vpack.c.b16 %v5431, %v5427
    %v5664 = vpack.c.b16 %v5436, %v5432
    %v5665 = vpack.c.b16 %v5437, %v5433
    %v5666 = vpack.c.b16 %v5438, %v5434
    %v5667 = vpack.c.b16 %v5439, %v5435
    %v5668 = vpack.c.b16 %v5444, %v5440
    %v5669 = vpack.c.b16 %v5445, %v5441
    %v5670 = vpack.c.b16 %v5446, %v5442
    %v5671 = vpack.c.b16 %v5447, %v5443
    %v5672 = vpack.c.b16 %v5452, %v5448
    %v5673 = vpack.c.b16 %v5453, %v5449
    %v5674 = vpack.c.b16 %v5454, %v5450
    %v5675 = vpack.c.b16 %v5455, %v5451
    %v5676 = vpack.c.b16 %v5460, %v5456
    %v5677 = vpack.c.b16 %v5461, %v5457
    %v5678 = vpack.c.b16 %v5462, %v5458
    %v5679 = vpack.c.b16 %v5463, %v5459
    %v5680 = vpack.c.b16 %v5468, %v5464
    %v5681 = vpack.c.b16 %v5469, %v5465
    %v5682 = vpack.c.b16 %v5470, %v5466
    %v5683 = vpack.c.b16 %v5471, %v5467
    %v5684 = vpack.c.b16 %v5476, %v5472
    %v5685 = vpack.c.b16 %v5477, %v5473
    %v5686 = vpack.c.b16 %v5478, %v5474
    %v5687 = vpack.c.b16 %v5479, %v5475
    %v5688 = vpack.c.b16 %v5484, %v5480
    %v5689 = vpack.c.b16 %v5485, %v5481
    %v5690 = vpack.c.b16 %v5486, %v5482
    %v5691 = vpack.c.b16 %v5487, %v5483
    %v5692 = vpack.c.b16 %v5492, %v5488
    %v5693 = vpack.c.b16 %v5493, %v5489
    %v5694 = vpack.c.b16 %v5494, %v5490
    %v5695 = vpack.c.b16 %v5495, %v5491
    %v5696 = vpack.c.b16 %v5500, %v5496
    %v5697 = vpack.c.b16 %v5501, %v5497
    %v5698 = vpack.c.b16 %v5502, %v5498
    %v5699 = vpack.c.b16 %v5503, %v5499
    %v5700 = vpack.c.b16 %v5508, %v5504
    %v5701 = vpack.c.b16 %v5509, %v5505
    %v5702 = vpack.c.b16 %v5510, %v5506
    %v5703 = vpack.c.b16 %v5511, %v5507
    %v5704 = vpack.c.b16 %v5516, %v5512
    %v5705 = vpack.c.b16 %v5517, %v5513
    %v5706 = vpack.c.b16 %v5518, %v5514
    %v5707 = vpack.c.b16 %v5519, %v5515
    %v5708 = vpack.c.b16 %v5524, %v5520
    %v5709 = vpack.c.b16 %v5525, %v5521
    %v5710 = vpack.c.b16 %v5526, %v5522
    %v5711 = vpack.c.b16 %v5527, %v5523
    %v5712 = vpack.c.b16 %v5532, %v5528
    %v5713 = vpack.c.b16 %v5533, %v5529
    %v5714 = vpack.c.b16 %v5534, %v5530
    %v5715 = vpack.c.b16 %v5535, %v5531
    %v5716 = vpack.c.b16 %v5540, %v5536
    %v5717 = vpack.c.b16 %v5541, %v5537
    %v5718 = vpack.c.b16 %v5542, %v5538
    %v5719 = vpack.c.b16 %v5543, %v5539
    %v5720 = vpack.c.b16 %v5548, %v5544
    %v5721 = vpack.c.b16 %v5549, %v5545
    %v5722 = vpack.c.b16 %v5550, %v5546
    %v5723 = vpack.c.b16 %v5551, %v5547
    %v5724 = vpack.c.b16 %v5556, %v5552
    %v5725 = vpack.c.b16 %v5557, %v5553
    %v5726 = vpack.c.b16 %v5558, %v5554
    %v5727 = vpack.c.b16 %v5559, %v5555
    %v5728 = vpack.c.b16 %v5564, %v5560
    %v5729 = vpack.c.b16 %v5565, %v5561
    %v5730 = vpack.c.b16 %v5566, %v5562
    %v5731 = vpack.c.b16 %v5567, %v5563
    %v5732 = vpack.c.b16 %v5572, %v5568
    %v5733 = vpack.c.b16 %v5573, %v5569
    %v5734 = vpack.c.b16 %v5574, %v5570
    %v5735 = vpack.c.b16 %v5575, %v5571
    %v5736 = vpack.c.b16 %v5580, %v5576
    %v5737 = vpack.c.b16 %v5581, %v5577
    %v5738 = vpack.c.b16 %v5582, %v5578
    %v5739 = vpack.c.b16 %v5583, %v5579
    %v5740 = vpack.c.b16 %v5588, %v5584
    %v5741 = vpack.c.b16 %v5589, %v5585
    %v5742 = vpack.c.b16 %v5590, %v5586
    %v5743 = vpack.c.b16 %v5591, %v5587
    %v5744 = vpack.c.b16 %v5596, %v5592
    %v5745 = vpack.c.b16 %v5597, %v5593
    %v5746 = vpack.c.b16 %v5598, %v5594
    %v5747 = vpack.c.b16 %v5599, %v5595
    %v5748 = vpack.c.b16 %v5604, %v5600
    %v5749 = vpack.c.b16 %v5605, %v5601
    %v5750 = vpack.c.b16 %v5606, %v5602
    %v5751 = vpack.c.b16 %v5607, %v5603
    %v5752 = vpack.c.b16 %v5612, %v5608
    %v5753 = vpack.c.b16 %v5613, %v5609
    %v5754 = vpack.c.b16 %v5614, %v5610
    %v5755 = vpack.c.b16 %v5615, %v5611
    %v5756 = vpack.c.b16 %v5620, %v5616
    %v5757 = vpack.c.b16 %v5621, %v5617
    %v5758 = vpack.c.b16 %v5622, %v5618
    %v5759 = vpack.c.b16 %v5623, %v5619
    %v5760 = vpack.c.b16 %v5628, %v5624
    %v5761 = vpack.c.b16 %v5629, %v5625
    %v5762 = vpack.c.b16 %v5630, %v5626
    %v5763 = vpack.c.b16 %v5631, %v5627
    %v5764 = vpack.c.b16 %v5636, %v5632
    %v5765 = vpack.c.b16 %v5637, %v5633
    %v5766 = vpack.c.b16 %v5638, %v5634
    %v5767 = vpack.c.b16 %v5639, %v5635
    %5896 = vmatprep.subr.bf16.mxu0 %v5669
    %5897 = vmatpush1.bf16.msra.mxu0 %v5668
    %5898 = vmatprep.subr.bf16.mxu0 %v5665
    %5899 = vmatpush1.bf16.msra.mxu0 %v5664
    %5900 = vmatprep.subr.bf16.mxu0 %v5661
    %5901 = vmatpush1.bf16.msra.mxu0 %v5660
    %5902 = vmatprep.subr.bf16.mxu0 %v5657
    %5903 = vmatpush1.bf16.msra.mxu0 %v5656
    %5904 = vmatprep.subr.bf16.mxu0 %v5653
    %5905 = vmatpush1.bf16.msra.mxu0 %v5652
    %5906 = vmatprep.subr.bf16.mxu0 %v5649
    %5907 = vmatpush1.bf16.msra.mxu0 %v5648
    %5908 = vmatprep.subr.bf16.mxu0 %v5645
    %5909 = vmatpush1.bf16.msra.mxu0 %v5644
    %5910 = vmatprep.subr.bf16.mxu0 %v5641
    %5911 = vmatpush1.bf16.msra.mxu0 %v5640
    %5912 = vmatprep.subr.bf16.mxu0 %v5701
    %5913 = vmatpush2.bf16.msra.mxu0 %v5700
    %5914 = vmatprep.subr.bf16.mxu0 %v5697
    %5915 = vmatpush2.bf16.msra.mxu0 %v5696
    %5916 = vmatprep.subr.bf16.mxu0 %v5693
    %5917 = vmatpush2.bf16.msra.mxu0 %v5692
    %5918 = vmatprep.subr.bf16.mxu0 %v5689
    %5919 = vmatpush2.bf16.msra.mxu0 %v5688
    %5920 = vmatprep.subr.bf16.mxu0 %v5685
    %5921 = vmatpush2.bf16.msra.mxu0 %v5684
    %5922 = vmatprep.subr.bf16.mxu0 %v5681
    %5923 = vmatpush2.bf16.msra.mxu0 %v5680
    %5924 = vmatprep.subr.bf16.mxu0 %v5677
    %5925 = vmatpush2.bf16.msra.mxu0 %v5676
    %5926 = vmatprep.subr.bf16.mxu0 %v5673
    %5927 = vmatpush2.bf16.msra.mxu0 %v5672
    %5928 = vmatprep.mubr.bf16.mxu0 %v5091
    %5929 = vmatmul.mubr.bf16.gmra.mxu0 %v5090
    %v5930 = vpop.f32.mrf.mxu0
    %v5931 = vadd.f32 %v5239, %v5930
    %v5932 = vpop.f32.mrf.mxu0
    %v5933 = vadd.f32 %v5243, %v5932
    %v5934 = vpop.f32.mrf.mxu0
    %v5935 = vadd.f32 %v5239, %v5934
    %v5936 = vpop.f32.mrf.mxu0
    %v5937 = vadd.f32 %v5243, %v5936
    %5938 = vmatprep.mubr.bf16.mxu0 %v5095
    %5939 = vmatmul.mubr.bf16.gmra.mxu0 %v5094
    %v5940 = vpop.f32.mrf.mxu0
    %v5941 = vadd.f32 %v5239, %v5940
    %v5942 = vpop.f32.mrf.mxu0
    %v5943 = vadd.f32 %v5243, %v5942
    %v5944 = vpop.f32.mrf.mxu0
    %v5945 = vadd.f32 %v5239, %v5944
    %v5946 = vpop.f32.mrf.mxu0
    %v5947 = vadd.f32 %v5243, %v5946
    %5948 = vmatprep.mubr.bf16.mxu0 %v5099
    %5949 = vmatmul.mubr.bf16.gmra.mxu0 %v5098
    %v5950 = vpop.f32.mrf.mxu0
    %v5951 = vadd.f32 %v5239, %v5950
    %v5952 = vpop.f32.mrf.mxu0
    %v5953 = vadd.f32 %v5243, %v5952
    %v5954 = vpop.f32.mrf.mxu0
    %v5955 = vadd.f32 %v5239, %v5954
    %v5956 = vpop.f32.mrf.mxu0
    %v5957 = vadd.f32 %v5243, %v5956
    %5958 = vmatprep.mubr.bf16.mxu0 %v5103
    %5959 = vmatmul.mubr.bf16.gmra.mxu0 %v5102
    %v5960 = vpop.f32.mrf.mxu0
    %v5961 = vadd.f32 %v5239, %v5960
    %v5962 = vpop.f32.mrf.mxu0
    %v5963 = vadd.f32 %v5243, %v5962
    %v5964 = vpop.f32.mrf.mxu0
    %v5965 = vadd.f32 %v5239, %v5964
    %v5966 = vpop.f32.mrf.mxu0
    %v5967 = vadd.f32 %v5243, %v5966
    %5968 = vdwg.mxu0
    %5969 = vmatprep.subr.bf16.mxu0 %v5733
    %5970 = vmatpush1.bf16.msra.mxu0 %v5732
    %5971 = vmatprep.subr.bf16.mxu0 %v5729
    %5972 = vmatpush1.bf16.msra.mxu0 %v5728
    %5973 = vmatprep.subr.bf16.mxu0 %v5725
    %5974 = vmatpush1.bf16.msra.mxu0 %v5724
    %5975 = vmatprep.subr.bf16.mxu0 %v5721
    %5976 = vmatpush1.bf16.msra.mxu0 %v5720
    %5977 = vmatprep.subr.bf16.mxu0 %v5717
    %5978 = vmatpush1.bf16.msra.mxu0 %v5716
    %5979 = vmatprep.subr.bf16.mxu0 %v5713
    %5980 = vmatpush1.bf16.msra.mxu0 %v5712
    %5981 = vmatprep.subr.bf16.mxu0 %v5709
    %5982 = vmatpush1.bf16.msra.mxu0 %v5708
    %5983 = vmatprep.subr.bf16.mxu0 %v5705
    %5984 = vmatpush1.bf16.msra.mxu0 %v5704
    %5985 = vmatprep.subr.bf16.mxu0 %v5765
    %5986 = vmatpush2.bf16.msra.mxu0 %v5764
    %5987 = vmatprep.subr.bf16.mxu0 %v5761
    %5988 = vmatpush2.bf16.msra.mxu0 %v5760
    %5989 = vmatprep.subr.bf16.mxu0 %v5757
    %5990 = vmatpush2.bf16.msra.mxu0 %v5756
    %5991 = vmatprep.subr.bf16.mxu0 %v5753
    %5992 = vmatpush2.bf16.msra.mxu0 %v5752
    %5993 = vmatprep.subr.bf16.mxu0 %v5749
    %5994 = vmatpush2.bf16.msra.mxu0 %v5748
    %5995 = vmatprep.subr.bf16.mxu0 %v5745
    %5996 = vmatpush2.bf16.msra.mxu0 %v5744
    %5997 = vmatprep.subr.bf16.mxu0 %v5741
    %5998 = vmatpush2.bf16.msra.mxu0 %v5740
    %5999 = vmatprep.subr.bf16.mxu0 %v5737
    %6000 = vmatpush2.bf16.msra.mxu0 %v5736
    %6001 = vmatprep.mubr.bf16.mxu0 %v5093
    %6002 = vmatmul.mubr.bf16.gmra.mxu0 %v5092
    %v6003 = vpop.f32.mrf.mxu0
    %v6004 = vadd.f32 %v5931, %v6003
    %v6005 = vpop.f32.mrf.mxu0
    %v6006 = vadd.f32 %v5933, %v6005
    %v6007 = vpop.f32.mrf.mxu0
    %v6008 = vadd.f32 %v5935, %v6007
    %v6009 = vpop.f32.mrf.mxu0
    %v6010 = vadd.f32 %v5937, %v6009
    %6011 = vmatprep.mubr.bf16.mxu0 %v5097
    %6012 = vmatmul.mubr.bf16.gmra.mxu0 %v5096
    %v6013 = vpop.f32.mrf.mxu0
    %v6014 = vadd.f32 %v5941, %v6013
    %v6015 = vpop.f32.mrf.mxu0
    %v6016 = vadd.f32 %v5943, %v6015
    %v6017 = vpop.f32.mrf.mxu0
    %v6018 = vadd.f32 %v5945, %v6017
    %v6019 = vpop.f32.mrf.mxu0
    %v6020 = vadd.f32 %v5947, %v6019
    %6021 = vmatprep.mubr.bf16.mxu0 %v5101
    %6022 = vmatmul.mubr.bf16.gmra.mxu0 %v5100
    %v6023 = vpop.f32.mrf.mxu0
    %v6024 = vadd.f32 %v5951, %v6023
    %v6025 = vpop.f32.mrf.mxu0
    %v6026 = vadd.f32 %v5953, %v6025
    %v6027 = vpop.f32.mrf.mxu0
    %v6028 = vadd.f32 %v5955, %v6027
    %v6029 = vpop.f32.mrf.mxu0
    %v6030 = vadd.f32 %v5957, %v6029
    %6031 = vmatprep.mubr.bf16.mxu0 %v5105
    %6032 = vmatmul.mubr.bf16.gmra.mxu0 %v5104
    %v6033 = vpop.f32.mrf.mxu0
    %v6034 = vadd.f32 %v5961, %v6033
    %v6035 = vpop.f32.mrf.mxu0
    %v6036 = vadd.f32 %v5963, %v6035
    %v6037 = vpop.f32.mrf.mxu0
    %v6038 = vadd.f32 %v5965, %v6037
    %v6039 = vpop.f32.mrf.mxu0
    %v6040 = vadd.f32 %v5967, %v6039
    %6041 = vdwg.mxu0
    %6042 = vmatprep.subr.bf16.mxu0 %v5671
    %6043 = vmatpush1.bf16.msra.mxu0 %v5670
    %6044 = vmatprep.subr.bf16.mxu0 %v5667
    %6045 = vmatpush1.bf16.msra.mxu0 %v5666
    %6046 = vmatprep.subr.bf16.mxu0 %v5663
    %6047 = vmatpush1.bf16.msra.mxu0 %v5662
    %6048 = vmatprep.subr.bf16.mxu0 %v5659
    %6049 = vmatpush1.bf16.msra.mxu0 %v5658
    %6050 = vmatprep.subr.bf16.mxu0 %v5655
    %6051 = vmatpush1.bf16.msra.mxu0 %v5654
    %6052 = vmatprep.subr.bf16.mxu0 %v5651
    %6053 = vmatpush1.bf16.msra.mxu0 %v5650
    %6054 = vmatprep.subr.bf16.mxu0 %v5647
    %6055 = vmatpush1.bf16.msra.mxu0 %v5646
    %6056 = vmatprep.subr.bf16.mxu0 %v5643
    %6057 = vmatpush1.bf16.msra.mxu0 %v5642
    %6058 = vmatprep.subr.bf16.mxu0 %v5703
    %6059 = vmatpush2.bf16.msra.mxu0 %v5702
    %6060 = vmatprep.subr.bf16.mxu0 %v5699
    %6061 = vmatpush2.bf16.msra.mxu0 %v5698
    %6062 = vmatprep.subr.bf16.mxu0 %v5695
    %6063 = vmatpush2.bf16.msra.mxu0 %v5694
    %6064 = vmatprep.subr.bf16.mxu0 %v5691
    %6065 = vmatpush2.bf16.msra.mxu0 %v5690
    %6066 = vmatprep.subr.bf16.mxu0 %v5687
    %6067 = vmatpush2.bf16.msra.mxu0 %v5686
    %6068 = vmatprep.subr.bf16.mxu0 %v5683
    %6069 = vmatpush2.bf16.msra.mxu0 %v5682
    %6070 = vmatprep.subr.bf16.mxu0 %v5679
    %6071 = vmatpush2.bf16.msra.mxu0 %v5678
    %6072 = vmatprep.subr.bf16.mxu0 %v5675
    %6073 = vmatpush2.bf16.msra.mxu0 %v5674
    %6074 = vmatprep.mubr.bf16.mxu0 %v5091
    %6075 = vmatmul.mubr.bf16.gmra.mxu0 %v5090
    %v6076 = vpop.f32.mrf.mxu0
    %v6077 = vadd.f32 %v5247, %v6076
    %v6078 = vpop.f32.mrf.mxu0
    %v6079 = vadd.f32 %v5251, %v6078
    %v6080 = vpop.f32.mrf.mxu0
    %v6081 = vadd.f32 %v5247, %v6080
    %v6082 = vpop.f32.mrf.mxu0
    %v6083 = vadd.f32 %v5251, %v6082
    %6084 = vmatprep.mubr.bf16.mxu0 %v5095
    %6085 = vmatmul.mubr.bf16.gmra.mxu0 %v5094
    %v6086 = vpop.f32.mrf.mxu0
    %v6087 = vadd.f32 %v5247, %v6086
    %v6088 = vpop.f32.mrf.mxu0
    %v6089 = vadd.f32 %v5251, %v6088
    %v6090 = vpop.f32.mrf.mxu0
    %v6091 = vadd.f32 %v5247, %v6090
    %v6092 = vpop.f32.mrf.mxu0
    %v6093 = vadd.f32 %v5251, %v6092
    %6094 = vmatprep.mubr.bf16.mxu0 %v5099
    %6095 = vmatmul.mubr.bf16.gmra.mxu0 %v5098
    %v6096 = vpop.f32.mrf.mxu0
    %v6097 = vadd.f32 %v5247, %v6096
    %v6098 = vpop.f32.mrf.mxu0
    %v6099 = vadd.f32 %v5251, %v6098
    %v6100 = vpop.f32.mrf.mxu0
    %v6101 = vadd.f32 %v5247, %v6100
    %v6102 = vpop.f32.mrf.mxu0
    %v6103 = vadd.f32 %v5251, %v6102
    %6104 = vmatprep.mubr.bf16.mxu0 %v5103
    %6105 = vmatmul.mubr.bf16.gmra.mxu0 %v5102
    %v6106 = vpop.f32.mrf.mxu0
    %v6107 = vadd.f32 %v5247, %v6106
    %v6108 = vpop.f32.mrf.mxu0
    %v6109 = vadd.f32 %v5251, %v6108
    %v6110 = vpop.f32.mrf.mxu0
    %v6111 = vadd.f32 %v5247, %v6110
    %v6112 = vpop.f32.mrf.mxu0
    %v6113 = vadd.f32 %v5251, %v6112
    %6114 = vdwg.mxu0
    %6115 = vmatprep.subr.bf16.mxu0 %v5735
    %6116 = vmatpush1.bf16.msra.mxu0 %v5734
    %6117 = vmatprep.subr.bf16.mxu0 %v5731
    %6118 = vmatpush1.bf16.msra.mxu0 %v5730
    %6119 = vmatprep.subr.bf16.mxu0 %v5727
    %6120 = vmatpush1.bf16.msra.mxu0 %v5726
    %6121 = vmatprep.subr.bf16.mxu0 %v5723
    %6122 = vmatpush1.bf16.msra.mxu0 %v5722
    %6123 = vmatprep.subr.bf16.mxu0 %v5719
    %6124 = vmatpush1.bf16.msra.mxu0 %v5718
    %6125 = vmatprep.subr.bf16.mxu0 %v5715
    %6126 = vmatpush1.bf16.msra.mxu0 %v5714
    %6127 = vmatprep.subr.bf16.mxu0 %v5711
    %6128 = vmatpush1.bf16.msra.mxu0 %v5710
    %6129 = vmatprep.subr.bf16.mxu0 %v5707
    %6130 = vmatpush1.bf16.msra.mxu0 %v5706
    %6131 = vmatprep.subr.bf16.mxu0 %v5767
    %6132 = vmatpush2.bf16.msra.mxu0 %v5766
    %6133 = vmatprep.subr.bf16.mxu0 %v5763
    %6134 = vmatpush2.bf16.msra.mxu0 %v5762
    %6135 = vmatprep.subr.bf16.mxu0 %v5759
    %6136 = vmatpush2.bf16.msra.mxu0 %v5758
    %6137 = vmatprep.subr.bf16.mxu0 %v5755
    %6138 = vmatpush2.bf16.msra.mxu0 %v5754
    %6139 = vmatprep.subr.bf16.mxu0 %v5751
    %6140 = vmatpush2.bf16.msra.mxu0 %v5750
    %6141 = vmatprep.subr.bf16.mxu0 %v5747
    %6142 = vmatpush2.bf16.msra.mxu0 %v5746
    %6143 = vmatprep.subr.bf16.mxu0 %v5743
    %6144 = vmatpush2.bf16.msra.mxu0 %v5742
    %6145 = vmatprep.subr.bf16.mxu0 %v5739
    %6146 = vmatpush2.bf16.msra.mxu0 %v5738
    %6147 = vmatprep.mubr.bf16.mxu0 %v5093
    %6148 = vmatmul.mubr.bf16.gmra.mxu0 %v5092
    %v6149 = vpop.f32.mrf.mxu0
    %v6150 = vadd.f32 %v6077, %v6149
    %v6151 = vpop.f32.mrf.mxu0
    %v6152 = vadd.f32 %v6079, %v6151
    %v6153 = vpop.f32.mrf.mxu0
    %v6154 = vadd.f32 %v6081, %v6153
    %v6155 = vpop.f32.mrf.mxu0
    %v6156 = vadd.f32 %v6083, %v6155
    %6157 = vmatprep.mubr.bf16.mxu0 %v5097
    %6158 = vmatmul.mubr.bf16.gmra.mxu0 %v5096
    %v6159 = vpop.f32.mrf.mxu0
    %v6160 = vadd.f32 %v6087, %v6159
    %v6161 = vpop.f32.mrf.mxu0
    %v6162 = vadd.f32 %v6089, %v6161
    %v6163 = vpop.f32.mrf.mxu0
    %v6164 = vadd.f32 %v6091, %v6163
    %v6165 = vpop.f32.mrf.mxu0
    %v6166 = vadd.f32 %v6093, %v6165
    %6167 = vmatprep.mubr.bf16.mxu0 %v5101
    %6168 = vmatmul.mubr.bf16.gmra.mxu0 %v5100
    %v6169 = vpop.f32.mrf.mxu0
    %v6170 = vadd.f32 %v6097, %v6169
    %v6171 = vpop.f32.mrf.mxu0
    %v6172 = vadd.f32 %v6099, %v6171
    %v6173 = vpop.f32.mrf.mxu0
    %v6174 = vadd.f32 %v6101, %v6173
    %v6175 = vpop.f32.mrf.mxu0
    %v6176 = vadd.f32 %v6103, %v6175
    %6177 = vmatprep.mubr.bf16.mxu0 %v5105
    %6178 = vmatmul.mubr.bf16.gmra.mxu0 %v5104
    %v6179 = vpop.f32.mrf.mxu0
    %v6180 = vadd.f32 %v6107, %v6179
    %v6181 = vpop.f32.mrf.mxu0
    %v6182 = vadd.f32 %v6109, %v6181
    %v6183 = vpop.f32.mrf.mxu0
    %v6184 = vadd.f32 %v6111, %v6183
    %v6185 = vpop.f32.mrf.mxu0
    %v6186 = vadd.f32 %v6113, %v6185
    %6187 = vdwg.mxu0
    %6188 = vst [vmem:[#allocation11] sm:$0xff] %v6004
    %6189 = vst [vmem:[#allocation11 + $0x8] sm:$0xff] %v6006
    %6190 = vst [vmem:[#allocation11 + $0x10] sm:$0xff] %v6150
    %6191 = vst [vmem:[#allocation11 + $0x18] sm:$0xff] %v6152
    %6192 = vst [vmem:[#allocation11 + $0x20] sm:$0xff] %v6008
    %6193 = vst [vmem:[#allocation11 + $0x28] sm:$0xff] %v6010
    %6194 = vst [vmem:[#allocation11 + $0x30] sm:$0xff] %v6154
    %6195 = vst [vmem:[#allocation11 + $0x38] sm:$0xff] %v6156
    %6196 = vst [vmem:[#allocation11 + $0x40] sm:$0xff] %v6014
    %6197 = vst [vmem:[#allocation11 + $0x48] sm:$0xff] %v6016
    %6198 = vst [vmem:[#allocation11 + $0x50] sm:$0xff] %v6160
    %6199 = vst [vmem:[#allocation11 + $0x58] sm:$0xff] %v6162
    %6200 = vst [vmem:[#allocation11 + $0x60] sm:$0xff] %v6018
    %6201 = vst [vmem:[#allocation11 + $0x68] sm:$0xff] %v6020
    %6202 = vst [vmem:[#allocation11 + $0x70] sm:$0xff] %v6164
    %6203 = vst [vmem:[#allocation11 + $0x78] sm:$0xff] %v6166
    %6204 = vst [vmem:[#allocation11 + $0x80] sm:$0xff] %v6024
    %6205 = vst [vmem:[#allocation11 + $0x88] sm:$0xff] %v6026
    %6206 = vst [vmem:[#allocation11 + $0x90] sm:$0xff] %v6170
    %6207 = vst [vmem:[#allocation11 + $0x98] sm:$0xff] %v6172
    %6208 = vst [vmem:[#allocation11 + $0xa0] sm:$0xff] %v6028
    %6209 = vst [vmem:[#allocation11 + $0xa8] sm:$0xff] %v6030
    %6210 = vst [vmem:[#allocation11 + $0xb0] sm:$0xff] %v6174
    %6211 = vst [vmem:[#allocation11 + $0xb8] sm:$0xff] %v6176
    %6212 = vst [vmem:[#allocation11 + $0xc0] sm:$0xff] %v6034
    %6213 = vst [vmem:[#allocation11 + $0xc8] sm:$0xff] %v6036
    %6214 = vst [vmem:[#allocation11 + $0xd0] sm:$0xff] %v6180
    %6215 = vst [vmem:[#allocation11 + $0xd8] sm:$0xff] %v6182
    %6216 = vst [vmem:[#allocation11 + $0xe0] sm:$0xf] %v6038
    %6217 = vst [vmem:[#allocation11 + $0xe8] sm:$0xf] %v6040
    %6218 = vst [vmem:[#allocation11 + $0xf0] sm:$0xf] %v6184
    %6219 = vst [vmem:[#allocation11 + $0xf8] sm:$0xf] %v6186
    %s6220 = smul.u32 8, 5
    %s6221 = smul.u32 %s6220, 2
    %s6222 = smul.u32 %s6221, 2
    %s6223 = sshll.u32 %s6222, 4
    %6224 = dma.done %s2520, %s6223
    %s6225 = sshll.u32 %s6222, 4
    %6226 = dma.done %s2532, %s6225
    // Predicated region
    $region38: #{tpu_custom_call.1} parent=1 // pred_check
      _
    $region39: #{tpu_custom_call.1} parent=1 // pred_check_branch
      %6228 = sbr.rel (0) target = $region41
    $region40: #{tpu_custom_call.1} parent=1 // pred_region
      %s6230 = ssub.s32 4096, 4096
      %6231 = vsyncadd [#allocation10], %s6230
      %s6232 = sshll.u32 [#allocation11], 4
      %s6233 = int_to_ptr.vmem [resolvable:$true] %s6232
      %6238 = dma.vmem_to_hbm [thread:$0]  %s6233, 4096, %s8, [#allocation10], 512, 512, 32
    $region41: #{tpu_custom_call.1} parent=1 // pred_fallthru
      _
    // Predicated region
    $region42: #{tpu_custom_call.1} parent=1 // pred_check
      _
    $region43: #{tpu_custom_call.1} parent=1 // pred_check_branch
      %6240 = sbr.rel (0) target = $region45
    $region44: #{tpu_custom_call.1} parent=1 // pred_region
      %6241 = dma.done [#allocation10], 4096
    $region45: #{tpu_custom_call.1} parent=1 // pred_fallthru
      _
    %6242 = vsyncpa [#allocation9], 1
    %6243 = vsyncpa [#allocation10], 1
  %6244 = vsyncmov [#allocation7]
  %s6245 = vpop.sfrf %6244
  %p6246 = scmp.eq.s32.totalorder %s6245, 0
  %p6247 = pneg %p6246
  %6249 = shalt.err (%p6247)
  %s6250 = scalar_lea.sflag [#allocation7], 1
  %6251 = vsyncmov %s6250
  %s6252 = vpop.sfrf %6251
  %p6253 = scmp.eq.s32.totalorder %s6252, 0
  %p6254 = pneg %p6253
  %6256 = shalt.err (%p6254)
  %s6257 = scalar_lea.sflag [#allocation7], 2
  %6258 = vsyncmov %s6257
  %s6259 = vpop.sfrf %6258
  %p6260 = scmp.eq.s32.totalorder %s6259, 0
  %p6261 = pneg %p6260
  %6263 = shalt.err (%p6261)
  %s6264 = scalar_lea.sflag [#allocation7], 3
  %6265 = vsyncmov %s6264
  %s6266 = vpop.sfrf %6265
  %p6267 = scmp.eq.s32.totalorder %s6266, 0
  %p6268 = pneg %p6267
  %6270 = shalt.err (%p6268)
  %s6271 = scalar_lea.sflag [#allocation7], 4
  %6272 = vsyncmov %s6271
  %s6273 = vpop.sfrf %6272
  %p6274 = scmp.eq.s32.totalorder %s6273, 0
  %p6275 = pneg %p6274
  %6277 = shalt.err (%p6275)

</llo_original>
